<compile_context>
chip_gen: v6e
topology: v6e:2x2x1
jax: 0.10.0
libtpu: 0.0.40
codegen_flags: <defaults>
</compile_context>

<pallas_src>
import functools

import numpy as np
import jax
import jax.numpy as jnp
from jax.experimental import pallas as pl
from jax.experimental.pallas import tpu as pltpu


def composition_kernel(parent_ref, child_ref, att_ref, maskc_ref, maskp_ref,
                       wp_ref, wc_ref, shift_ref, out_ref, *, H, W, K, B, mm_dtype):
    # parent_ref: (C, B*HW)    f32  -- B images packed on lanes (b-major, pixel-minor)
    # child_ref : (C, K*B*HW)  f32  -- K parts x B images packed on lanes (k-major, b, pixel)
    # att_ref   : (1, B*HW)    f32  -- comp_att, same packing as parent
    # maskc_ref : (8, K*B*HW)  f32  -- boundary masks for the 8 non-center taps (child axis)
    # maskp_ref : (8, B*HW)    f32  -- boundary masks (parent axis)
    # wp_ref    : (9, C, C)    bf16/f32 -- parent-half conv weights per tap, BN scale folded
    # wc_ref    : (9, C, C)    bf16/f32 -- child-half conv weights per tap, BN scale folded
    # shift_ref : (C, 1)       f32  -- BN shift (beta - mean*scale)
    # out_ref   : (C, B*HW)    f32
    HW = H * W
    BHW = B * HW
    BKHW = B * K * HW

    parent = parent_ref[...]                                   # (C, BHW)
    att = att_ref[...]                                         # (1, BHW)
    # gate every child by comp_att (same map for all K parts -> tile along the packed lanes)
    child = child_ref[...] * jnp.tile(att, (1, K))             # (C, K*BHW)

    maskc = maskc_ref[...]                                     # (8, K*BHW)
    maskp = maskp_ref[...]                                     # (8, BHW)

    # Center tap (dh = dw = 0): no shift, no mask.  Fold the BN shift into this accumulate.
    conv_p = shift_ref[...] + jnp.dot(wp_ref[4], parent.astype(mm_dtype),
                                      preferred_element_type=jnp.float32)   # (C, BHW)
    conv_c = jnp.dot(wc_ref[4], child.astype(mm_dtype),
                     preferred_element_type=jnp.float32)                     # (C, K*BHW)

    # Remaining 8 taps: roll (XLU) + constant mask (VPU, f32) + accumulating MXU matmul.
    m = 0
    t = 0
    for dh in (-1, 0, 1):
        for dw in (-1, 0, 1):
            if dh == 0 and dw == 0:
                t += 1
                continue
            off = dh * W + dw
            p_sh = pltpu.roll(parent, shift=(-off) % BHW, axis=1) * maskp[m:m + 1, :]
            c_sh = pltpu.roll(child, shift=(-off) % BKHW, axis=1) * maskc[m:m + 1, :]
            conv_p = conv_p + jnp.dot(wp_ref[t], p_sh.astype(mm_dtype),
                                      preferred_element_type=jnp.float32)
            conv_c = conv_c + jnp.dot(wc_ref[t], c_sh.astype(mm_dtype),
                                      preferred_element_type=jnp.float32)
            m += 1
            t += 1

    # ReLU + sum over the K parts (lane slices are multiples of B*HW -> tile aligned).
    msg = jnp.zeros_like(conv_p)
    for k in range(K):
        msg = msg + jnp.maximum(conv_p + conv_c[:, k * BHW:(k + 1) * BHW], 0.0)
    out_ref[...] = msg


def _auto_images_per_step(n, max_images=8):
    """Largest divisor of n (<= max_images) that still leaves >= 2 grid steps."""
    best = 1
    for b in range(1, min(n, max_images) + 1):
        if n % b == 0 and n // b >= 2:
            best = b
    return best


def _boundary_masks(H, W):
    """(8, H*W) f32 masks for the 8 non-center 3x3 taps, in (dh, dw) row-major order."""
    hw = H * W
    h_idx = np.arange(hw) // W
    w_idx = np.arange(hw) % W
    rows = []
    for dh in (-1, 0, 1):
        for dw in (-1, 0, 1):
            if dh == 0 and dw == 0:
                continue
            valid = ((h_idx >= -dh) & (h_idx < H - dh)
                     & (w_idx >= -dw) & (w_idx < W - dw))
            rows.append(valid.astype(np.float32))
    return np.stack(rows, axis=0)


def composition_forward(parent, child_list, comp_att, weight,
                        bn_gamma, bn_beta, bn_mean, bn_var, eps=1e-5,
                        matmul_dtype=jnp.bfloat16, images_per_step=None):
    """parent: (N, C, H, W); child_list: K tensors (N, C, H, W); comp_att: (N, 1, H, W).
    weight: shared 3x3 conv weight (C, 2C, 3, 3), no bias.  BN in inference mode.
    Returns comp_message: (N, C, H, W) float32."""
    N, C, H, W = parent.shape
    K = len(child_list)
    HW = H * W

    if images_per_step is None:
        B = _auto_images_per_step(N)
    else:
        B = images_per_step
        assert N % B == 0, "images_per_step must divide the batch size"
    NB = N // B
    BHW = B * HW

    # Fold BN (eval mode) into the conv:  BN(Wx) = (scale .* W) x + shift.
    scale = (bn_gamma / jnp.sqrt(bn_var + eps)).astype(jnp.float32)        # (C,)
    shift = (bn_beta - bn_mean * scale).astype(jnp.float32)                # (C,)
    wf = weight.astype(jnp.float32) * scale[:, None, None, None]           # (C, 2C, 3, 3)
    # Per-tap weight matrices, tap index t = (dh+1)*3 + (dw+1); MXU inputs in bf16.
    wp_all = wf[:, :C].transpose(2, 3, 0, 1).reshape(9, C, C).astype(matmul_dtype)
    wc_all = wf[:, C:].transpose(2, 3, 0, 1).reshape(9, C, C).astype(matmul_dtype)
    shift_col = shift.reshape(C, 1)

    # Host-side layout plumbing: lane-dense packing of B images (and K parts) per grid step.
    parent_f = (parent.astype(jnp.float32).reshape(NB, B, C, HW)
                .transpose(0, 2, 1, 3).reshape(NB, C, BHW))
    child_f = (jnp.stack(child_list, axis=0).astype(jnp.float32)
               .reshape(K, NB, B, C, HW).transpose(1, 3, 0, 2, 4)
               .reshape(NB, C, K * BHW))
    att_f = (comp_att.astype(jnp.float32).reshape(NB, B, 1, HW)
             .transpose(0, 2, 1, 3).reshape(NB, 1, BHW))

    # Host-precomputed boundary masks (grid-invariant constants).
    mask_hw = _boundary_masks(H, W)                                        # (8, HW)
    maskc = jnp.asarray(np.tile(mask_hw, (1, K * B)))                      # (8, K*B*HW)
    maskp = jnp.asarray(np.tile(mask_hw, (1, B)))                          # (8, B*HW)

    kernel = functools.partial(composition_kernel, H=H, W=W, K=K, B=B,
                               mm_dtype=matmul_dtype)

    out = pl.pallas_call(
        kernel,
        out_shape=jax.ShapeDtypeStruct((NB, C, BHW), jnp.float32),
        grid=(NB,),
        in_specs=[
            pl.BlockSpec((None, C, BHW), lambda i: (i, 0, 0)),             # parent (packed)
            pl.BlockSpec((None, C, K * BHW), lambda i: (i, 0, 0)),         # children (packed)
            pl.BlockSpec((None, 1, BHW), lambda i: (i, 0, 0)),             # comp_att (packed)
            pl.BlockSpec((8, K * BHW), lambda i: (0, 0)),                  # child masks
            pl.BlockSpec((8, BHW), lambda i: (0, 0)),                      # parent masks
            pl.BlockSpec((9, C, C), lambda i: (0, 0, 0)),                  # wp (scale-folded)
            pl.BlockSpec((9, C, C), lambda i: (0, 0, 0)),                  # wc (scale-folded)
            pl.BlockSpec((C, 1), lambda i: (0, 0)),                        # bn shift
        ],
        out_specs=pl.BlockSpec((None, C, BHW), lambda i: (i, 0, 0)),
        compiler_params=pltpu.CompilerParams(dimension_semantics=("parallel",)),
    )(parent_f, child_f, att_f, maskc, maskp, wp_all, wc_all, shift_col)

    # Unpack the lane-packed images back to (N, C, H, W).
    return (out.reshape(NB, C, B, HW).transpose(0, 2, 1, 3)
            .reshape(N, C, H, W))


def composition_ref(parent, child_list, comp_att, weight,
                    bn_gamma, bn_beta, bn_mean, bn_var, eps=1e-5):
    """Pure-JAX reference mirroring the PyTorch forward (eval-mode BN)."""
    scale = bn_gamma / jnp.sqrt(bn_var + eps)
    shift = bn_beta - bn_mean * scale
    msg = 0.0
    for ch in child_list:
        x = jnp.concatenate([parent, ch * comp_att], axis=1)              # (N, 2C, H, W)
        y = jax.lax.conv_general_dilated(
            x, weight, window_strides=(1, 1), padding=((1, 1), (1, 1)),
            dimension_numbers=("NCHW", "OIHW", "NCHW"),
            precision=jax.lax.Precision.HIGHEST)
        z = y * scale[None, :, None, None] + shift[None, :, None, None]
        msg = msg + jnp.maximum(z, 0.0)
    return msg


if __name__ == "__main__":
    # Small shapes consistent with the module: hidden_dim=32, parts_num=3.
    N, C, H, W = 2, 32, 16, 16
    PARTS = 3

    key = jax.random.PRNGKey(0)
    keys = jax.random.split(key, 16)

    parent = jax.random.normal(keys[0], (N, C, H, W), dtype=jnp.float32)
    child_list = [jax.random.normal(keys[1 + i], (N, C, H, W), dtype=jnp.float32)
                  for i in range(PARTS)]
    comp_att = jax.random.uniform(keys[1 + PARTS], (N, 1, H, W), dtype=jnp.float32)

    weight = jax.random.normal(keys[2 + PARTS], (C, 2 * C, 3, 3), dtype=jnp.float32) * 0.05
    bn_gamma = 1.0 + 0.1 * jax.random.normal(keys[3 + PARTS], (C,), dtype=jnp.float32)
    bn_beta = 0.1 * jax.random.normal(keys[4 + PARTS], (C,), dtype=jnp.float32)
    bn_mean = 0.1 * jax.random.normal(keys[5 + PARTS], (C,), dtype=jnp.float32)
    bn_var = jax.random.uniform(keys[6 + PARTS], (C,), dtype=jnp.float32,
                                minval=0.5, maxval=1.5)

    ref = composition_ref(parent, child_list, comp_att, weight,
                          bn_gamma, bn_beta, bn_mean, bn_var)

    # Structural correctness check with f32 MXU inputs (tight tolerance).
    out_f32 = composition_forward(parent, child_list, comp_att, weight,
                                  bn_gamma, bn_beta, bn_mean, bn_var,
                                  matmul_dtype=jnp.float32)
    out_f32 = jax.block_until_ready(out_f32)
    np.testing.assert_allclose(np.asarray(out_f32), np.asarray(ref), rtol=1e-4, atol=1e-4)

    # Optimized path: bf16 MXU inputs, f32 accumulation (looser tolerance).
    out_bf16 = composition_forward(parent, child_list, comp_att, weight,
                                   bn_gamma, bn_beta, bn_mean, bn_var,
                                   matmul_dtype=jnp.bfloat16)
    out_bf16 = jax.block_until_ready(out_bf16)
    np.testing.assert_allclose(np.asarray(out_bf16), np.asarray(ref), rtol=5e-2, atol=5e-2)

    print("KERNEL_OK")
</pallas_src>

<mosaic_0001>
module attributes {stable_mosaic.version = 11 : i64} {
  func.func @composition_kernel(%arg0: i32, %arg1: memref<1x32x256xf32, #tpu.memory_space<vmem>>, %arg2: memref<1x32x768xf32, #tpu.memory_space<vmem>>, %arg3: memref<1x1x256xf32, #tpu.memory_space<vmem>>, %arg4: memref<8x768xf32, #tpu.memory_space<vmem>>, %arg5: memref<8x256xf32, #tpu.memory_space<vmem>>, %arg6: memref<9x32x32xf32, #tpu.memory_space<vmem>>, %arg7: memref<9x32x32xf32, #tpu.memory_space<vmem>>, %arg8: memref<32x1xf32, #tpu.memory_space<vmem>>, %arg9: memref<1x32x256xf32, #tpu.memory_space<vmem>>) attributes {dimension_semantics = [#tpu.dimension_semantics<parallel>], iteration_bounds = array<i64: 2>, scalar_prefetch = 0 : i64, scratch_operands = 0 : i64, tpu.core_type = #tpu.core_type<tc>, window_params = [{transform_indices = @transform_0, window_bounds = array<i64: 1, 32, 256>}, {transform_indices = @transform_1, window_bounds = array<i64: 1, 32, 768>}, {transform_indices = @transform_2, window_bounds = array<i64: 1, 1, 256>}, {pipeline_mode = #tpu.pipeline_mode<synchronous>, transform_indices = @transform_3, window_bounds = array<i64: 8, 768>}, {pipeline_mode = #tpu.pipeline_mode<synchronous>, transform_indices = @transform_4, window_bounds = array<i64: 8, 256>}, {pipeline_mode = #tpu.pipeline_mode<synchronous>, transform_indices = @transform_5, window_bounds = array<i64: 9, 32, 32>}, {pipeline_mode = #tpu.pipeline_mode<synchronous>, transform_indices = @transform_6, window_bounds = array<i64: 9, 32, 32>}, {pipeline_mode = #tpu.pipeline_mode<synchronous>, transform_indices = @transform_7, window_bounds = array<i64: 32, 1>}, {transform_indices = @transform_8, window_bounds = array<i64: 1, 32, 256>}]} {
    %c0 = arith.constant 0 : index
    %c0_0 = arith.constant 0 : index
    %c0_1 = arith.constant 0 : index
    %0 = vector.load %arg1[%c0, %c0_0, %c0_1] : memref<1x32x256xf32, #tpu.memory_space<vmem>>, vector<1x32x256xf32>
    %1 = vector.shape_cast %0 : vector<1x32x256xf32> to vector<32x256xf32>
    %c0_2 = arith.constant 0 : index
    %c0_3 = arith.constant 0 : index
    %c0_4 = arith.constant 0 : index
    %2 = vector.load %arg3[%c0_2, %c0_3, %c0_4] : memref<1x1x256xf32, #tpu.memory_space<vmem>>, vector<1x1x256xf32>
    %3 = vector.shape_cast %2 : vector<1x1x256xf32> to vector<1x256xf32>
    %c0_5 = arith.constant 0 : index
    %c0_6 = arith.constant 0 : index
    %c0_7 = arith.constant 0 : index
    %4 = vector.load %arg2[%c0_5, %c0_6, %c0_7] : memref<1x32x768xf32, #tpu.memory_space<vmem>>, vector<1x32x768xf32>
    %5 = vector.shape_cast %4 : vector<1x32x768xf32> to vector<32x768xf32>
    %6 = tpu.concatenate %3, %3, %3 in 1 : vector<1x256xf32>, vector<1x256xf32>, vector<1x256xf32> -> vector<1x768xf32>
    %7 = vector.broadcast %6 : vector<1x768xf32> to vector<32x768xf32>
    %8 = arith.mulf %5, %7 : vector<32x768xf32>
    %c0_8 = arith.constant 0 : index
    %c0_9 = arith.constant 0 : index
    %9 = vector.load %arg4[%c0_8, %c0_9] : memref<8x768xf32, #tpu.memory_space<vmem>>, vector<8x768xf32>
    %c0_10 = arith.constant 0 : index
    %c0_11 = arith.constant 0 : index
    %10 = vector.load %arg5[%c0_10, %c0_11] : memref<8x256xf32, #tpu.memory_space<vmem>>, vector<8x256xf32>
    %c0_12 = arith.constant 0 : index
    %c0_13 = arith.constant 0 : index
    %11 = vector.load %arg8[%c0_12, %c0_13] : memref<32x1xf32, #tpu.memory_space<vmem>>, vector<32x1xf32>
    %c4 = arith.constant 4 : index
    %c0_14 = arith.constant 0 : index
    %c0_15 = arith.constant 0 : index
    %12 = vector.load %arg6[%c4, %c0_14, %c0_15] : memref<9x32x32xf32, #tpu.memory_space<vmem>>, vector<1x32x32xf32>
    %13 = vector.shape_cast %12 : vector<1x32x32xf32> to vector<32x32xf32>
    %cst = arith.constant dense<0.000000e+00> : vector<32x256xf32>
    %14 = tpu.matmul %13, %1, %cst {dimension_numbers = #tpu.dot_dimension_numbers<[1], [0], [0], [1], [0, 0, 1, 1], [], []>} : vector<32x32xf32>, vector<32x256xf32>, vector<32x256xf32> -> vector<32x256xf32>
    %15 = vector.broadcast %11 : vector<32x1xf32> to vector<32x256xf32>
    %16 = arith.addf %15, %14 : vector<32x256xf32>
    %c4_16 = arith.constant 4 : index
    %c0_17 = arith.constant 0 : index
    %c0_18 = arith.constant 0 : index
    %17 = vector.load %arg7[%c4_16, %c0_17, %c0_18] : memref<9x32x32xf32, #tpu.memory_space<vmem>>, vector<1x32x32xf32>
    %18 = vector.shape_cast %17 : vector<1x32x32xf32> to vector<32x32xf32>
    %cst_19 = arith.constant dense<0.000000e+00> : vector<32x768xf32>
    %19 = tpu.matmul %18, %8, %cst_19 {dimension_numbers = #tpu.dot_dimension_numbers<[1], [0], [0], [1], [0, 0, 1, 1], [], []>} : vector<32x32xf32>, vector<32x768xf32>, vector<32x768xf32> -> vector<32x768xf32>
    %c17_i32 = arith.constant 17 : i32
    %20 = tpu.dynamic_rotate %1 by %c17_i32 dim 1 : vector<32x256xf32>, i32 -> vector<32x256xf32>
    %21 = vector.extract_strided_slice %10 {offsets = [0, 0], sizes = [1, 256], strides = [1, 1]} : vector<8x256xf32> to vector<1x256xf32>
    %22 = vector.broadcast %21 : vector<1x256xf32> to vector<32x256xf32>
    %23 = arith.mulf %20, %22 : vector<32x256xf32>
    %c17_i32_20 = arith.constant 17 : i32
    %24 = tpu.dynamic_rotate %8 by %c17_i32_20 dim 1 : vector<32x768xf32>, i32 -> vector<32x768xf32>
    %25 = vector.extract_strided_slice %9 {offsets = [0, 0], sizes = [1, 768], strides = [1, 1]} : vector<8x768xf32> to vector<1x768xf32>
    %26 = vector.broadcast %25 : vector<1x768xf32> to vector<32x768xf32>
    %27 = arith.mulf %24, %26 : vector<32x768xf32>
    %c0_21 = arith.constant 0 : index
    %c0_22 = arith.constant 0 : index
    %c0_23 = arith.constant 0 : index
    %28 = vector.load %arg6[%c0_21, %c0_22, %c0_23] : memref<9x32x32xf32, #tpu.memory_space<vmem>>, vector<1x32x32xf32>
    %29 = vector.shape_cast %28 : vector<1x32x32xf32> to vector<32x32xf32>
    %cst_24 = arith.constant dense<0.000000e+00> : vector<32x256xf32>
    %30 = tpu.matmul %29, %23, %cst_24 {dimension_numbers = #tpu.dot_dimension_numbers<[1], [0], [0], [1], [0, 0, 1, 1], [], []>} : vector<32x32xf32>, vector<32x256xf32>, vector<32x256xf32> -> vector<32x256xf32>
    %31 = arith.addf %16, %30 : vector<32x256xf32>
    %c0_25 = arith.constant 0 : index
    %c0_26 = arith.constant 0 : index
    %c0_27 = arith.constant 0 : index
    %32 = vector.load %arg7[%c0_25, %c0_26, %c0_27] : memref<9x32x32xf32, #tpu.memory_space<vmem>>, vector<1x32x32xf32>
    %33 = vector.shape_cast %32 : vector<1x32x32xf32> to vector<32x32xf32>
    %cst_28 = arith.constant dense<0.000000e+00> : vector<32x768xf32>
    %34 = tpu.matmul %33, %27, %cst_28 {dimension_numbers = #tpu.dot_dimension_numbers<[1], [0], [0], [1], [0, 0, 1, 1], [], []>} : vector<32x32xf32>, vector<32x768xf32>, vector<32x768xf32> -> vector<32x768xf32>
    %35 = arith.addf %19, %34 : vector<32x768xf32>
    %c16_i32 = arith.constant 16 : i32
    %36 = tpu.dynamic_rotate %1 by %c16_i32 dim 1 : vector<32x256xf32>, i32 -> vector<32x256xf32>
    %37 = vector.extract_strided_slice %10 {offsets = [1, 0], sizes = [1, 256], strides = [1, 1]} : vector<8x256xf32> to vector<1x256xf32>
    %38 = vector.broadcast %37 : vector<1x256xf32> to vector<32x256xf32>
    %39 = arith.mulf %36, %38 : vector<32x256xf32>
    %c16_i32_29 = arith.constant 16 : i32
    %40 = tpu.dynamic_rotate %8 by %c16_i32_29 dim 1 : vector<32x768xf32>, i32 -> vector<32x768xf32>
    %41 = vector.extract_strided_slice %9 {offsets = [1, 0], sizes = [1, 768], strides = [1, 1]} : vector<8x768xf32> to vector<1x768xf32>
    %42 = vector.broadcast %41 : vector<1x768xf32> to vector<32x768xf32>
    %43 = arith.mulf %40, %42 : vector<32x768xf32>
    %c1 = arith.constant 1 : index
    %c0_30 = arith.constant 0 : index
    %c0_31 = arith.constant 0 : index
    %44 = vector.load %arg6[%c1, %c0_30, %c0_31] : memref<9x32x32xf32, #tpu.memory_space<vmem>>, vector<1x32x32xf32>
    %45 = vector.shape_cast %44 : vector<1x32x32xf32> to vector<32x32xf32>
    %cst_32 = arith.constant dense<0.000000e+00> : vector<32x256xf32>
    %46 = tpu.matmul %45, %39, %cst_32 {dimension_numbers = #tpu.dot_dimension_numbers<[1], [0], [0], [1], [0, 0, 1, 1], [], []>} : vector<32x32xf32>, vector<32x256xf32>, vector<32x256xf32> -> vector<32x256xf32>
    %47 = arith.addf %31, %46 : vector<32x256xf32>
    %c1_33 = arith.constant 1 : index
    %c0_34 = arith.constant 0 : index
    %c0_35 = arith.constant 0 : index
    %48 = vector.load %arg7[%c1_33, %c0_34, %c0_35] : memref<9x32x32xf32, #tpu.memory_space<vmem>>, vector<1x32x32xf32>
    %49 = vector.shape_cast %48 : vector<1x32x32xf32> to vector<32x32xf32>
    %cst_36 = arith.constant dense<0.000000e+00> : vector<32x768xf32>
    %50 = tpu.matmul %49, %43, %cst_36 {dimension_numbers = #tpu.dot_dimension_numbers<[1], [0], [0], [1], [0, 0, 1, 1], [], []>} : vector<32x32xf32>, vector<32x768xf32>, vector<32x768xf32> -> vector<32x768xf32>
    %51 = arith.addf %35, %50 : vector<32x768xf32>
    %c15_i32 = arith.constant 15 : i32
    %52 = tpu.dynamic_rotate %1 by %c15_i32 dim 1 : vector<32x256xf32>, i32 -> vector<32x256xf32>
    %53 = vector.extract_strided_slice %10 {offsets = [2, 0], sizes = [1, 256], strides = [1, 1]} : vector<8x256xf32> to vector<1x256xf32>
    %54 = vector.broadcast %53 : vector<1x256xf32> to vector<32x256xf32>
    %55 = arith.mulf %52, %54 : vector<32x256xf32>
    %c15_i32_37 = arith.constant 15 : i32
    %56 = tpu.dynamic_rotate %8 by %c15_i32_37 dim 1 : vector<32x768xf32>, i32 -> vector<32x768xf32>
    %57 = vector.extract_strided_slice %9 {offsets = [2, 0], sizes = [1, 768], strides = [1, 1]} : vector<8x768xf32> to vector<1x768xf32>
    %58 = vector.broadcast %57 : vector<1x768xf32> to vector<32x768xf32>
    %59 = arith.mulf %56, %58 : vector<32x768xf32>
    %c2 = arith.constant 2 : index
    %c0_38 = arith.constant 0 : index
    %c0_39 = arith.constant 0 : index
    %60 = vector.load %arg6[%c2, %c0_38, %c0_39] : memref<9x32x32xf32, #tpu.memory_space<vmem>>, vector<1x32x32xf32>
    %61 = vector.shape_cast %60 : vector<1x32x32xf32> to vector<32x32xf32>
    %cst_40 = arith.constant dense<0.000000e+00> : vector<32x256xf32>
    %62 = tpu.matmul %61, %55, %cst_40 {dimension_numbers = #tpu.dot_dimension_numbers<[1], [0], [0], [1], [0, 0, 1, 1], [], []>} : vector<32x32xf32>, vector<32x256xf32>, vector<32x256xf32> -> vector<32x256xf32>
    %63 = arith.addf %47, %62 : vector<32x256xf32>
    %c2_41 = arith.constant 2 : index
    %c0_42 = arith.constant 0 : index
    %c0_43 = arith.constant 0 : index
    %64 = vector.load %arg7[%c2_41, %c0_42, %c0_43] : memref<9x32x32xf32, #tpu.memory_space<vmem>>, vector<1x32x32xf32>
    %65 = vector.shape_cast %64 : vector<1x32x32xf32> to vector<32x32xf32>
    %cst_44 = arith.constant dense<0.000000e+00> : vector<32x768xf32>
    %66 = tpu.matmul %65, %59, %cst_44 {dimension_numbers = #tpu.dot_dimension_numbers<[1], [0], [0], [1], [0, 0, 1, 1], [], []>} : vector<32x32xf32>, vector<32x768xf32>, vector<32x768xf32> -> vector<32x768xf32>
    %67 = arith.addf %51, %66 : vector<32x768xf32>
    %c1_i32 = arith.constant 1 : i32
    %68 = tpu.dynamic_rotate %1 by %c1_i32 dim 1 : vector<32x256xf32>, i32 -> vector<32x256xf32>
    %69 = vector.extract_strided_slice %10 {offsets = [3, 0], sizes = [1, 256], strides = [1, 1]} : vector<8x256xf32> to vector<1x256xf32>
    %70 = vector.broadcast %69 : vector<1x256xf32> to vector<32x256xf32>
    %71 = arith.mulf %68, %70 : vector<32x256xf32>
    %c1_i32_45 = arith.constant 1 : i32
    %72 = tpu.dynamic_rotate %8 by %c1_i32_45 dim 1 : vector<32x768xf32>, i32 -> vector<32x768xf32>
    %73 = vector.extract_strided_slice %9 {offsets = [3, 0], sizes = [1, 768], strides = [1, 1]} : vector<8x768xf32> to vector<1x768xf32>
    %74 = vector.broadcast %73 : vector<1x768xf32> to vector<32x768xf32>
    %75 = arith.mulf %72, %74 : vector<32x768xf32>
    %c3 = arith.constant 3 : index
    %c0_46 = arith.constant 0 : index
    %c0_47 = arith.constant 0 : index
    %76 = vector.load %arg6[%c3, %c0_46, %c0_47] : memref<9x32x32xf32, #tpu.memory_space<vmem>>, vector<1x32x32xf32>
    %77 = vector.shape_cast %76 : vector<1x32x32xf32> to vector<32x32xf32>
    %cst_48 = arith.constant dense<0.000000e+00> : vector<32x256xf32>
    %78 = tpu.matmul %77, %71, %cst_48 {dimension_numbers = #tpu.dot_dimension_numbers<[1], [0], [0], [1], [0, 0, 1, 1], [], []>} : vector<32x32xf32>, vector<32x256xf32>, vector<32x256xf32> -> vector<32x256xf32>
    %79 = arith.addf %63, %78 : vector<32x256xf32>
    %c3_49 = arith.constant 3 : index
    %c0_50 = arith.constant 0 : index
    %c0_51 = arith.constant 0 : index
    %80 = vector.load %arg7[%c3_49, %c0_50, %c0_51] : memref<9x32x32xf32, #tpu.memory_space<vmem>>, vector<1x32x32xf32>
    %81 = vector.shape_cast %80 : vector<1x32x32xf32> to vector<32x32xf32>
    %cst_52 = arith.constant dense<0.000000e+00> : vector<32x768xf32>
    %82 = tpu.matmul %81, %75, %cst_52 {dimension_numbers = #tpu.dot_dimension_numbers<[1], [0], [0], [1], [0, 0, 1, 1], [], []>} : vector<32x32xf32>, vector<32x768xf32>, vector<32x768xf32> -> vector<32x768xf32>
    %83 = arith.addf %67, %82 : vector<32x768xf32>
    %c255_i32 = arith.constant 255 : i32
    %84 = tpu.dynamic_rotate %1 by %c255_i32 dim 1 : vector<32x256xf32>, i32 -> vector<32x256xf32>
    %85 = vector.extract_strided_slice %10 {offsets = [4, 0], sizes = [1, 256], strides = [1, 1]} : vector<8x256xf32> to vector<1x256xf32>
    %86 = vector.broadcast %85 : vector<1x256xf32> to vector<32x256xf32>
    %87 = arith.mulf %84, %86 : vector<32x256xf32>
    %c767_i32 = arith.constant 767 : i32
    %88 = tpu.dynamic_rotate %8 by %c767_i32 dim 1 : vector<32x768xf32>, i32 -> vector<32x768xf32>
    %89 = vector.extract_strided_slice %9 {offsets = [4, 0], sizes = [1, 768], strides = [1, 1]} : vector<8x768xf32> to vector<1x768xf32>
    %90 = vector.broadcast %89 : vector<1x768xf32> to vector<32x768xf32>
    %91 = arith.mulf %88, %90 : vector<32x768xf32>
    %c5 = arith.constant 5 : index
    %c0_53 = arith.constant 0 : index
    %c0_54 = arith.constant 0 : index
    %92 = vector.load %arg6[%c5, %c0_53, %c0_54] : memref<9x32x32xf32, #tpu.memory_space<vmem>>, vector<1x32x32xf32>
    %93 = vector.shape_cast %92 : vector<1x32x32xf32> to vector<32x32xf32>
    %cst_55 = arith.constant dense<0.000000e+00> : vector<32x256xf32>
    %94 = tpu.matmul %93, %87, %cst_55 {dimension_numbers = #tpu.dot_dimension_numbers<[1], [0], [0], [1], [0, 0, 1, 1], [], []>} : vector<32x32xf32>, vector<32x256xf32>, vector<32x256xf32> -> vector<32x256xf32>
    %95 = arith.addf %79, %94 : vector<32x256xf32>
    %c5_56 = arith.constant 5 : index
    %c0_57 = arith.constant 0 : index
    %c0_58 = arith.constant 0 : index
    %96 = vector.load %arg7[%c5_56, %c0_57, %c0_58] : memref<9x32x32xf32, #tpu.memory_space<vmem>>, vector<1x32x32xf32>
    %97 = vector.shape_cast %96 : vector<1x32x32xf32> to vector<32x32xf32>
    %cst_59 = arith.constant dense<0.000000e+00> : vector<32x768xf32>
    %98 = tpu.matmul %97, %91, %cst_59 {dimension_numbers = #tpu.dot_dimension_numbers<[1], [0], [0], [1], [0, 0, 1, 1], [], []>} : vector<32x32xf32>, vector<32x768xf32>, vector<32x768xf32> -> vector<32x768xf32>
    %99 = arith.addf %83, %98 : vector<32x768xf32>
    %c241_i32 = arith.constant 241 : i32
    %100 = tpu.dynamic_rotate %1 by %c241_i32 dim 1 : vector<32x256xf32>, i32 -> vector<32x256xf32>
    %101 = vector.extract_strided_slice %10 {offsets = [5, 0], sizes = [1, 256], strides = [1, 1]} : vector<8x256xf32> to vector<1x256xf32>
    %102 = vector.broadcast %101 : vector<1x256xf32> to vector<32x256xf32>
    %103 = arith.mulf %100, %102 : vector<32x256xf32>
    %c753_i32 = arith.constant 753 : i32
    %104 = tpu.dynamic_rotate %8 by %c753_i32 dim 1 : vector<32x768xf32>, i32 -> vector<32x768xf32>
    %105 = vector.extract_strided_slice %9 {offsets = [5, 0], sizes = [1, 768], strides = [1, 1]} : vector<8x768xf32> to vector<1x768xf32>
    %106 = vector.broadcast %105 : vector<1x768xf32> to vector<32x768xf32>
    %107 = arith.mulf %104, %106 : vector<32x768xf32>
    %c6 = arith.constant 6 : index
    %c0_60 = arith.constant 0 : index
    %c0_61 = arith.constant 0 : index
    %108 = vector.load %arg6[%c6, %c0_60, %c0_61] : memref<9x32x32xf32, #tpu.memory_space<vmem>>, vector<1x32x32xf32>
    %109 = vector.shape_cast %108 : vector<1x32x32xf32> to vector<32x32xf32>
    %cst_62 = arith.constant dense<0.000000e+00> : vector<32x256xf32>
    %110 = tpu.matmul %109, %103, %cst_62 {dimension_numbers = #tpu.dot_dimension_numbers<[1], [0], [0], [1], [0, 0, 1, 1], [], []>} : vector<32x32xf32>, vector<32x256xf32>, vector<32x256xf32> -> vector<32x256xf32>
    %111 = arith.addf %95, %110 : vector<32x256xf32>
    %c6_63 = arith.constant 6 : index
    %c0_64 = arith.constant 0 : index
    %c0_65 = arith.constant 0 : index
    %112 = vector.load %arg7[%c6_63, %c0_64, %c0_65] : memref<9x32x32xf32, #tpu.memory_space<vmem>>, vector<1x32x32xf32>
    %113 = vector.shape_cast %112 : vector<1x32x32xf32> to vector<32x32xf32>
    %cst_66 = arith.constant dense<0.000000e+00> : vector<32x768xf32>
    %114 = tpu.matmul %113, %107, %cst_66 {dimension_numbers = #tpu.dot_dimension_numbers<[1], [0], [0], [1], [0, 0, 1, 1], [], []>} : vector<32x32xf32>, vector<32x768xf32>, vector<32x768xf32> -> vector<32x768xf32>
    %115 = arith.addf %99, %114 : vector<32x768xf32>
    %c240_i32 = arith.constant 240 : i32
    %116 = tpu.dynamic_rotate %1 by %c240_i32 dim 1 : vector<32x256xf32>, i32 -> vector<32x256xf32>
    %117 = vector.extract_strided_slice %10 {offsets = [6, 0], sizes = [1, 256], strides = [1, 1]} : vector<8x256xf32> to vector<1x256xf32>
    %118 = vector.broadcast %117 : vector<1x256xf32> to vector<32x256xf32>
    %119 = arith.mulf %116, %118 : vector<32x256xf32>
    %c752_i32 = arith.constant 752 : i32
    %120 = tpu.dynamic_rotate %8 by %c752_i32 dim 1 : vector<32x768xf32>, i32 -> vector<32x768xf32>
    %121 = vector.extract_strided_slice %9 {offsets = [6, 0], sizes = [1, 768], strides = [1, 1]} : vector<8x768xf32> to vector<1x768xf32>
    %122 = vector.broadcast %121 : vector<1x768xf32> to vector<32x768xf32>
    %123 = arith.mulf %120, %122 : vector<32x768xf32>
    %c7 = arith.constant 7 : index
    %c0_67 = arith.constant 0 : index
    %c0_68 = arith.constant 0 : index
    %124 = vector.load %arg6[%c7, %c0_67, %c0_68] : memref<9x32x32xf32, #tpu.memory_space<vmem>>, vector<1x32x32xf32>
    %125 = vector.shape_cast %124 : vector<1x32x32xf32> to vector<32x32xf32>
    %cst_69 = arith.constant dense<0.000000e+00> : vector<32x256xf32>
    %126 = tpu.matmul %125, %119, %cst_69 {dimension_numbers = #tpu.dot_dimension_numbers<[1], [0], [0], [1], [0, 0, 1, 1], [], []>} : vector<32x32xf32>, vector<32x256xf32>, vector<32x256xf32> -> vector<32x256xf32>
    %127 = arith.addf %111, %126 : vector<32x256xf32>
    %c7_70 = arith.constant 7 : index
    %c0_71 = arith.constant 0 : index
    %c0_72 = arith.constant 0 : index
    %128 = vector.load %arg7[%c7_70, %c0_71, %c0_72] : memref<9x32x32xf32, #tpu.memory_space<vmem>>, vector<1x32x32xf32>
    %129 = vector.shape_cast %128 : vector<1x32x32xf32> to vector<32x32xf32>
    %cst_73 = arith.constant dense<0.000000e+00> : vector<32x768xf32>
    %130 = tpu.matmul %129, %123, %cst_73 {dimension_numbers = #tpu.dot_dimension_numbers<[1], [0], [0], [1], [0, 0, 1, 1], [], []>} : vector<32x32xf32>, vector<32x768xf32>, vector<32x768xf32> -> vector<32x768xf32>
    %131 = arith.addf %115, %130 : vector<32x768xf32>
    %c239_i32 = arith.constant 239 : i32
    %132 = tpu.dynamic_rotate %1 by %c239_i32 dim 1 : vector<32x256xf32>, i32 -> vector<32x256xf32>
    %133 = vector.extract_strided_slice %10 {offsets = [7, 0], sizes = [1, 256], strides = [1, 1]} : vector<8x256xf32> to vector<1x256xf32>
    %134 = vector.broadcast %133 : vector<1x256xf32> to vector<32x256xf32>
    %135 = arith.mulf %132, %134 : vector<32x256xf32>
    %c751_i32 = arith.constant 751 : i32
    %136 = tpu.dynamic_rotate %8 by %c751_i32 dim 1 : vector<32x768xf32>, i32 -> vector<32x768xf32>
    %137 = vector.extract_strided_slice %9 {offsets = [7, 0], sizes = [1, 768], strides = [1, 1]} : vector<8x768xf32> to vector<1x768xf32>
    %138 = vector.broadcast %137 : vector<1x768xf32> to vector<32x768xf32>
    %139 = arith.mulf %136, %138 : vector<32x768xf32>
    %c8 = arith.constant 8 : index
    %c0_74 = arith.constant 0 : index
    %c0_75 = arith.constant 0 : index
    %140 = vector.load %arg6[%c8, %c0_74, %c0_75] : memref<9x32x32xf32, #tpu.memory_space<vmem>>, vector<1x32x32xf32>
    %141 = vector.shape_cast %140 : vector<1x32x32xf32> to vector<32x32xf32>
    %cst_76 = arith.constant dense<0.000000e+00> : vector<32x256xf32>
    %142 = tpu.matmul %141, %135, %cst_76 {dimension_numbers = #tpu.dot_dimension_numbers<[1], [0], [0], [1], [0, 0, 1, 1], [], []>} : vector<32x32xf32>, vector<32x256xf32>, vector<32x256xf32> -> vector<32x256xf32>
    %143 = arith.addf %127, %142 : vector<32x256xf32>
    %c8_77 = arith.constant 8 : index
    %c0_78 = arith.constant 0 : index
    %c0_79 = arith.constant 0 : index
    %144 = vector.load %arg7[%c8_77, %c0_78, %c0_79] : memref<9x32x32xf32, #tpu.memory_space<vmem>>, vector<1x32x32xf32>
    %145 = vector.shape_cast %144 : vector<1x32x32xf32> to vector<32x32xf32>
    %cst_80 = arith.constant dense<0.000000e+00> : vector<32x768xf32>
    %146 = tpu.matmul %145, %139, %cst_80 {dimension_numbers = #tpu.dot_dimension_numbers<[1], [0], [0], [1], [0, 0, 1, 1], [], []>} : vector<32x32xf32>, vector<32x768xf32>, vector<32x768xf32> -> vector<32x768xf32>
    %147 = arith.addf %131, %146 : vector<32x768xf32>
    %cst_81 = arith.constant 0.000000e+00 : f32
    %148 = vector.broadcast %cst_81 : f32 to vector<32x256xf32>
    %149 = vector.extract_strided_slice %147 {offsets = [0, 0], sizes = [32, 256], strides = [1, 1]} : vector<32x768xf32> to vector<32x256xf32>
    %150 = arith.addf %143, %149 : vector<32x256xf32>
    %cst_82 = arith.constant 0.000000e+00 : f32
    %151 = vector.broadcast %cst_82 : f32 to vector<32x256xf32>
    %152 = arith.maximumf %150, %151 : vector<32x256xf32>
    %153 = arith.addf %148, %152 : vector<32x256xf32>
    %154 = vector.extract_strided_slice %147 {offsets = [0, 256], sizes = [32, 256], strides = [1, 1]} : vector<32x768xf32> to vector<32x256xf32>
    %155 = arith.addf %143, %154 : vector<32x256xf32>
    %cst_83 = arith.constant 0.000000e+00 : f32
    %156 = vector.broadcast %cst_83 : f32 to vector<32x256xf32>
    %157 = arith.maximumf %155, %156 : vector<32x256xf32>
    %158 = arith.addf %153, %157 : vector<32x256xf32>
    %159 = vector.extract_strided_slice %147 {offsets = [0, 512], sizes = [32, 256], strides = [1, 1]} : vector<32x768xf32> to vector<32x256xf32>
    %160 = arith.addf %143, %159 : vector<32x256xf32>
    %cst_84 = arith.constant 0.000000e+00 : f32
    %161 = vector.broadcast %cst_84 : f32 to vector<32x256xf32>
    %162 = arith.maximumf %160, %161 : vector<32x256xf32>
    %163 = arith.addf %158, %162 : vector<32x256xf32>
    %c0_85 = arith.constant 0 : index
    %c0_86 = arith.constant 0 : index
    %c0_87 = arith.constant 0 : index
    %164 = vector.load %arg9[%c0_85, %c0_86, %c0_87] : memref<1x32x256xf32, #tpu.memory_space<vmem>>, vector<1x32x256xf32>
    %165 = vector.shape_cast %164 : vector<1x32x256xf32> to vector<32x256xf32>
    %166 = vector.shape_cast %163 : vector<32x256xf32> to vector<1x32x256xf32>
    tpu.vector_store %arg9[%c0_85, %c0_86, %c0_87], %166 {strides = array<i32>} : memref<1x32x256xf32, #tpu.memory_space<vmem>>, vector<1x32x256xf32>,
    return
  }
  func.func @transform_0(%arg0: i32) -> (i32, i32, i32) {
    %c0_i32 = arith.constant 0 : i32
    %c0_i32_0 = arith.constant 0 : i32
    %c0_i32_1 = arith.constant 0 : i32
    return %arg0, %c0_i32, %c0_i32_0 : i32, i32, i32
  }
  func.func @transform_1(%arg0: i32) -> (i32, i32, i32) {
    %c0_i32 = arith.constant 0 : i32
    %c0_i32_0 = arith.constant 0 : i32
    %c0_i32_1 = arith.constant 0 : i32
    return %arg0, %c0_i32, %c0_i32_0 : i32, i32, i32
  }
  func.func @transform_2(%arg0: i32) -> (i32, i32, i32) {
    %c0_i32 = arith.constant 0 : i32
    %c0_i32_0 = arith.constant 0 : i32
    %c0_i32_1 = arith.constant 0 : i32
    return %arg0, %c0_i32, %c0_i32_0 : i32, i32, i32
  }
  func.func @transform_3(%arg0: i32) -> (i32, i32) {
    %c0_i32 = arith.constant 0 : i32
    %c0_i32_0 = arith.constant 0 : i32
    %c0_i32_1 = arith.constant 0 : i32
    return %c0_i32, %c0_i32_0 : i32, i32
  }
  func.func @transform_4(%arg0: i32) -> (i32, i32) {
    %c0_i32 = arith.constant 0 : i32
    %c0_i32_0 = arith.constant 0 : i32
    %c0_i32_1 = arith.constant 0 : i32
    return %c0_i32, %c0_i32_0 : i32, i32
  }
  func.func @transform_5(%arg0: i32) -> (i32, i32, i32) {
    %c0_i32 = arith.constant 0 : i32
    %c0_i32_0 = arith.constant 0 : i32
    %c0_i32_1 = arith.constant 0 : i32
    %c0_i32_2 = arith.constant 0 : i32
    return %c0_i32, %c0_i32_0, %c0_i32_1 : i32, i32, i32
  }
  func.func @transform_6(%arg0: i32) -> (i32, i32, i32) {
    %c0_i32 = arith.constant 0 : i32
    %c0_i32_0 = arith.constant 0 : i32
    %c0_i32_1 = arith.constant 0 : i32
    %c0_i32_2 = arith.constant 0 : i32
    return %c0_i32, %c0_i32_0, %c0_i32_1 : i32, i32, i32
  }
  func.func @transform_7(%arg0: i32) -> (i32, i32) {
    %c0_i32 = arith.constant 0 : i32
    %c0_i32_0 = arith.constant 0 : i32
    %c0_i32_1 = arith.constant 0 : i32
    return %c0_i32, %c0_i32_0 : i32, i32
  }
  func.func @transform_8(%arg0: i32) -> (i32, i32, i32) {
    %c0_i32 = arith.constant 0 : i32
    %c0_i32_0 = arith.constant 0 : i32
    %c0_i32_1 = arith.constant 0 : i32
    return %arg0, %c0_i32, %c0_i32_0 : i32, i32, i32
  }
}

</mosaic_0001>

<llo_original>
// kernel: tpu_custom_call.1
$region0: #{tpu_custom_call.1}
  #allocation0 [shape = 'u32[]', space=smem, size = 0x4, offset = 0x4, fixed_abs, tag = 'smem constant byte address 0x4 - core index']
  #allocation1 [shape = 'u32[144,128]{1,0:T(1,128)}', space=vmem, size = 0x12000, scoped, tag = 'internal scratch']
  %s0 = inlined_call_operand.hbm [shape: f32[2,32,256], index: 0, kind: input, shape index: {}]
  %s1 = inlined_call_operand.hbm [shape: f32[2,32,768], index: 1, kind: input, shape index: {}]
  %s2 = inlined_call_operand.vmem [shape: f32[2,1,256], index: 2, kind: input, shape index: {}]
  %s3 = inlined_call_operand.hbm [shape: f32[8,768], index: 3, kind: input, shape index: {}]
  %s4 = inlined_call_operand.vmem [shape: f32[8,256], index: 4, kind: input, shape index: {}]
  %s5 = inlined_call_operand.hbm [shape: f32[9,32,32], index: 5, kind: input, shape index: {}]
  %s6 = inlined_call_operand.hbm [shape: f32[9,32,32], index: 6, kind: input, shape index: {}]
  %s7 = inlined_call_operand.vmem [shape: f32[32,1], index: 7, kind: input, shape index: {}]
  %s8 = inlined_call_operand.hbm [shape: f32[2,32,256], index: 8, kind: output, shape index: {}]
  %s9 = sld [smem:[#allocation0]]
  $region85: #{tpu_custom_call.1} parent=0
    _
  %s11 = ssub.s32 1, %s9
  %s12 = scalar_select 0, %s11, %s9
  $region1: #{tpu_custom_call.1} parent=0
    #allocation2 [shape = 'u8[65536]{0}', space=vmem, size = 0x10000, scoped, tag = 'input window, operand 0']
    #allocation3 [shape = 's32[2]{0}', space=sflag, size = 0x8, scoped, tag = 'scoped memory for tpu_custom_call.1']
    #allocation4 [shape = 's32[2]{0}', space=sflag, size = 0x8, scoped, tag = 'scoped memory for tpu_custom_call.1']
    #allocation5 [shape = 'u8[196608]{0}', space=vmem, size = 0x30000, scoped, tag = 'input window, operand 1']
    #allocation6 [shape = 's32[2]{0}', space=sflag, size = 0x8, scoped, tag = 'scoped memory for tpu_custom_call.1']
    #allocation7 [shape = 'u8[24576]{0}', space=vmem, size = 0x6000, scoped, tag = 'input window, operand 3, single buffered']
    #allocation8 [shape = 'u8[147456]{0}', space=vmem, size = 0x24000, scoped, tag = 'input window, operand 5, single buffered']
    #allocation9 [shape = 's32[1]{0}', space=sflag, size = 0x4, scoped, tag = 'scoped memory for tpu_custom_call.1']
    #allocation10 [shape = 'u8[147456]{0}', space=vmem, size = 0x24000, scoped, tag = 'input window, operand 6, single buffered']
    #allocation11 [shape = 'u8[65536]{0}', space=vmem, size = 0x10000, scoped, tag = 'output window, operand 0']
    %13 = vsyncpa [#allocation3], 0
    %s14 = scalar_lea.sflag [#allocation3], 1
    %15 = vsyncpa %s14, 0
    %16 = vsyncpa [#allocation6], 0
    %s17 = scalar_lea.sflag [#allocation6], 1
    %18 = vsyncpa %s17, 0
    %19 = vsyncpa [#allocation9], 0
    %20 = vsyncpa [#allocation4], 0
    %s21 = scalar_lea.sflag [#allocation4], 1
    %22 = vsyncpa %s21, 0
    loop: start=0, step=1, limit=4
    $region2: #{tpu_custom_call.1} parent=1 // loop_pre_header
      _
    $region3: #{tpu_custom_call.1} parent=1 // loop_header
      %s24 = sphi 0, %s28
      %p25 = scmp.ge.s32.totalorder %s24, 4
      %s34 = sphi 0, %s36
      %s37 = sphi 0, %s34
      %s38 = sphi 0, %s37
      %s54 = sphi 0, %s38
      %s60 = sphi 0, %s62
      %s63 = sphi 0, %s60
      %s64 = sphi 0, %s63
      %s80 = sphi 0, %s64
      %s86 = sphi 0, %s88
      %s89 = sphi 0, %s86
      %s90 = sphi 0, %s89
      %s106 = sphi 0, %s90
      %s110 = sphi 0, %s110
      %s112 = sphi 0, %s110
      %s113 = sphi 0, %s112
      %s127 = sphi 0, %s113
      %s131 = sphi 0, %s131
      %s133 = sphi 0, %s131
      %s134 = sphi 0, %s133
      %s148 = sphi 0, %s134
      %s152 = sphi 0, %s152
      %s154 = sphi 0, %s152
      %s155 = sphi 0, %s154
      %s169 = sphi 0, %s155
      %s173 = sphi 0, %s173
      %s175 = sphi 0, %s173
      %s176 = sphi 0, %s175
      %s190 = sphi 0, %s176
      %s194 = sphi 0, %s194
      %s196 = sphi 0, %s194
      %s197 = sphi 0, %s196
      %s211 = sphi 0, %s197
      %s217 = sphi 0, %s219
      %s220 = sphi 0, %s217
      %s221 = sphi 0, %s220
      %s237 = sphi 0, %s221
    $region4: #{tpu_custom_call.1} parent=1 // loop_header_branch
      %27 = sbr.rel (%p25) target = $region8
    $region5: #{tpu_custom_call.1} parent=1 // loop_body
      %s29 = ssub.s32 %s24, 1
      %s30 = ssub.s32 %s24, 2
      %s31 = sadd.s32 %s24, 1
      %s32 = ssub.s32 %s24, %s31
      %p33 = scmp.eq.s32.totalorder %s32, 0
      %s35 = sadd.s32 %s34, 1
      %s36 = scalar_select %p33, %s34, %s35
      %p39 = pneg %p33
      %p40 = scmp.eq.s32.totalorder %s24, 1
      %p41 = por %p39, %p40
      %p42 = scmp.ne.s32.totalorder %s34, %s37
      %p43 = scmp.eq.s32.totalorder %s24, 0
      %p44 = por %p42, %p43
      %p45 = scmp.ne.s32.totalorder %s34, %s37
      %p46 = scmp.eq.s32.totalorder %s29, 1
      %p47 = por %p45, %p46
      %p48 = scmp.ne.s32.totalorder %s37, %s38
      %p49 = scmp.eq.s32.totalorder %s29, 0
      %p50 = por %p48, %p49
      %p51 = scmp.ne.s32.totalorder %s37, %s38
      %p52 = scmp.eq.s32.totalorder %s30, 1
      %p53 = por %p51, %p52
      %p55 = scmp.ne.s32.totalorder %s38, %s54
      %p56 = scmp.eq.s32.totalorder %s30, 0
      %p57 = por %p55, %p56
      %s58 = ssub.s32 %s24, %s31
      %p59 = scmp.eq.s32.totalorder %s58, 0
      %s61 = sadd.s32 %s60, 1
      %s62 = scalar_select %p59, %s60, %s61
      %p65 = pneg %p59
      %p66 = scmp.eq.s32.totalorder %s24, 1
      %p67 = por %p65, %p66
      %p68 = scmp.ne.s32.totalorder %s60, %s63
      %p69 = scmp.eq.s32.totalorder %s24, 0
      %p70 = por %p68, %p69
      %p71 = scmp.ne.s32.totalorder %s60, %s63
      %p72 = scmp.eq.s32.totalorder %s29, 1
      %p73 = por %p71, %p72
      %p74 = scmp.ne.s32.totalorder %s63, %s64
      %p75 = scmp.eq.s32.totalorder %s29, 0
      %p76 = por %p74, %p75
      %p77 = scmp.ne.s32.totalorder %s63, %s64
      %p78 = scmp.eq.s32.totalorder %s30, 1
      %p79 = por %p77, %p78
      %p81 = scmp.ne.s32.totalorder %s64, %s80
      %p82 = scmp.eq.s32.totalorder %s30, 0
      %p83 = por %p81, %p82
      %s84 = ssub.s32 %s24, %s31
      %p85 = scmp.eq.s32.totalorder %s84, 0
      %s87 = sadd.s32 %s86, 1
      %s88 = scalar_select %p85, %s86, %s87
      %p91 = pneg %p85
      %p92 = scmp.eq.s32.totalorder %s24, 1
      %p93 = por %p91, %p92
      %p94 = scmp.ne.s32.totalorder %s86, %s89
      %p95 = scmp.eq.s32.totalorder %s24, 0
      %p96 = por %p94, %p95
      %p97 = scmp.ne.s32.totalorder %s86, %s89
      %p98 = scmp.eq.s32.totalorder %s29, 1
      %p99 = por %p97, %p98
      %p100 = scmp.ne.s32.totalorder %s89, %s90
      %p101 = scmp.eq.s32.totalorder %s29, 0
      %p102 = por %p100, %p101
      %p103 = scmp.ne.s32.totalorder %s89, %s90
      %p104 = scmp.eq.s32.totalorder %s30, 1
      %p105 = por %p103, %p104
      %p107 = scmp.ne.s32.totalorder %s90, %s106
      %p108 = scmp.eq.s32.totalorder %s30, 0
      %p109 = por %p107, %p108
      %s111 = sadd.s32 %s110, 1
      %p114 = scmp.eq.s32.totalorder %s24, 1
      %p115 = scmp.ne.s32.totalorder %s110, %s112
      %p116 = scmp.eq.s32.totalorder %s24, 0
      %p117 = por %p115, %p116
      %p118 = scmp.ne.s32.totalorder %s110, %s112
      %p119 = scmp.eq.s32.totalorder %s29, 1
      %p120 = por %p118, %p119
      %p121 = scmp.ne.s32.totalorder %s112, %s113
      %p122 = scmp.eq.s32.totalorder %s29, 0
      %p123 = por %p121, %p122
      %p124 = scmp.ne.s32.totalorder %s112, %s113
      %p125 = scmp.eq.s32.totalorder %s30, 1
      %p126 = por %p124, %p125
      %p128 = scmp.ne.s32.totalorder %s113, %s127
      %p129 = scmp.eq.s32.totalorder %s30, 0
      %p130 = por %p128, %p129
      %s132 = sadd.s32 %s131, 1
      %p135 = scmp.eq.s32.totalorder %s24, 1
      %p136 = scmp.ne.s32.totalorder %s131, %s133
      %p137 = scmp.eq.s32.totalorder %s24, 0
      %p138 = por %p136, %p137
      %p139 = scmp.ne.s32.totalorder %s131, %s133
      %p140 = scmp.eq.s32.totalorder %s29, 1
      %p141 = por %p139, %p140
      %p142 = scmp.ne.s32.totalorder %s133, %s134
      %p143 = scmp.eq.s32.totalorder %s29, 0
      %p144 = por %p142, %p143
      %p145 = scmp.ne.s32.totalorder %s133, %s134
      %p146 = scmp.eq.s32.totalorder %s30, 1
      %p147 = por %p145, %p146
      %p149 = scmp.ne.s32.totalorder %s134, %s148
      %p150 = scmp.eq.s32.totalorder %s30, 0
      %p151 = por %p149, %p150
      %s153 = sadd.s32 %s152, 1
      %p156 = scmp.eq.s32.totalorder %s24, 1
      %p157 = scmp.ne.s32.totalorder %s152, %s154
      %p158 = scmp.eq.s32.totalorder %s24, 0
      %p159 = por %p157, %p158
      %p160 = scmp.ne.s32.totalorder %s152, %s154
      %p161 = scmp.eq.s32.totalorder %s29, 1
      %p162 = por %p160, %p161
      %p163 = scmp.ne.s32.totalorder %s154, %s155
      %p164 = scmp.eq.s32.totalorder %s29, 0
      %p165 = por %p163, %p164
      %p166 = scmp.ne.s32.totalorder %s154, %s155
      %p167 = scmp.eq.s32.totalorder %s30, 1
      %p168 = por %p166, %p167
      %p170 = scmp.ne.s32.totalorder %s155, %s169
      %p171 = scmp.eq.s32.totalorder %s30, 0
      %p172 = por %p170, %p171
      %s174 = sadd.s32 %s173, 1
      %p177 = scmp.eq.s32.totalorder %s24, 1
      %p178 = scmp.ne.s32.totalorder %s173, %s175
      %p179 = scmp.eq.s32.totalorder %s24, 0
      %p180 = por %p178, %p179
      %p181 = scmp.ne.s32.totalorder %s173, %s175
      %p182 = scmp.eq.s32.totalorder %s29, 1
      %p183 = por %p181, %p182
      %p184 = scmp.ne.s32.totalorder %s175, %s176
      %p185 = scmp.eq.s32.totalorder %s29, 0
      %p186 = por %p184, %p185
      %p187 = scmp.ne.s32.totalorder %s175, %s176
      %p188 = scmp.eq.s32.totalorder %s30, 1
      %p189 = por %p187, %p188
      %p191 = scmp.ne.s32.totalorder %s176, %s190
      %p192 = scmp.eq.s32.totalorder %s30, 0
      %p193 = por %p191, %p192
      %s195 = sadd.s32 %s194, 1
      %p198 = scmp.eq.s32.totalorder %s24, 1
      %p199 = scmp.ne.s32.totalorder %s194, %s196
      %p200 = scmp.eq.s32.totalorder %s24, 0
      %p201 = por %p199, %p200
      %p202 = scmp.ne.s32.totalorder %s194, %s196
      %p203 = scmp.eq.s32.totalorder %s29, 1
      %p204 = por %p202, %p203
      %p205 = scmp.ne.s32.totalorder %s196, %s197
      %p206 = scmp.eq.s32.totalorder %s29, 0
      %p207 = por %p205, %p206
      %p208 = scmp.ne.s32.totalorder %s196, %s197
      %p209 = scmp.eq.s32.totalorder %s30, 1
      %p210 = por %p208, %p209
      %p212 = scmp.ne.s32.totalorder %s197, %s211
      %p213 = scmp.eq.s32.totalorder %s30, 0
      %p214 = por %p212, %p213
      %s215 = ssub.s32 %s24, %s31
      %p216 = scmp.eq.s32.totalorder %s215, 0
      %s218 = sadd.s32 %s217, 1
      %s219 = scalar_select %p216, %s217, %s218
      %p222 = pneg %p216
      %p223 = scmp.eq.s32.totalorder %s24, 1
      %p224 = por %p222, %p223
      %p225 = scmp.ne.s32.totalorder %s217, %s220
      %p226 = scmp.eq.s32.totalorder %s24, 0
      %p227 = por %p225, %p226
      %p228 = scmp.ne.s32.totalorder %s217, %s220
      %p229 = scmp.eq.s32.totalorder %s29, 1
      %p230 = por %p228, %p229
      %p231 = scmp.ne.s32.totalorder %s220, %s221
      %p232 = scmp.eq.s32.totalorder %s29, 0
      %p233 = por %p231, %p232
      %p234 = scmp.ne.s32.totalorder %s220, %s221
      %p235 = scmp.eq.s32.totalorder %s30, 1
      %p236 = por %p234, %p235
      %p238 = scmp.ne.s32.totalorder %s221, %s237
      %p239 = scmp.eq.s32.totalorder %s30, 0
      %p240 = por %p238, %p239
      %p241 = scmp.le.s32.totalorder 1, %s24
      %p242 = scmp.lt.s32.totalorder %s24, 3
      %p243 = pnand %p241, %p242
      %p244 = pneg %p243
      // Predicated region
      $region9: #{tpu_custom_call.1} parent=5 // pred_check
        _
      $region10: #{tpu_custom_call.1} parent=5 // pred_check_branch
        %246 = sbr.rel (%p243) target = $region12
      $region11: #{tpu_custom_call.1} parent=5 // pred_region
        %s247 = ssub.s32 %s24, 1
        // Predicated region
        $region13: #{tpu_custom_call.1} parent=11 // pred_check
          %p248 = pneg %p123
        $region14: #{tpu_custom_call.1} parent=11 // pred_check_branch
          %250 = sbr.rel (%p248) target = $region16
        $region15: #{tpu_custom_call.1} parent=11 // pred_region
          %s252 = ssub.s32 768, 768
          %253 = vsyncadd [#allocation6], %s252
          %s255 = sshll.u32 [#allocation7], 4
          %s256 = int_to_ptr.vmem [resolvable:$true] %s255
          %258 = dma.hbm_to_vmem [thread:$0]  %s3, 768, %s256, [#allocation6]
        $region16: #{tpu_custom_call.1} parent=11 // pred_fallthru
          _
        // Predicated region
        $region17: #{tpu_custom_call.1} parent=11 // pred_check
          %p259 = pneg %p144
        $region18: #{tpu_custom_call.1} parent=11 // pred_check_branch
          %261 = sbr.rel (%p259) target = $region20
        $region19: #{tpu_custom_call.1} parent=11 // pred_region
          _
        $region20: #{tpu_custom_call.1} parent=11 // pred_fallthru
          _
        // Predicated region
        $region21: #{tpu_custom_call.1} parent=11 // pred_check
          %p262 = pneg %p165
        $region22: #{tpu_custom_call.1} parent=11 // pred_check_branch
          %264 = sbr.rel (%p262) target = $region24
        $region23: #{tpu_custom_call.1} parent=11 // pred_region
          %s266 = ssub.s32 4608, 4608
          %267 = vsyncadd [#allocation9], %s266
          %s268 = sshll.u32 [#allocation8], 4
          %s269 = int_to_ptr.vmem [resolvable:$true] %s268
          %274 = dma.hbm_to_vmem [thread:$0]  %s5, 4608, %s269, [#allocation9], 128, 128, 8
        $region24: #{tpu_custom_call.1} parent=11 // pred_fallthru
          _
        // Predicated region
        $region25: #{tpu_custom_call.1} parent=11 // pred_check
          %p275 = pneg %p186
        $region26: #{tpu_custom_call.1} parent=11 // pred_check_branch
          %277 = sbr.rel (%p275) target = $region28
        $region27: #{tpu_custom_call.1} parent=11 // pred_region
          %s279 = ssub.s32 4608, 4608
          %280 = vsyncadd [#allocation9], %s279
          %s281 = sshll.u32 [#allocation10], 4
          %s282 = int_to_ptr.vmem [resolvable:$true] %s281
          %287 = dma.hbm_to_vmem [thread:$0]  %s6, 4608, %s282, [#allocation9], 128, 128, 8
        $region28: #{tpu_custom_call.1} parent=11 // pred_fallthru
          _
        // Predicated region
        $region29: #{tpu_custom_call.1} parent=11 // pred_check
          %p288 = pneg %p207
        $region30: #{tpu_custom_call.1} parent=11 // pred_check_branch
          %290 = sbr.rel (%p288) target = $region32
        $region31: #{tpu_custom_call.1} parent=11 // pred_region
          _
        $region32: #{tpu_custom_call.1} parent=11 // pred_fallthru
          _
      $region12: #{tpu_custom_call.1} parent=5 // pred_fallthru
        _
      %p291 = scmp.lt.s32.totalorder %s24, 2
      // Predicated region
      $region33: #{tpu_custom_call.1} parent=5 // pred_check
        %p292 = pneg %p291
      $region34: #{tpu_custom_call.1} parent=5 // pred_check_branch
        %294 = sbr.rel (%p292) target = $region36
      $region35: #{tpu_custom_call.1} parent=5 // pred_region
        // Predicated region
        $region37: #{tpu_custom_call.1} parent=35 // pred_check
          %p295 = pneg %p44
        $region38: #{tpu_custom_call.1} parent=35 // pred_check_branch
          %297 = sbr.rel (%p295) target = $region40
        $region39: #{tpu_custom_call.1} parent=35 // pred_region
          %s298 = sand.u32 %s34, 1
          %s299 = scalar_lea.sflag [#allocation3], %s298
          %s300 = sand.u32 %s34, 1
          %s301 = smul.addr %s300, 64
          %s302 = scalar_lea.vmem [#allocation2], %s301
          %s304 = ssub.s32 1024, 1024
          %305 = vsyncadd %s299, %s304
          %s306 = smul.addr %s24, 8
          %s307 = smul.addr %s306, 128
          %s308 = scalar_lea.hbm %s0, %s307
          %s309 = sshll.u32 %s302, 4
          %s310 = int_to_ptr.vmem [resolvable:$true] %s309
          %315 = dma.hbm_to_vmem [thread:$0]  %s308, 1024, %s310, %s299, 256, 256, 16
        $region40: #{tpu_custom_call.1} parent=35 // pred_fallthru
          _
        // Predicated region
        $region41: #{tpu_custom_call.1} parent=35 // pred_check
          %p316 = pneg %p70
        $region42: #{tpu_custom_call.1} parent=35 // pred_check_branch
          %318 = sbr.rel (%p316) target = $region44
        $region43: #{tpu_custom_call.1} parent=35 // pred_region
          %s319 = sand.u32 %s24, 1
          %s320 = scalar_lea.sflag [#allocation6], %s319
          %s321 = sand.u32 %s60, 1
          %s322 = smul.addr %s321, 192
          %s323 = scalar_lea.vmem [#allocation5], %s322
          %s325 = ssub.s32 3072, 3072
          %326 = vsyncadd %s320, %s325
          %s327 = smul.addr %s24, 24
          %s328 = smul.addr %s327, 128
          %s329 = scalar_lea.hbm %s1, %s328
          %s330 = sshll.u32 %s323, 4
          %s331 = int_to_ptr.vmem [resolvable:$true] %s330
          %336 = dma.hbm_to_vmem [thread:$0]  %s329, 3072, %s331, %s320, 768, 768, 48
        $region44: #{tpu_custom_call.1} parent=35 // pred_fallthru
          _
        // Predicated region
        $region45: #{tpu_custom_call.1} parent=35 // pred_check
          %p337 = pneg %p96
        $region46: #{tpu_custom_call.1} parent=35 // pred_check_branch
          %339 = sbr.rel (%p337) target = $region48
        $region47: #{tpu_custom_call.1} parent=35 // pred_region
          %p340 = scmp.lt.s32.totalorder %s24, 1
          %s341 = scalar_select %p340, %s24, 1
          %s342 = smul.addr %s341, 2
          %s343 = scalar_lea.vmem %s2, %s342
        $region48: #{tpu_custom_call.1} parent=35 // pred_fallthru
          _
      $region36: #{tpu_custom_call.1} parent=5 // pred_fallthru
        _
      %p344 = scmp.le.s32.totalorder 1, %s24
      %p345 = scmp.lt.s32.totalorder %s24, 3
      %p346 = pnand %p344, %p345
      %p347 = pneg %p346
      // Predicated region
      $region49: #{tpu_custom_call.1} parent=5 // pred_check
        _
      $region50: #{tpu_custom_call.1} parent=5 // pred_check_branch
        %349 = sbr.rel (%p346) target = $region52
      $region51: #{tpu_custom_call.1} parent=5 // pred_region
        %s350 = ssub.s32 %s24, 1
        %s351 = sand.u32 %s37, 1
        %s352 = scalar_lea.sflag [#allocation3], %s351
        %s353 = sand.u32 %s37, 1
        %s354 = smul.addr %s353, 64
        %s355 = scalar_lea.vmem [#allocation2], %s354
        // Predicated region
        $region53: #{tpu_custom_call.1} parent=51 // pred_check
          %p356 = pneg %p50
        $region54: #{tpu_custom_call.1} parent=51 // pred_check_branch
          %358 = sbr.rel (%p356) target = $region56
        $region55: #{tpu_custom_call.1} parent=51 // pred_region
          %359 = dma.done %s352, 1024
        $region56: #{tpu_custom_call.1} parent=51 // pred_fallthru
          _
        %s360 = sand.u32 %s29, 1
        %s361 = scalar_lea.sflag [#allocation6], %s360
        %s362 = sand.u32 %s63, 1
        %s363 = smul.addr %s362, 192
        %s364 = scalar_lea.vmem [#allocation5], %s363
        // Predicated region
        $region57: #{tpu_custom_call.1} parent=51 // pred_check
          %p365 = pneg %p76
        $region58: #{tpu_custom_call.1} parent=51 // pred_check_branch
          %367 = sbr.rel (%p365) target = $region60
        $region59: #{tpu_custom_call.1} parent=51 // pred_region
          %368 = dma.done %s361, 3072
        $region60: #{tpu_custom_call.1} parent=51 // pred_fallthru
          _
        // Predicated region
        $region61: #{tpu_custom_call.1} parent=51 // pred_check
          %p369 = pneg %p123
        $region62: #{tpu_custom_call.1} parent=51 // pred_check_branch
          %371 = sbr.rel (%p369) target = $region64
        $region63: #{tpu_custom_call.1} parent=51 // pred_region
          %372 = dma.done [#allocation6], 768
        $region64: #{tpu_custom_call.1} parent=51 // pred_fallthru
          _
        // Predicated region
        $region65: #{tpu_custom_call.1} parent=51 // pred_check
          %p373 = pneg %p165
        $region66: #{tpu_custom_call.1} parent=51 // pred_check_branch
          %375 = sbr.rel (%p373) target = $region68
        $region67: #{tpu_custom_call.1} parent=51 // pred_region
          %376 = dma.done [#allocation9], 4608
        $region68: #{tpu_custom_call.1} parent=51 // pred_fallthru
          _
        // Predicated region
        $region69: #{tpu_custom_call.1} parent=51 // pred_check
          %p377 = pneg %p186
        $region70: #{tpu_custom_call.1} parent=51 // pred_check_branch
          %379 = sbr.rel (%p377) target = $region72
        $region71: #{tpu_custom_call.1} parent=51 // pred_region
          %380 = dma.done [#allocation9], 4608
        $region72: #{tpu_custom_call.1} parent=51 // pred_fallthru
          _
        %s381 = sand.u32 %s37, 1
        %s382 = scalar_lea.sflag [#allocation3], %s381
        %s383 = sand.u32 %s37, 1
        %s384 = smul.addr %s383, 64
        %s385 = scalar_lea.vmem [#allocation2], %s384
        %p386 = pneg %p50
        %p387 = pneg %p47
        %s388 = sand.u32 %s29, 1
        %s389 = scalar_lea.sflag [#allocation6], %s388
        %s390 = sand.u32 %s63, 1
        %s391 = smul.addr %s390, 192
        %s392 = scalar_lea.vmem [#allocation5], %s391
        %p393 = pneg %p76
        %p394 = pneg %p73
        %p395 = scmp.lt.s32.totalorder %s29, 1
        %s396 = scalar_select %p395, %s29, 1
        %s397 = smul.addr %s396, 2
        %s398 = scalar_lea.vmem %s2, %s397
        %p399 = pneg %p102
        %p400 = pneg %p99
        %p401 = pneg %p123
        %p402 = pneg %p120
        %p403 = pneg %p144
        %p404 = pneg %p141
        %p405 = pneg %p165
        %p406 = pneg %p162
        %p407 = pneg %p186
        %p408 = pneg %p183
        %p409 = pneg %p207
        %p410 = pneg %p204
        %p411 = pneg %p233
        %p412 = pneg %p230
        %s413 = sand.u32 %s220, 1
        %s414 = scalar_lea.sflag [#allocation4], %s413
        %s415 = sand.u32 %s220, 1
        %s416 = smul.addr %s415, 64
        %s417 = scalar_lea.vmem [#allocation11], %s416
        %p418 = scmp.lt.s32.totalorder %s29, 1
        %s419 = scalar_select %p418, %s29, 1
        %s420 = smul.addr %s419, 2
        %s421 = scalar_lea.vmem %s2, %s420
        %v422 = vld [vmem:[%s355] sm:$0xff]
        %v423 = vld [vmem:[%s355 + $0x8] sm:$0xff]
        %v424 = vld [vmem:[%s355 + $0x10] sm:$0xff]
        %v425 = vld [vmem:[%s355 + $0x18] sm:$0xff]
        %v426 = vld [vmem:[%s355 + $0x20] sm:$0xff]
        %v427 = vld [vmem:[%s355 + $0x28] sm:$0xff]
        %v428 = vld [vmem:[%s355 + $0x30] sm:$0xff]
        %v429 = vld [vmem:[%s355 + $0x38] sm:$0xff]
        %v430 = vld [vmem:[%s421] sm:$0x3]
        %v431 = vld [vmem:[%s364] sm:$0xff]
        %v432 = vld [vmem:[%s364 + $0x8] sm:$0xff]
        %v433 = vld [vmem:[%s364 + $0x10] sm:$0xff]
        %v434 = vld [vmem:[%s364 + $0x18] sm:$0xff]
        %v435 = vld [vmem:[%s364 + $0x20] sm:$0xff]
        %v436 = vld [vmem:[%s364 + $0x28] sm:$0xff]
        %v437 = vld [vmem:[%s364 + $0x30] sm:$0xff]
        %v438 = vld [vmem:[%s364 + $0x38] sm:$0xff]
        %v439 = vld [vmem:[%s364 + $0x40] sm:$0xff]
        %v440 = vld [vmem:[%s364 + $0x48] sm:$0xff]
        %v441 = vld [vmem:[%s364 + $0x50] sm:$0xff]
        %v442 = vld [vmem:[%s364 + $0x58] sm:$0xff]
        %v443 = vld [vmem:[%s364 + $0x60] sm:$0xff]
        %v444 = vld [vmem:[%s364 + $0x68] sm:$0xff]
        %v445 = vld [vmem:[%s364 + $0x70] sm:$0xff]
        %v446 = vld [vmem:[%s364 + $0x78] sm:$0xff]
        %v447 = vld [vmem:[%s364 + $0x80] sm:$0xff]
        %v448 = vld [vmem:[%s364 + $0x88] sm:$0xff]
        %v449 = vld [vmem:[%s364 + $0x90] sm:$0xff]
        %v450 = vld [vmem:[%s364 + $0x98] sm:$0xff]
        %v451 = vld [vmem:[%s364 + $0xa0] sm:$0xff]
        %v452 = vld [vmem:[%s364 + $0xa8] sm:$0xff]
        %v453 = vld [vmem:[%s364 + $0xb0] sm:$0xff]
        %v454 = vld [vmem:[%s364 + $0xb8] sm:$0xff]
        %v456 = vlaneseq
        %v457 = vshrl.u32 %v456, 7
        %v458 = vsub.s32 0, %v457
        %v459 = vrot.slane %v430, %v458
        %v460 = vlaneseq
        %v461 = vshrl.u32 %v460, 7
        %v462 = vsub.s32 1, %v461
        %v463 = vrot.slane %v430, %v462
        %v466 = vlaneseq
        %v467 = vshrl.u32 %v466, 7
        %v468 = vsub.s32 0, %v467
        %v469 = vrot.slane %v459, %v468
        %v470 = vlaneseq
        %v471 = vshrl.u32 %v470, 7
        %v472 = vsub.s32 0, %v471
        %v473 = vrot.slane %v463, %v472
        %v474 = vmul.f32 %v431, %v469
        %v475 = vmul.f32 %v432, %v473
        %v476 = vmul.f32 %v433, %v469
        %v477 = vmul.f32 %v434, %v473
        %v478 = vmul.f32 %v435, %v469
        %v479 = vmul.f32 %v436, %v473
        %v480 = vmul.f32 %v437, %v469
        %v481 = vmul.f32 %v438, %v473
        %v482 = vmul.f32 %v439, %v469
        %v483 = vmul.f32 %v440, %v473
        %v484 = vmul.f32 %v441, %v469
        %v485 = vmul.f32 %v442, %v473
        %v486 = vmul.f32 %v443, %v469
        %v487 = vmul.f32 %v444, %v473
        %v488 = vmul.f32 %v445, %v469
        %v489 = vmul.f32 %v446, %v473
        %v490 = vmul.f32 %v447, %v469
        %v491 = vmul.f32 %v448, %v473
        %v492 = vmul.f32 %v449, %v469
        %v493 = vmul.f32 %v450, %v473
        %v494 = vmul.f32 %v451, %v469
        %v495 = vmul.f32 %v452, %v473
        %v496 = vmul.f32 %v453, %v469
        %v497 = vmul.f32 %v454, %v473
        %v498 = vld [vmem:[#allocation7] sm:$0xff]
        %v499 = vld [vmem:[#allocation7 + $0x8] sm:$0xff]
        %v500 = vld [vmem:[#allocation7 + $0x10] sm:$0xff]
        %v501 = vld [vmem:[#allocation7 + $0x18] sm:$0xff]
        %v502 = vld [vmem:[#allocation7 + $0x20] sm:$0xff]
        %v503 = vld [vmem:[#allocation7 + $0x28] sm:$0xff]
        %v504 = vld [vmem:[%s4] sm:$0xff]
        %v505 = vld [vmem:[%s4 + $0x8] sm:$0xff]
        %v506 = vld [vmem:[%s7] sm:$0xff]
        %v507 = vld [vmem:[%s7 + $0x8] sm:$0xff]
        %v508 = vld [vmem:[%s7 + $0x10] sm:$0xff]
        %v509 = vld [vmem:[%s7 + $0x18] sm:$0xff]
        %s510 = scalar_lea.vmem [#allocation8], 128
        %v511 = vld [vmem:[%s510] sm:$0xff]
        %v512 = vld [vmem:[%s510 + $0x8] sm:$0xff]
        %v513 = vld [vmem:[%s510 + $0x10] sm:$0xff]
        %v514 = vld [vmem:[%s510 + $0x18] sm:$0xff]
        %vm515 = vcmask 261120
        %v517 = vsel %vm515, %v511, 0
        %v520 = vsel %vm515, %v512, 0
        %v523 = vsel %vm515, %v513, 0
        %v526 = vsel %vm515, %v514, 0
        %528 = vmatprep.subr.mxu0 0.0
        %529 = vmatpush1.msra.mxu0 0.0
        %530 = vmatprep.subr.mxu0 0.0
        %531 = vmatpush1.msra.mxu0 0.0
        %532 = vmatprep.subr.mxu0 0.0
        %533 = vmatpush1.msra.mxu0 0.0
        %534 = vmatprep.subr.mxu0 0.0
        %535 = vmatpush1.msra.mxu0 0.0
        %536 = vmatprep.subr.mxu0 0.0
        %537 = vmatpush1.msra.mxu0 0.0
        %538 = vmatprep.subr.mxu0 0.0
        %539 = vmatpush1.msra.mxu0 0.0
        %540 = vmatprep.subr.mxu0 0.0
        %541 = vmatpush1.msra.mxu0 0.0
        %542 = vmatprep.subr.mxu0 0.0
        %543 = vmatpush1.msra.mxu0 0.0
        %544 = vmatprep.subr.mxu0 0.0
        %545 = vmatpush1.msra.mxu0 0.0
        %546 = vmatprep.subr.mxu0 0.0
        %547 = vmatpush1.msra.mxu0 0.0
        %548 = vmatprep.subr.mxu0 0.0
        %549 = vmatpush1.msra.mxu0 0.0
        %550 = vmatprep.subr.mxu0 0.0
        %551 = vmatpush1.msra.mxu0 0.0
        %552 = vmatprep.subr.mxu0 %v429
        %553 = vmatpush1.msra.mxu0 %v428
        %554 = vmatprep.subr.mxu0 %v427
        %555 = vmatpush1.msra.mxu0 %v426
        %556 = vmatprep.subr.mxu0 %v425
        %557 = vmatpush1.msra.mxu0 %v424
        %558 = vmatprep.subr.mxu0 %v423
        %559 = vmatpush1.msra.mxu0 %v422
        %560 = vmatprep.subr.mxu0 0.0
        %561 = vmatpush2.msra.mxu0 0.0
        %562 = vmatprep.subr.mxu0 0.0
        %563 = vmatpush2.msra.mxu0 0.0
        %564 = vmatprep.subr.mxu0 0.0
        %565 = vmatpush2.msra.mxu0 0.0
        %566 = vmatprep.subr.mxu0 0.0
        %567 = vmatpush2.msra.mxu0 0.0
        %568 = vmatprep.subr.mxu0 0.0
        %569 = vmatpush2.msra.mxu0 0.0
        %570 = vmatprep.subr.mxu0 0.0
        %571 = vmatpush2.msra.mxu0 0.0
        %572 = vmatprep.subr.mxu0 0.0
        %573 = vmatpush2.msra.mxu0 0.0
        %574 = vmatprep.subr.mxu0 0.0
        %575 = vmatpush2.msra.mxu0 0.0
        %576 = vmatprep.subr.mxu0 0.0
        %577 = vmatpush2.msra.mxu0 0.0
        %578 = vmatprep.subr.mxu0 0.0
        %579 = vmatpush2.msra.mxu0 0.0
        %580 = vmatprep.subr.mxu0 0.0
        %581 = vmatpush2.msra.mxu0 0.0
        %582 = vmatprep.subr.mxu0 0.0
        %583 = vmatpush2.msra.mxu0 0.0
        %584 = vmatprep.subr.mxu0 0.0
        %585 = vmatpush2.msra.mxu0 0.0
        %586 = vmatprep.subr.mxu0 0.0
        %587 = vmatpush2.msra.mxu0 0.0
        %588 = vmatprep.subr.mxu0 0.0
        %589 = vmatpush2.msra.mxu0 0.0
        %590 = vmatprep.subr.mxu0 0.0
        %591 = vmatpush2.msra.mxu0 0.0
        %592 = vmatprep.mubr.f32.mxu0 0.0
        %593 = vmatmul.mubr.f32.gmra.mxu0 %v517
        %v594 = vpop.f32.mrf.mxu0
        %v595 = vadd.f32 0.0, %v594
        %v596 = vpop.f32.mrf.mxu0
        %v597 = vadd.f32 0.0, %v596
        %598 = vmatprep.mubr.f32.mxu0 0.0
        %599 = vmatmul.mubr.f32.gmra.mxu0 %v520
        %v600 = vpop.f32.mrf.mxu0
        %v601 = vadd.f32 0.0, %v600
        %v602 = vpop.f32.mrf.mxu0
        %v603 = vadd.f32 0.0, %v602
        %604 = vmatprep.mubr.f32.mxu0 0.0
        %605 = vmatmul.mubr.f32.gmra.mxu0 %v523
        %v606 = vpop.f32.mrf.mxu0
        %v607 = vadd.f32 0.0, %v606
        %v608 = vpop.f32.mrf.mxu0
        %v609 = vadd.f32 0.0, %v608
        %610 = vmatprep.mubr.f32.mxu0 0.0
        %611 = vmatmul.mubr.f32.gmra.mxu0 %v526
        %v612 = vpop.f32.mrf.mxu0
        %v613 = vadd.f32 0.0, %v612
        %v614 = vpop.f32.mrf.mxu0
        %v615 = vadd.f32 0.0, %v614
        %616 = vdwg.mxu0
        %618 = vset.pattern.permute.xlu0 0
        %619 = vperm.xlu0 %618, %v506
        %v620 = vpop.permute.xlu0 %619
        %623 = vset.pattern.permute.xlu0 0
        %624 = vperm.xlu0 %623, %v507
        %v625 = vpop.permute.xlu0 %624
        %628 = vset.pattern.permute.xlu0 0
        %629 = vperm.xlu0 %628, %v508
        %v630 = vpop.permute.xlu0 %629
        %633 = vset.pattern.permute.xlu0 0
        %634 = vperm.xlu0 %633, %v509
        %v635 = vpop.permute.xlu0 %634
        %v637 = vadd.f32 %v620, %v595
        %v638 = vadd.f32 %v620, %v597
        %v639 = vadd.f32 %v625, %v601
        %v640 = vadd.f32 %v625, %v603
        %v641 = vadd.f32 %v630, %v607
        %v642 = vadd.f32 %v630, %v609
        %v643 = vadd.f32 %v635, %v613
        %v644 = vadd.f32 %v635, %v615
        %s645 = scalar_lea.vmem [#allocation10], 128
        %v646 = vld [vmem:[%s645] sm:$0xff]
        %v647 = vld [vmem:[%s645 + $0x8] sm:$0xff]
        %v648 = vld [vmem:[%s645 + $0x10] sm:$0xff]
        %v649 = vld [vmem:[%s645 + $0x18] sm:$0xff]
        %650 = vrot.lane.b32.xlu0 %v422, 17
        %v651 = vpop.permute.xlu0 %650
        %652 = vrot.lane.b32.xlu0 %v424, 17
        %v653 = vpop.permute.xlu0 %652
        %654 = vrot.lane.b32.xlu0 %v426, 17
        %v655 = vpop.permute.xlu0 %654
        %656 = vrot.lane.b32.xlu0 %v428, 17
        %v657 = vpop.permute.xlu0 %656
        %658 = vrot.lane.b32.xlu0 %v423, 17
        %v659 = vpop.permute.xlu0 %658
        %660 = vrot.lane.b32.xlu0 %v425, 17
        %v661 = vpop.permute.xlu0 %660
        %662 = vrot.lane.b32.xlu0 %v427, 17
        %v663 = vpop.permute.xlu0 %662
        %664 = vrot.lane.b32.xlu0 %v429, 17
        %v665 = vpop.permute.xlu0 %664
        %v666 = vlaneseq
        %v667 = vand.u32 %v666, 127
        %vm668 = vcmp.lt.s32.totalorder %v667, 17
        %v669 = vsel %vm668, %v651, %v659
        %v670 = vsel %vm668, %v653, %v661
        %v671 = vsel %vm668, %v655, %v663
        %v672 = vsel %vm668, %v657, %v665
        %v673 = vsel %vm668, %v659, %v651
        %v674 = vsel %vm668, %v661, %v653
        %v675 = vsel %vm668, %v663, %v655
        %v676 = vsel %vm668, %v665, %v657
        %v677 = vlaneseq
        %v678 = vshrl.u32 %v677, 7
        %v679 = vsub.s32 0, %v678
        %v680 = vrot.slane %v504, %v679
        %v681 = vlaneseq
        %v682 = vshrl.u32 %v681, 7
        %v683 = vsub.s32 0, %v682
        %v684 = vrot.slane %v505, %v683
        %v685 = vmul.f32 %v673, %v680
        %v686 = vmul.f32 %v669, %v684
        %v687 = vmul.f32 %v674, %v680
        %v688 = vmul.f32 %v670, %v684
        %v689 = vmul.f32 %v675, %v680
        %v690 = vmul.f32 %v671, %v684
        %v691 = vmul.f32 %v676, %v680
        %v692 = vmul.f32 %v672, %v684
        %693 = vrot.lane.b32.xlu0 %v474, 17
        %v694 = vpop.permute.xlu0 %693
        %695 = vrot.lane.b32.xlu0 %v480, 17
        %v696 = vpop.permute.xlu0 %695
        %697 = vrot.lane.b32.xlu0 %v486, 17
        %v698 = vpop.permute.xlu0 %697
        %699 = vrot.lane.b32.xlu0 %v492, 17
        %v700 = vpop.permute.xlu0 %699
        %701 = vrot.lane.b32.xlu0 %v475, 17
        %v702 = vpop.permute.xlu0 %701
        %703 = vrot.lane.b32.xlu0 %v481, 17
        %v704 = vpop.permute.xlu0 %703
        %705 = vrot.lane.b32.xlu0 %v487, 17
        %v706 = vpop.permute.xlu0 %705
        %707 = vrot.lane.b32.xlu0 %v493, 17
        %v708 = vpop.permute.xlu0 %707
        %709 = vrot.lane.b32.xlu0 %v476, 17
        %v710 = vpop.permute.xlu0 %709
        %711 = vrot.lane.b32.xlu0 %v482, 17
        %v712 = vpop.permute.xlu0 %711
        %713 = vrot.lane.b32.xlu0 %v488, 17
        %v714 = vpop.permute.xlu0 %713
        %715 = vrot.lane.b32.xlu0 %v494, 17
        %v716 = vpop.permute.xlu0 %715
        %717 = vrot.lane.b32.xlu0 %v477, 17
        %v718 = vpop.permute.xlu0 %717
        %719 = vrot.lane.b32.xlu0 %v483, 17
        %v720 = vpop.permute.xlu0 %719
        %721 = vrot.lane.b32.xlu0 %v489, 17
        %v722 = vpop.permute.xlu0 %721
        %723 = vrot.lane.b32.xlu0 %v495, 17
        %v724 = vpop.permute.xlu0 %723
        %725 = vrot.lane.b32.xlu0 %v478, 17
        %v726 = vpop.permute.xlu0 %725
        %727 = vrot.lane.b32.xlu0 %v484, 17
        %v728 = vpop.permute.xlu0 %727
        %729 = vrot.lane.b32.xlu0 %v490, 17
        %v730 = vpop.permute.xlu0 %729
        %731 = vrot.lane.b32.xlu0 %v496, 17
        %v732 = vpop.permute.xlu0 %731
        %733 = vrot.lane.b32.xlu0 %v479, 17
        %v734 = vpop.permute.xlu0 %733
        %735 = vrot.lane.b32.xlu0 %v485, 17
        %v736 = vpop.permute.xlu0 %735
        %737 = vrot.lane.b32.xlu0 %v491, 17
        %v738 = vpop.permute.xlu0 %737
        %739 = vrot.lane.b32.xlu0 %v497, 17
        %v740 = vpop.permute.xlu0 %739
        %v741 = vsel %vm668, %v726, %v734
        %v742 = vsel %vm668, %v728, %v736
        %v743 = vsel %vm668, %v730, %v738
        %v744 = vsel %vm668, %v732, %v740
        %v745 = vsel %vm668, %v718, %v726
        %v746 = vsel %vm668, %v720, %v728
        %v747 = vsel %vm668, %v722, %v730
        %v748 = vsel %vm668, %v724, %v732
        %v749 = vsel %vm668, %v710, %v718
        %v750 = vsel %vm668, %v712, %v720
        %v751 = vsel %vm668, %v714, %v722
        %v752 = vsel %vm668, %v716, %v724
        %v753 = vsel %vm668, %v702, %v710
        %v754 = vsel %vm668, %v704, %v712
        %v755 = vsel %vm668, %v706, %v714
        %v756 = vsel %vm668, %v708, %v716
        %v757 = vsel %vm668, %v694, %v702
        %v758 = vsel %vm668, %v696, %v704
        %v759 = vsel %vm668, %v698, %v706
        %v760 = vsel %vm668, %v700, %v708
        %v761 = vsel %vm668, %v734, %v694
        %v762 = vsel %vm668, %v736, %v696
        %v763 = vsel %vm668, %v738, %v698
        %v764 = vsel %vm668, %v740, %v700
        %v765 = vlaneseq
        %v766 = vshrl.u32 %v765, 7
        %v767 = vsub.s32 0, %v766
        %v768 = vrot.slane %v498, %v767
        %v769 = vlaneseq
        %v770 = vshrl.u32 %v769, 7
        %v771 = vsub.s32 0, %v770
        %v772 = vrot.slane %v499, %v771
        %v773 = vlaneseq
        %v774 = vshrl.u32 %v773, 7
        %v775 = vsub.s32 0, %v774
        %v776 = vrot.slane %v500, %v775
        %v777 = vlaneseq
        %v778 = vshrl.u32 %v777, 7
        %v779 = vsub.s32 0, %v778
        %v780 = vrot.slane %v501, %v779
        %v781 = vlaneseq
        %v782 = vshrl.u32 %v781, 7
        %v783 = vsub.s32 0, %v782
        %v784 = vrot.slane %v502, %v783
        %v785 = vlaneseq
        %v786 = vshrl.u32 %v785, 7
        %v787 = vsub.s32 0, %v786
        %v788 = vrot.slane %v503, %v787
        %v789 = vmul.f32 %v761, %v768
        %v790 = vmul.f32 %v757, %v772
        %v791 = vmul.f32 %v753, %v776
        %v792 = vmul.f32 %v749, %v780
        %v793 = vmul.f32 %v745, %v784
        %v794 = vmul.f32 %v741, %v788
        %v795 = vmul.f32 %v762, %v768
        %v796 = vmul.f32 %v758, %v772
        %v797 = vmul.f32 %v754, %v776
        %v798 = vmul.f32 %v750, %v780
        %v799 = vmul.f32 %v746, %v784
        %v800 = vmul.f32 %v742, %v788
        %v801 = vmul.f32 %v763, %v768
        %v802 = vmul.f32 %v759, %v772
        %v803 = vmul.f32 %v755, %v776
        %v804 = vmul.f32 %v751, %v780
        %v805 = vmul.f32 %v747, %v784
        %v806 = vmul.f32 %v743, %v788
        %v807 = vmul.f32 %v764, %v768
        %v808 = vmul.f32 %v760, %v772
        %v809 = vmul.f32 %v756, %v776
        %v810 = vmul.f32 %v752, %v780
        %v811 = vmul.f32 %v748, %v784
        %v812 = vmul.f32 %v744, %v788
        %v813 = vld [vmem:[#allocation8] sm:$0xff]
        %v814 = vld [vmem:[#allocation8 + $0x8] sm:$0xff]
        %v815 = vld [vmem:[#allocation8 + $0x10] sm:$0xff]
        %v816 = vld [vmem:[#allocation8 + $0x18] sm:$0xff]
        %v818 = vsel %vm515, %v813, 0
        %v821 = vsel %vm515, %v814, 0
        %v824 = vsel %vm515, %v815, 0
        %v827 = vsel %vm515, %v816, 0
        %829 = vmatprep.subr.mxu0 0.0
        %830 = vmatpush1.msra.mxu0 0.0
        %831 = vmatprep.subr.mxu0 0.0
        %832 = vmatpush1.msra.mxu0 0.0
        %833 = vmatprep.subr.mxu0 0.0
        %834 = vmatpush1.msra.mxu0 0.0
        %835 = vmatprep.subr.mxu0 0.0
        %836 = vmatpush1.msra.mxu0 0.0
        %837 = vmatprep.subr.mxu0 0.0
        %838 = vmatpush1.msra.mxu0 0.0
        %839 = vmatprep.subr.mxu0 0.0
        %840 = vmatpush1.msra.mxu0 0.0
        %841 = vmatprep.subr.mxu0 0.0
        %842 = vmatpush1.msra.mxu0 0.0
        %843 = vmatprep.subr.mxu0 0.0
        %844 = vmatpush1.msra.mxu0 0.0
        %845 = vmatprep.subr.mxu0 0.0
        %846 = vmatpush1.msra.mxu0 0.0
        %847 = vmatprep.subr.mxu0 0.0
        %848 = vmatpush1.msra.mxu0 0.0
        %849 = vmatprep.subr.mxu0 0.0
        %850 = vmatpush1.msra.mxu0 0.0
        %851 = vmatprep.subr.mxu0 0.0
        %852 = vmatpush1.msra.mxu0 0.0
        %853 = vmatprep.subr.mxu0 %v692
        %854 = vmatpush1.msra.mxu0 %v691
        %855 = vmatprep.subr.mxu0 %v690
        %856 = vmatpush1.msra.mxu0 %v689
        %857 = vmatprep.subr.mxu0 %v688
        %858 = vmatpush1.msra.mxu0 %v687
        %859 = vmatprep.subr.mxu0 %v686
        %860 = vmatpush1.msra.mxu0 %v685
        %861 = vmatprep.subr.mxu0 0.0
        %862 = vmatpush2.msra.mxu0 0.0
        %863 = vmatprep.subr.mxu0 0.0
        %864 = vmatpush2.msra.mxu0 0.0
        %865 = vmatprep.subr.mxu0 0.0
        %866 = vmatpush2.msra.mxu0 0.0
        %867 = vmatprep.subr.mxu0 0.0
        %868 = vmatpush2.msra.mxu0 0.0
        %869 = vmatprep.subr.mxu0 0.0
        %870 = vmatpush2.msra.mxu0 0.0
        %871 = vmatprep.subr.mxu0 0.0
        %872 = vmatpush2.msra.mxu0 0.0
        %873 = vmatprep.subr.mxu0 0.0
        %874 = vmatpush2.msra.mxu0 0.0
        %875 = vmatprep.subr.mxu0 0.0
        %876 = vmatpush2.msra.mxu0 0.0
        %877 = vmatprep.subr.mxu0 0.0
        %878 = vmatpush2.msra.mxu0 0.0
        %879 = vmatprep.subr.mxu0 0.0
        %880 = vmatpush2.msra.mxu0 0.0
        %881 = vmatprep.subr.mxu0 0.0
        %882 = vmatpush2.msra.mxu0 0.0
        %883 = vmatprep.subr.mxu0 0.0
        %884 = vmatpush2.msra.mxu0 0.0
        %885 = vmatprep.subr.mxu0 0.0
        %886 = vmatpush2.msra.mxu0 0.0
        %887 = vmatprep.subr.mxu0 0.0
        %888 = vmatpush2.msra.mxu0 0.0
        %889 = vmatprep.subr.mxu0 0.0
        %890 = vmatpush2.msra.mxu0 0.0
        %891 = vmatprep.subr.mxu0 0.0
        %892 = vmatpush2.msra.mxu0 0.0
        %893 = vmatprep.mubr.f32.mxu0 0.0
        %894 = vmatmul.mubr.f32.gmra.mxu0 %v818
        %v895 = vpop.f32.mrf.mxu0
        %v896 = vadd.f32 0.0, %v895
        %v897 = vpop.f32.mrf.mxu0
        %v898 = vadd.f32 0.0, %v897
        %899 = vmatprep.mubr.f32.mxu0 0.0
        %900 = vmatmul.mubr.f32.gmra.mxu0 %v821
        %v901 = vpop.f32.mrf.mxu0
        %v902 = vadd.f32 0.0, %v901
        %v903 = vpop.f32.mrf.mxu0
        %v904 = vadd.f32 0.0, %v903
        %905 = vmatprep.mubr.f32.mxu0 0.0
        %906 = vmatmul.mubr.f32.gmra.mxu0 %v824
        %v907 = vpop.f32.mrf.mxu0
        %v908 = vadd.f32 0.0, %v907
        %v909 = vpop.f32.mrf.mxu0
        %v910 = vadd.f32 0.0, %v909
        %911 = vmatprep.mubr.f32.mxu0 0.0
        %912 = vmatmul.mubr.f32.gmra.mxu0 %v827
        %v913 = vpop.f32.mrf.mxu0
        %v914 = vadd.f32 0.0, %v913
        %v915 = vpop.f32.mrf.mxu0
        %v916 = vadd.f32 0.0, %v915
        %917 = vdwg.mxu0
        %v918 = vadd.f32 %v637, %v896
        %v919 = vadd.f32 %v638, %v898
        %v920 = vadd.f32 %v639, %v902
        %v921 = vadd.f32 %v640, %v904
        %v922 = vadd.f32 %v641, %v908
        %v923 = vadd.f32 %v642, %v910
        %v924 = vadd.f32 %v643, %v914
        %v925 = vadd.f32 %v644, %v916
        %v926 = vld [vmem:[#allocation10] sm:$0xff]
        %v927 = vld [vmem:[#allocation10 + $0x8] sm:$0xff]
        %v928 = vld [vmem:[#allocation10 + $0x10] sm:$0xff]
        %v929 = vld [vmem:[#allocation10 + $0x18] sm:$0xff]
        %v931 = vsel %vm515, %v926, 0
        %v934 = vsel %vm515, %v927, 0
        %v937 = vsel %vm515, %v928, 0
        %v940 = vsel %vm515, %v929, 0
        %942 = vmatprep.subr.mxu0 0.0
        %943 = vmatpush1.msra.mxu0 0.0
        %944 = vmatprep.subr.mxu0 0.0
        %945 = vmatpush1.msra.mxu0 0.0
        %946 = vmatprep.subr.mxu0 0.0
        %947 = vmatpush1.msra.mxu0 0.0
        %948 = vmatprep.subr.mxu0 0.0
        %949 = vmatpush1.msra.mxu0 0.0
        %950 = vmatprep.subr.mxu0 0.0
        %951 = vmatpush1.msra.mxu0 0.0
        %952 = vmatprep.subr.mxu0 0.0
        %953 = vmatpush1.msra.mxu0 0.0
        %954 = vmatprep.subr.mxu0 0.0
        %955 = vmatpush1.msra.mxu0 0.0
        %956 = vmatprep.subr.mxu0 0.0
        %957 = vmatpush1.msra.mxu0 0.0
        %958 = vmatprep.subr.mxu0 0.0
        %959 = vmatpush1.msra.mxu0 0.0
        %960 = vmatprep.subr.mxu0 0.0
        %961 = vmatpush1.msra.mxu0 0.0
        %962 = vmatprep.subr.mxu0 0.0
        %963 = vmatpush1.msra.mxu0 0.0
        %964 = vmatprep.subr.mxu0 0.0
        %965 = vmatpush1.msra.mxu0 0.0
        %966 = vmatprep.subr.mxu0 %v808
        %967 = vmatpush1.msra.mxu0 %v807
        %968 = vmatprep.subr.mxu0 %v802
        %969 = vmatpush1.msra.mxu0 %v801
        %970 = vmatprep.subr.mxu0 %v796
        %971 = vmatpush1.msra.mxu0 %v795
        %972 = vmatprep.subr.mxu0 %v790
        %973 = vmatpush1.msra.mxu0 %v789
        %974 = vmatprep.subr.mxu0 0.0
        %975 = vmatpush2.msra.mxu0 0.0
        %976 = vmatprep.subr.mxu0 0.0
        %977 = vmatpush2.msra.mxu0 0.0
        %978 = vmatprep.subr.mxu0 0.0
        %979 = vmatpush2.msra.mxu0 0.0
        %980 = vmatprep.subr.mxu0 0.0
        %981 = vmatpush2.msra.mxu0 0.0
        %982 = vmatprep.subr.mxu0 0.0
        %983 = vmatpush2.msra.mxu0 0.0
        %984 = vmatprep.subr.mxu0 0.0
        %985 = vmatpush2.msra.mxu0 0.0
        %986 = vmatprep.subr.mxu0 0.0
        %987 = vmatpush2.msra.mxu0 0.0
        %988 = vmatprep.subr.mxu0 0.0
        %989 = vmatpush2.msra.mxu0 0.0
        %990 = vmatprep.subr.mxu0 0.0
        %991 = vmatpush2.msra.mxu0 0.0
        %992 = vmatprep.subr.mxu0 0.0
        %993 = vmatpush2.msra.mxu0 0.0
        %994 = vmatprep.subr.mxu0 0.0
        %995 = vmatpush2.msra.mxu0 0.0
        %996 = vmatprep.subr.mxu0 0.0
        %997 = vmatpush2.msra.mxu0 0.0
        %998 = vmatprep.subr.mxu0 0.0
        %999 = vmatpush2.msra.mxu0 0.0
        %1000 = vmatprep.subr.mxu0 0.0
        %1001 = vmatpush2.msra.mxu0 0.0
        %1002 = vmatprep.subr.mxu0 0.0
        %1003 = vmatpush2.msra.mxu0 0.0
        %1004 = vmatprep.subr.mxu0 0.0
        %1005 = vmatpush2.msra.mxu0 0.0
        %1006 = vmatprep.mubr.f32.mxu0 0.0
        %1007 = vmatmul.mubr.f32.gmra.mxu0 %v931
        %v1008 = vpop.f32.mrf.mxu0
        %v1009 = vadd.f32 0.0, %v1008
        %v1010 = vpop.f32.mrf.mxu0
        %v1011 = vadd.f32 0.0, %v1010
        %1012 = vmatprep.mubr.f32.mxu0 0.0
        %1013 = vmatmul.mubr.f32.gmra.mxu0 %v934
        %v1014 = vpop.f32.mrf.mxu0
        %v1015 = vadd.f32 0.0, %v1014
        %v1016 = vpop.f32.mrf.mxu0
        %v1017 = vadd.f32 0.0, %v1016
        %1018 = vmatprep.mubr.f32.mxu0 0.0
        %1019 = vmatmul.mubr.f32.gmra.mxu0 %v937
        %v1020 = vpop.f32.mrf.mxu0
        %v1021 = vadd.f32 0.0, %v1020
        %v1022 = vpop.f32.mrf.mxu0
        %v1023 = vadd.f32 0.0, %v1022
        %1024 = vmatprep.mubr.f32.mxu0 0.0
        %1025 = vmatmul.mubr.f32.gmra.mxu0 %v940
        %v1026 = vpop.f32.mrf.mxu0
        %v1027 = vadd.f32 0.0, %v1026
        %v1028 = vpop.f32.mrf.mxu0
        %v1029 = vadd.f32 0.0, %v1028
        %1030 = vdwg.mxu0
        %1031 = vmatprep.subr.mxu0 0.0
        %1032 = vmatpush1.msra.mxu0 0.0
        %1033 = vmatprep.subr.mxu0 0.0
        %1034 = vmatpush1.msra.mxu0 0.0
        %1035 = vmatprep.subr.mxu0 0.0
        %1036 = vmatpush1.msra.mxu0 0.0
        %1037 = vmatprep.subr.mxu0 0.0
        %1038 = vmatpush1.msra.mxu0 0.0
        %1039 = vmatprep.subr.mxu0 0.0
        %1040 = vmatpush1.msra.mxu0 0.0
        %1041 = vmatprep.subr.mxu0 0.0
        %1042 = vmatpush1.msra.mxu0 0.0
        %1043 = vmatprep.subr.mxu0 0.0
        %1044 = vmatpush1.msra.mxu0 0.0
        %1045 = vmatprep.subr.mxu0 0.0
        %1046 = vmatpush1.msra.mxu0 0.0
        %1047 = vmatprep.subr.mxu0 0.0
        %1048 = vmatpush1.msra.mxu0 0.0
        %1049 = vmatprep.subr.mxu0 0.0
        %1050 = vmatpush1.msra.mxu0 0.0
        %1051 = vmatprep.subr.mxu0 0.0
        %1052 = vmatpush1.msra.mxu0 0.0
        %1053 = vmatprep.subr.mxu0 0.0
        %1054 = vmatpush1.msra.mxu0 0.0
        %1055 = vmatprep.subr.mxu0 %v810
        %1056 = vmatpush1.msra.mxu0 %v809
        %1057 = vmatprep.subr.mxu0 %v804
        %1058 = vmatpush1.msra.mxu0 %v803
        %1059 = vmatprep.subr.mxu0 %v798
        %1060 = vmatpush1.msra.mxu0 %v797
        %1061 = vmatprep.subr.mxu0 %v792
        %1062 = vmatpush1.msra.mxu0 %v791
        %1063 = vmatprep.subr.mxu0 0.0
        %1064 = vmatpush2.msra.mxu0 0.0
        %1065 = vmatprep.subr.mxu0 0.0
        %1066 = vmatpush2.msra.mxu0 0.0
        %1067 = vmatprep.subr.mxu0 0.0
        %1068 = vmatpush2.msra.mxu0 0.0
        %1069 = vmatprep.subr.mxu0 0.0
        %1070 = vmatpush2.msra.mxu0 0.0
        %1071 = vmatprep.subr.mxu0 0.0
        %1072 = vmatpush2.msra.mxu0 0.0
        %1073 = vmatprep.subr.mxu0 0.0
        %1074 = vmatpush2.msra.mxu0 0.0
        %1075 = vmatprep.subr.mxu0 0.0
        %1076 = vmatpush2.msra.mxu0 0.0
        %1077 = vmatprep.subr.mxu0 0.0
        %1078 = vmatpush2.msra.mxu0 0.0
        %1079 = vmatprep.subr.mxu0 0.0
        %1080 = vmatpush2.msra.mxu0 0.0
        %1081 = vmatprep.subr.mxu0 0.0
        %1082 = vmatpush2.msra.mxu0 0.0
        %1083 = vmatprep.subr.mxu0 0.0
        %1084 = vmatpush2.msra.mxu0 0.0
        %1085 = vmatprep.subr.mxu0 0.0
        %1086 = vmatpush2.msra.mxu0 0.0
        %1087 = vmatprep.subr.mxu0 0.0
        %1088 = vmatpush2.msra.mxu0 0.0
        %1089 = vmatprep.subr.mxu0 0.0
        %1090 = vmatpush2.msra.mxu0 0.0
        %1091 = vmatprep.subr.mxu0 0.0
        %1092 = vmatpush2.msra.mxu0 0.0
        %1093 = vmatprep.subr.mxu0 0.0
        %1094 = vmatpush2.msra.mxu0 0.0
        %1095 = vmatprep.mubr.f32.mxu0 0.0
        %1096 = vmatmul.mubr.f32.gmra.mxu0 %v931
        %v1097 = vpop.f32.mrf.mxu0
        %v1098 = vadd.f32 0.0, %v1097
        %v1099 = vpop.f32.mrf.mxu0
        %v1100 = vadd.f32 0.0, %v1099
        %1101 = vmatprep.mubr.f32.mxu0 0.0
        %1102 = vmatmul.mubr.f32.gmra.mxu0 %v934
        %v1103 = vpop.f32.mrf.mxu0
        %v1104 = vadd.f32 0.0, %v1103
        %v1105 = vpop.f32.mrf.mxu0
        %v1106 = vadd.f32 0.0, %v1105
        %1107 = vmatprep.mubr.f32.mxu0 0.0
        %1108 = vmatmul.mubr.f32.gmra.mxu0 %v937
        %v1109 = vpop.f32.mrf.mxu0
        %v1110 = vadd.f32 0.0, %v1109
        %v1111 = vpop.f32.mrf.mxu0
        %v1112 = vadd.f32 0.0, %v1111
        %1113 = vmatprep.mubr.f32.mxu0 0.0
        %1114 = vmatmul.mubr.f32.gmra.mxu0 %v940
        %v1115 = vpop.f32.mrf.mxu0
        %v1116 = vadd.f32 0.0, %v1115
        %v1117 = vpop.f32.mrf.mxu0
        %v1118 = vadd.f32 0.0, %v1117
        %1119 = vdwg.mxu0
        %1120 = vmatprep.subr.mxu0 0.0
        %1121 = vmatpush1.msra.mxu0 0.0
        %1122 = vmatprep.subr.mxu0 0.0
        %1123 = vmatpush1.msra.mxu0 0.0
        %1124 = vmatprep.subr.mxu0 0.0
        %1125 = vmatpush1.msra.mxu0 0.0
        %1126 = vmatprep.subr.mxu0 0.0
        %1127 = vmatpush1.msra.mxu0 0.0
        %1128 = vmatprep.subr.mxu0 0.0
        %1129 = vmatpush1.msra.mxu0 0.0
        %1130 = vmatprep.subr.mxu0 0.0
        %1131 = vmatpush1.msra.mxu0 0.0
        %1132 = vmatprep.subr.mxu0 0.0
        %1133 = vmatpush1.msra.mxu0 0.0
        %1134 = vmatprep.subr.mxu0 0.0
        %1135 = vmatpush1.msra.mxu0 0.0
        %1136 = vmatprep.subr.mxu0 0.0
        %1137 = vmatpush1.msra.mxu0 0.0
        %1138 = vmatprep.subr.mxu0 0.0
        %1139 = vmatpush1.msra.mxu0 0.0
        %1140 = vmatprep.subr.mxu0 0.0
        %1141 = vmatpush1.msra.mxu0 0.0
        %1142 = vmatprep.subr.mxu0 0.0
        %1143 = vmatpush1.msra.mxu0 0.0
        %1144 = vmatprep.subr.mxu0 %v812
        %1145 = vmatpush1.msra.mxu0 %v811
        %1146 = vmatprep.subr.mxu0 %v806
        %1147 = vmatpush1.msra.mxu0 %v805
        %1148 = vmatprep.subr.mxu0 %v800
        %1149 = vmatpush1.msra.mxu0 %v799
        %1150 = vmatprep.subr.mxu0 %v794
        %1151 = vmatpush1.msra.mxu0 %v793
        %1152 = vmatprep.subr.mxu0 0.0
        %1153 = vmatpush2.msra.mxu0 0.0
        %1154 = vmatprep.subr.mxu0 0.0
        %1155 = vmatpush2.msra.mxu0 0.0
        %1156 = vmatprep.subr.mxu0 0.0
        %1157 = vmatpush2.msra.mxu0 0.0
        %1158 = vmatprep.subr.mxu0 0.0
        %1159 = vmatpush2.msra.mxu0 0.0
        %1160 = vmatprep.subr.mxu0 0.0
        %1161 = vmatpush2.msra.mxu0 0.0
        %1162 = vmatprep.subr.mxu0 0.0
        %1163 = vmatpush2.msra.mxu0 0.0
        %1164 = vmatprep.subr.mxu0 0.0
        %1165 = vmatpush2.msra.mxu0 0.0
        %1166 = vmatprep.subr.mxu0 0.0
        %1167 = vmatpush2.msra.mxu0 0.0
        %1168 = vmatprep.subr.mxu0 0.0
        %1169 = vmatpush2.msra.mxu0 0.0
        %1170 = vmatprep.subr.mxu0 0.0
        %1171 = vmatpush2.msra.mxu0 0.0
        %1172 = vmatprep.subr.mxu0 0.0
        %1173 = vmatpush2.msra.mxu0 0.0
        %1174 = vmatprep.subr.mxu0 0.0
        %1175 = vmatpush2.msra.mxu0 0.0
        %1176 = vmatprep.subr.mxu0 0.0
        %1177 = vmatpush2.msra.mxu0 0.0
        %1178 = vmatprep.subr.mxu0 0.0
        %1179 = vmatpush2.msra.mxu0 0.0
        %1180 = vmatprep.subr.mxu0 0.0
        %1181 = vmatpush2.msra.mxu0 0.0
        %1182 = vmatprep.subr.mxu0 0.0
        %1183 = vmatpush2.msra.mxu0 0.0
        %1184 = vmatprep.mubr.f32.mxu0 0.0
        %1185 = vmatmul.mubr.f32.gmra.mxu0 %v931
        %v1186 = vpop.f32.mrf.mxu0
        %v1187 = vadd.f32 0.0, %v1186
        %v1188 = vpop.f32.mrf.mxu0
        %v1189 = vadd.f32 0.0, %v1188
        %1190 = vmatprep.mubr.f32.mxu0 0.0
        %1191 = vmatmul.mubr.f32.gmra.mxu0 %v934
        %v1192 = vpop.f32.mrf.mxu0
        %v1193 = vadd.f32 0.0, %v1192
        %v1194 = vpop.f32.mrf.mxu0
        %v1195 = vadd.f32 0.0, %v1194
        %1196 = vmatprep.mubr.f32.mxu0 0.0
        %1197 = vmatmul.mubr.f32.gmra.mxu0 %v937
        %v1198 = vpop.f32.mrf.mxu0
        %v1199 = vadd.f32 0.0, %v1198
        %v1200 = vpop.f32.mrf.mxu0
        %v1201 = vadd.f32 0.0, %v1200
        %1202 = vmatprep.mubr.f32.mxu0 0.0
        %1203 = vmatmul.mubr.f32.gmra.mxu0 %v940
        %v1204 = vpop.f32.mrf.mxu0
        %v1205 = vadd.f32 0.0, %v1204
        %v1206 = vpop.f32.mrf.mxu0
        %v1207 = vadd.f32 0.0, %v1206
        %1208 = vdwg.mxu0
        %v1210 = vsel %vm515, %v646, 0
        %v1213 = vsel %vm515, %v647, 0
        %v1216 = vsel %vm515, %v648, 0
        %v1219 = vsel %vm515, %v649, 0
        %1221 = vmatprep.subr.mxu0 0.0
        %1222 = vmatpush1.msra.mxu0 0.0
        %1223 = vmatprep.subr.mxu0 0.0
        %1224 = vmatpush1.msra.mxu0 0.0
        %1225 = vmatprep.subr.mxu0 0.0
        %1226 = vmatpush1.msra.mxu0 0.0
        %1227 = vmatprep.subr.mxu0 0.0
        %1228 = vmatpush1.msra.mxu0 0.0
        %1229 = vmatprep.subr.mxu0 0.0
        %1230 = vmatpush1.msra.mxu0 0.0
        %1231 = vmatprep.subr.mxu0 0.0
        %1232 = vmatpush1.msra.mxu0 0.0
        %1233 = vmatprep.subr.mxu0 0.0
        %1234 = vmatpush1.msra.mxu0 0.0
        %1235 = vmatprep.subr.mxu0 0.0
        %1236 = vmatpush1.msra.mxu0 0.0
        %1237 = vmatprep.subr.mxu0 0.0
        %1238 = vmatpush1.msra.mxu0 0.0
        %1239 = vmatprep.subr.mxu0 0.0
        %1240 = vmatpush1.msra.mxu0 0.0
        %1241 = vmatprep.subr.mxu0 0.0
        %1242 = vmatpush1.msra.mxu0 0.0
        %1243 = vmatprep.subr.mxu0 0.0
        %1244 = vmatpush1.msra.mxu0 0.0
        %1245 = vmatprep.subr.mxu0 %v493
        %1246 = vmatpush1.msra.mxu0 %v492
        %1247 = vmatprep.subr.mxu0 %v487
        %1248 = vmatpush1.msra.mxu0 %v486
        %1249 = vmatprep.subr.mxu0 %v481
        %1250 = vmatpush1.msra.mxu0 %v480
        %1251 = vmatprep.subr.mxu0 %v475
        %1252 = vmatpush1.msra.mxu0 %v474
        %1253 = vmatprep.subr.mxu0 0.0
        %1254 = vmatpush2.msra.mxu0 0.0
        %1255 = vmatprep.subr.mxu0 0.0
        %1256 = vmatpush2.msra.mxu0 0.0
        %1257 = vmatprep.subr.mxu0 0.0
        %1258 = vmatpush2.msra.mxu0 0.0
        %1259 = vmatprep.subr.mxu0 0.0
        %1260 = vmatpush2.msra.mxu0 0.0
        %1261 = vmatprep.subr.mxu0 0.0
        %1262 = vmatpush2.msra.mxu0 0.0
        %1263 = vmatprep.subr.mxu0 0.0
        %1264 = vmatpush2.msra.mxu0 0.0
        %1265 = vmatprep.subr.mxu0 0.0
        %1266 = vmatpush2.msra.mxu0 0.0
        %1267 = vmatprep.subr.mxu0 0.0
        %1268 = vmatpush2.msra.mxu0 0.0
        %1269 = vmatprep.subr.mxu0 0.0
        %1270 = vmatpush2.msra.mxu0 0.0
        %1271 = vmatprep.subr.mxu0 0.0
        %1272 = vmatpush2.msra.mxu0 0.0
        %1273 = vmatprep.subr.mxu0 0.0
        %1274 = vmatpush2.msra.mxu0 0.0
        %1275 = vmatprep.subr.mxu0 0.0
        %1276 = vmatpush2.msra.mxu0 0.0
        %1277 = vmatprep.subr.mxu0 0.0
        %1278 = vmatpush2.msra.mxu0 0.0
        %1279 = vmatprep.subr.mxu0 0.0
        %1280 = vmatpush2.msra.mxu0 0.0
        %1281 = vmatprep.subr.mxu0 0.0
        %1282 = vmatpush2.msra.mxu0 0.0
        %1283 = vmatprep.subr.mxu0 0.0
        %1284 = vmatpush2.msra.mxu0 0.0
        %1285 = vmatprep.mubr.f32.mxu0 0.0
        %1286 = vmatmul.mubr.f32.gmra.mxu0 %v1210
        %v1287 = vpop.f32.mrf.mxu0
        %v1288 = vadd.f32 %v1009, %v1287
        %v1289 = vpop.f32.mrf.mxu0
        %v1290 = vadd.f32 %v1011, %v1289
        %1291 = vmatprep.mubr.f32.mxu0 0.0
        %1292 = vmatmul.mubr.f32.gmra.mxu0 %v1213
        %v1293 = vpop.f32.mrf.mxu0
        %v1294 = vadd.f32 %v1015, %v1293
        %v1295 = vpop.f32.mrf.mxu0
        %v1296 = vadd.f32 %v1017, %v1295
        %1297 = vmatprep.mubr.f32.mxu0 0.0
        %1298 = vmatmul.mubr.f32.gmra.mxu0 %v1216
        %v1299 = vpop.f32.mrf.mxu0
        %v1300 = vadd.f32 %v1021, %v1299
        %v1301 = vpop.f32.mrf.mxu0
        %v1302 = vadd.f32 %v1023, %v1301
        %1303 = vmatprep.mubr.f32.mxu0 0.0
        %1304 = vmatmul.mubr.f32.gmra.mxu0 %v1219
        %v1305 = vpop.f32.mrf.mxu0
        %v1306 = vadd.f32 %v1027, %v1305
        %v1307 = vpop.f32.mrf.mxu0
        %v1308 = vadd.f32 %v1029, %v1307
        %1309 = vdwg.mxu0
        %1310 = vmatprep.subr.mxu0 0.0
        %1311 = vmatpush1.msra.mxu0 0.0
        %1312 = vmatprep.subr.mxu0 0.0
        %1313 = vmatpush1.msra.mxu0 0.0
        %1314 = vmatprep.subr.mxu0 0.0
        %1315 = vmatpush1.msra.mxu0 0.0
        %1316 = vmatprep.subr.mxu0 0.0
        %1317 = vmatpush1.msra.mxu0 0.0
        %1318 = vmatprep.subr.mxu0 0.0
        %1319 = vmatpush1.msra.mxu0 0.0
        %1320 = vmatprep.subr.mxu0 0.0
        %1321 = vmatpush1.msra.mxu0 0.0
        %1322 = vmatprep.subr.mxu0 0.0
        %1323 = vmatpush1.msra.mxu0 0.0
        %1324 = vmatprep.subr.mxu0 0.0
        %1325 = vmatpush1.msra.mxu0 0.0
        %1326 = vmatprep.subr.mxu0 0.0
        %1327 = vmatpush1.msra.mxu0 0.0
        %1328 = vmatprep.subr.mxu0 0.0
        %1329 = vmatpush1.msra.mxu0 0.0
        %1330 = vmatprep.subr.mxu0 0.0
        %1331 = vmatpush1.msra.mxu0 0.0
        %1332 = vmatprep.subr.mxu0 0.0
        %1333 = vmatpush1.msra.mxu0 0.0
        %1334 = vmatprep.subr.mxu0 %v495
        %1335 = vmatpush1.msra.mxu0 %v494
        %1336 = vmatprep.subr.mxu0 %v489
        %1337 = vmatpush1.msra.mxu0 %v488
        %1338 = vmatprep.subr.mxu0 %v483
        %1339 = vmatpush1.msra.mxu0 %v482
        %1340 = vmatprep.subr.mxu0 %v477
        %1341 = vmatpush1.msra.mxu0 %v476
        %1342 = vmatprep.subr.mxu0 0.0
        %1343 = vmatpush2.msra.mxu0 0.0
        %1344 = vmatprep.subr.mxu0 0.0
        %1345 = vmatpush2.msra.mxu0 0.0
        %1346 = vmatprep.subr.mxu0 0.0
        %1347 = vmatpush2.msra.mxu0 0.0
        %1348 = vmatprep.subr.mxu0 0.0
        %1349 = vmatpush2.msra.mxu0 0.0
        %1350 = vmatprep.subr.mxu0 0.0
        %1351 = vmatpush2.msra.mxu0 0.0
        %1352 = vmatprep.subr.mxu0 0.0
        %1353 = vmatpush2.msra.mxu0 0.0
        %1354 = vmatprep.subr.mxu0 0.0
        %1355 = vmatpush2.msra.mxu0 0.0
        %1356 = vmatprep.subr.mxu0 0.0
        %1357 = vmatpush2.msra.mxu0 0.0
        %1358 = vmatprep.subr.mxu0 0.0
        %1359 = vmatpush2.msra.mxu0 0.0
        %1360 = vmatprep.subr.mxu0 0.0
        %1361 = vmatpush2.msra.mxu0 0.0
        %1362 = vmatprep.subr.mxu0 0.0
        %1363 = vmatpush2.msra.mxu0 0.0
        %1364 = vmatprep.subr.mxu0 0.0
        %1365 = vmatpush2.msra.mxu0 0.0
        %1366 = vmatprep.subr.mxu0 0.0
        %1367 = vmatpush2.msra.mxu0 0.0
        %1368 = vmatprep.subr.mxu0 0.0
        %1369 = vmatpush2.msra.mxu0 0.0
        %1370 = vmatprep.subr.mxu0 0.0
        %1371 = vmatpush2.msra.mxu0 0.0
        %1372 = vmatprep.subr.mxu0 0.0
        %1373 = vmatpush2.msra.mxu0 0.0
        %1374 = vmatprep.mubr.f32.mxu0 0.0
        %1375 = vmatmul.mubr.f32.gmra.mxu0 %v1210
        %v1376 = vpop.f32.mrf.mxu0
        %v1377 = vadd.f32 %v1098, %v1376
        %v1378 = vpop.f32.mrf.mxu0
        %v1379 = vadd.f32 %v1100, %v1378
        %1380 = vmatprep.mubr.f32.mxu0 0.0
        %1381 = vmatmul.mubr.f32.gmra.mxu0 %v1213
        %v1382 = vpop.f32.mrf.mxu0
        %v1383 = vadd.f32 %v1104, %v1382
        %v1384 = vpop.f32.mrf.mxu0
        %v1385 = vadd.f32 %v1106, %v1384
        %1386 = vmatprep.mubr.f32.mxu0 0.0
        %1387 = vmatmul.mubr.f32.gmra.mxu0 %v1216
        %v1388 = vpop.f32.mrf.mxu0
        %v1389 = vadd.f32 %v1110, %v1388
        %v1390 = vpop.f32.mrf.mxu0
        %v1391 = vadd.f32 %v1112, %v1390
        %1392 = vmatprep.mubr.f32.mxu0 0.0
        %1393 = vmatmul.mubr.f32.gmra.mxu0 %v1219
        %v1394 = vpop.f32.mrf.mxu0
        %v1395 = vadd.f32 %v1116, %v1394
        %v1396 = vpop.f32.mrf.mxu0
        %v1397 = vadd.f32 %v1118, %v1396
        %1398 = vdwg.mxu0
        %1399 = vmatprep.subr.mxu0 0.0
        %1400 = vmatpush1.msra.mxu0 0.0
        %1401 = vmatprep.subr.mxu0 0.0
        %1402 = vmatpush1.msra.mxu0 0.0
        %1403 = vmatprep.subr.mxu0 0.0
        %1404 = vmatpush1.msra.mxu0 0.0
        %1405 = vmatprep.subr.mxu0 0.0
        %1406 = vmatpush1.msra.mxu0 0.0
        %1407 = vmatprep.subr.mxu0 0.0
        %1408 = vmatpush1.msra.mxu0 0.0
        %1409 = vmatprep.subr.mxu0 0.0
        %1410 = vmatpush1.msra.mxu0 0.0
        %1411 = vmatprep.subr.mxu0 0.0
        %1412 = vmatpush1.msra.mxu0 0.0
        %1413 = vmatprep.subr.mxu0 0.0
        %1414 = vmatpush1.msra.mxu0 0.0
        %1415 = vmatprep.subr.mxu0 0.0
        %1416 = vmatpush1.msra.mxu0 0.0
        %1417 = vmatprep.subr.mxu0 0.0
        %1418 = vmatpush1.msra.mxu0 0.0
        %1419 = vmatprep.subr.mxu0 0.0
        %1420 = vmatpush1.msra.mxu0 0.0
        %1421 = vmatprep.subr.mxu0 0.0
        %1422 = vmatpush1.msra.mxu0 0.0
        %1423 = vmatprep.subr.mxu0 %v497
        %1424 = vmatpush1.msra.mxu0 %v496
        %1425 = vmatprep.subr.mxu0 %v491
        %1426 = vmatpush1.msra.mxu0 %v490
        %1427 = vmatprep.subr.mxu0 %v485
        %1428 = vmatpush1.msra.mxu0 %v484
        %1429 = vmatprep.subr.mxu0 %v479
        %1430 = vmatpush1.msra.mxu0 %v478
        %1431 = vmatprep.subr.mxu0 0.0
        %1432 = vmatpush2.msra.mxu0 0.0
        %1433 = vmatprep.subr.mxu0 0.0
        %1434 = vmatpush2.msra.mxu0 0.0
        %1435 = vmatprep.subr.mxu0 0.0
        %1436 = vmatpush2.msra.mxu0 0.0
        %1437 = vmatprep.subr.mxu0 0.0
        %1438 = vmatpush2.msra.mxu0 0.0
        %1439 = vmatprep.subr.mxu0 0.0
        %1440 = vmatpush2.msra.mxu0 0.0
        %1441 = vmatprep.subr.mxu0 0.0
        %1442 = vmatpush2.msra.mxu0 0.0
        %1443 = vmatprep.subr.mxu0 0.0
        %1444 = vmatpush2.msra.mxu0 0.0
        %1445 = vmatprep.subr.mxu0 0.0
        %1446 = vmatpush2.msra.mxu0 0.0
        %1447 = vmatprep.subr.mxu0 0.0
        %1448 = vmatpush2.msra.mxu0 0.0
        %1449 = vmatprep.subr.mxu0 0.0
        %1450 = vmatpush2.msra.mxu0 0.0
        %1451 = vmatprep.subr.mxu0 0.0
        %1452 = vmatpush2.msra.mxu0 0.0
        %1453 = vmatprep.subr.mxu0 0.0
        %1454 = vmatpush2.msra.mxu0 0.0
        %1455 = vmatprep.subr.mxu0 0.0
        %1456 = vmatpush2.msra.mxu0 0.0
        %1457 = vmatprep.subr.mxu0 0.0
        %1458 = vmatpush2.msra.mxu0 0.0
        %1459 = vmatprep.subr.mxu0 0.0
        %1460 = vmatpush2.msra.mxu0 0.0
        %1461 = vmatprep.subr.mxu0 0.0
        %1462 = vmatpush2.msra.mxu0 0.0
        %1463 = vmatprep.mubr.f32.mxu0 0.0
        %1464 = vmatmul.mubr.f32.gmra.mxu0 %v1210
        %v1465 = vpop.f32.mrf.mxu0
        %v1466 = vadd.f32 %v1187, %v1465
        %v1467 = vpop.f32.mrf.mxu0
        %v1468 = vadd.f32 %v1189, %v1467
        %1469 = vmatprep.mubr.f32.mxu0 0.0
        %1470 = vmatmul.mubr.f32.gmra.mxu0 %v1213
        %v1471 = vpop.f32.mrf.mxu0
        %v1472 = vadd.f32 %v1193, %v1471
        %v1473 = vpop.f32.mrf.mxu0
        %v1474 = vadd.f32 %v1195, %v1473
        %1475 = vmatprep.mubr.f32.mxu0 0.0
        %1476 = vmatmul.mubr.f32.gmra.mxu0 %v1216
        %v1477 = vpop.f32.mrf.mxu0
        %v1478 = vadd.f32 %v1199, %v1477
        %v1479 = vpop.f32.mrf.mxu0
        %v1480 = vadd.f32 %v1201, %v1479
        %1481 = vmatprep.mubr.f32.mxu0 0.0
        %1482 = vmatmul.mubr.f32.gmra.mxu0 %v1219
        %v1483 = vpop.f32.mrf.mxu0
        %v1484 = vadd.f32 %v1205, %v1483
        %v1485 = vpop.f32.mrf.mxu0
        %v1486 = vadd.f32 %v1207, %v1485
        %1487 = vdwg.mxu0
        %1488 = vrot.lane.b32.xlu0 %v422, 16
        %v1489 = vpop.permute.xlu0 %1488
        %1490 = vrot.lane.b32.xlu0 %v424, 16
        %v1491 = vpop.permute.xlu0 %1490
        %1492 = vrot.lane.b32.xlu0 %v426, 16
        %v1493 = vpop.permute.xlu0 %1492
        %1494 = vrot.lane.b32.xlu0 %v428, 16
        %v1495 = vpop.permute.xlu0 %1494
        %1496 = vrot.lane.b32.xlu0 %v423, 16
        %v1497 = vpop.permute.xlu0 %1496
        %1498 = vrot.lane.b32.xlu0 %v425, 16
        %v1499 = vpop.permute.xlu0 %1498
        %1500 = vrot.lane.b32.xlu0 %v427, 16
        %v1501 = vpop.permute.xlu0 %1500
        %1502 = vrot.lane.b32.xlu0 %v429, 16
        %v1503 = vpop.permute.xlu0 %1502
        %vm1504 = vcmp.lt.s32.totalorder %v667, 16
        %v1505 = vsel %vm1504, %v1489, %v1497
        %v1506 = vsel %vm1504, %v1491, %v1499
        %v1507 = vsel %vm1504, %v1493, %v1501
        %v1508 = vsel %vm1504, %v1495, %v1503
        %v1509 = vsel %vm1504, %v1497, %v1489
        %v1510 = vsel %vm1504, %v1499, %v1491
        %v1511 = vsel %vm1504, %v1501, %v1493
        %v1512 = vsel %vm1504, %v1503, %v1495
        %v1513 = vlaneseq
        %v1514 = vshrl.u32 %v1513, 7
        %v1515 = vsub.s32 1, %v1514
        %v1516 = vrot.slane %v504, %v1515
        %v1517 = vlaneseq
        %v1518 = vshrl.u32 %v1517, 7
        %v1519 = vsub.s32 1, %v1518
        %v1520 = vrot.slane %v505, %v1519
        %v1521 = vmul.f32 %v1509, %v1516
        %v1522 = vmul.f32 %v1505, %v1520
        %v1523 = vmul.f32 %v1510, %v1516
        %v1524 = vmul.f32 %v1506, %v1520
        %v1525 = vmul.f32 %v1511, %v1516
        %v1526 = vmul.f32 %v1507, %v1520
        %v1527 = vmul.f32 %v1512, %v1516
        %v1528 = vmul.f32 %v1508, %v1520
        %1529 = vrot.lane.b32.xlu0 %v474, 16
        %v1530 = vpop.permute.xlu0 %1529
        %1531 = vrot.lane.b32.xlu0 %v480, 16
        %v1532 = vpop.permute.xlu0 %1531
        %1533 = vrot.lane.b32.xlu0 %v486, 16
        %v1534 = vpop.permute.xlu0 %1533
        %1535 = vrot.lane.b32.xlu0 %v492, 16
        %v1536 = vpop.permute.xlu0 %1535
        %1537 = vrot.lane.b32.xlu0 %v475, 16
        %v1538 = vpop.permute.xlu0 %1537
        %1539 = vrot.lane.b32.xlu0 %v481, 16
        %v1540 = vpop.permute.xlu0 %1539
        %1541 = vrot.lane.b32.xlu0 %v487, 16
        %v1542 = vpop.permute.xlu0 %1541
        %1543 = vrot.lane.b32.xlu0 %v493, 16
        %v1544 = vpop.permute.xlu0 %1543
        %1545 = vrot.lane.b32.xlu0 %v476, 16
        %v1546 = vpop.permute.xlu0 %1545
        %1547 = vrot.lane.b32.xlu0 %v482, 16
        %v1548 = vpop.permute.xlu0 %1547
        %1549 = vrot.lane.b32.xlu0 %v488, 16
        %v1550 = vpop.permute.xlu0 %1549
        %1551 = vrot.lane.b32.xlu0 %v494, 16
        %v1552 = vpop.permute.xlu0 %1551
        %1553 = vrot.lane.b32.xlu0 %v477, 16
        %v1554 = vpop.permute.xlu0 %1553
        %1555 = vrot.lane.b32.xlu0 %v483, 16
        %v1556 = vpop.permute.xlu0 %1555
        %1557 = vrot.lane.b32.xlu0 %v489, 16
        %v1558 = vpop.permute.xlu0 %1557
        %1559 = vrot.lane.b32.xlu0 %v495, 16
        %v1560 = vpop.permute.xlu0 %1559
        %1561 = vrot.lane.b32.xlu0 %v478, 16
        %v1562 = vpop.permute.xlu0 %1561
        %1563 = vrot.lane.b32.xlu0 %v484, 16
        %v1564 = vpop.permute.xlu0 %1563
        %1565 = vrot.lane.b32.xlu0 %v490, 16
        %v1566 = vpop.permute.xlu0 %1565
        %1567 = vrot.lane.b32.xlu0 %v496, 16
        %v1568 = vpop.permute.xlu0 %1567
        %1569 = vrot.lane.b32.xlu0 %v479, 16
        %v1570 = vpop.permute.xlu0 %1569
        %1571 = vrot.lane.b32.xlu0 %v485, 16
        %v1572 = vpop.permute.xlu0 %1571
        %1573 = vrot.lane.b32.xlu0 %v491, 16
        %v1574 = vpop.permute.xlu0 %1573
        %1575 = vrot.lane.b32.xlu0 %v497, 16
        %v1576 = vpop.permute.xlu0 %1575
        %v1577 = vsel %vm1504, %v1562, %v1570
        %v1578 = vsel %vm1504, %v1564, %v1572
        %v1579 = vsel %vm1504, %v1566, %v1574
        %v1580 = vsel %vm1504, %v1568, %v1576
        %v1581 = vsel %vm1504, %v1554, %v1562
        %v1582 = vsel %vm1504, %v1556, %v1564
        %v1583 = vsel %vm1504, %v1558, %v1566
        %v1584 = vsel %vm1504, %v1560, %v1568
        %v1585 = vsel %vm1504, %v1546, %v1554
        %v1586 = vsel %vm1504, %v1548, %v1556
        %v1587 = vsel %vm1504, %v1550, %v1558
        %v1588 = vsel %vm1504, %v1552, %v1560
        %v1589 = vsel %vm1504, %v1538, %v1546
        %v1590 = vsel %vm1504, %v1540, %v1548
        %v1591 = vsel %vm1504, %v1542, %v1550
        %v1592 = vsel %vm1504, %v1544, %v1552
        %v1593 = vsel %vm1504, %v1530, %v1538
        %v1594 = vsel %vm1504, %v1532, %v1540
        %v1595 = vsel %vm1504, %v1534, %v1542
        %v1596 = vsel %vm1504, %v1536, %v1544
        %v1597 = vsel %vm1504, %v1570, %v1530
        %v1598 = vsel %vm1504, %v1572, %v1532
        %v1599 = vsel %vm1504, %v1574, %v1534
        %v1600 = vsel %vm1504, %v1576, %v1536
        %v1601 = vlaneseq
        %v1602 = vshrl.u32 %v1601, 7
        %v1603 = vsub.s32 1, %v1602
        %v1604 = vrot.slane %v498, %v1603
        %v1605 = vlaneseq
        %v1606 = vshrl.u32 %v1605, 7
        %v1607 = vsub.s32 1, %v1606
        %v1608 = vrot.slane %v499, %v1607
        %v1609 = vlaneseq
        %v1610 = vshrl.u32 %v1609, 7
        %v1611 = vsub.s32 1, %v1610
        %v1612 = vrot.slane %v500, %v1611
        %v1613 = vlaneseq
        %v1614 = vshrl.u32 %v1613, 7
        %v1615 = vsub.s32 1, %v1614
        %v1616 = vrot.slane %v501, %v1615
        %v1617 = vlaneseq
        %v1618 = vshrl.u32 %v1617, 7
        %v1619 = vsub.s32 1, %v1618
        %v1620 = vrot.slane %v502, %v1619
        %v1621 = vlaneseq
        %v1622 = vshrl.u32 %v1621, 7
        %v1623 = vsub.s32 1, %v1622
        %v1624 = vrot.slane %v503, %v1623
        %v1625 = vmul.f32 %v1597, %v1604
        %v1626 = vmul.f32 %v1593, %v1608
        %v1627 = vmul.f32 %v1589, %v1612
        %v1628 = vmul.f32 %v1585, %v1616
        %v1629 = vmul.f32 %v1581, %v1620
        %v1630 = vmul.f32 %v1577, %v1624
        %v1631 = vmul.f32 %v1598, %v1604
        %v1632 = vmul.f32 %v1594, %v1608
        %v1633 = vmul.f32 %v1590, %v1612
        %v1634 = vmul.f32 %v1586, %v1616
        %v1635 = vmul.f32 %v1582, %v1620
        %v1636 = vmul.f32 %v1578, %v1624
        %v1637 = vmul.f32 %v1599, %v1604
        %v1638 = vmul.f32 %v1595, %v1608
        %v1639 = vmul.f32 %v1591, %v1612
        %v1640 = vmul.f32 %v1587, %v1616
        %v1641 = vmul.f32 %v1583, %v1620
        %v1642 = vmul.f32 %v1579, %v1624
        %v1643 = vmul.f32 %v1600, %v1604
        %v1644 = vmul.f32 %v1596, %v1608
        %v1645 = vmul.f32 %v1592, %v1612
        %v1646 = vmul.f32 %v1588, %v1616
        %v1647 = vmul.f32 %v1584, %v1620
        %v1648 = vmul.f32 %v1580, %v1624
        %s1649 = scalar_lea.vmem [#allocation8], 32
        %v1650 = vld [vmem:[%s1649] sm:$0xff]
        %v1651 = vld [vmem:[%s1649 + $0x8] sm:$0xff]
        %v1652 = vld [vmem:[%s1649 + $0x10] sm:$0xff]
        %v1653 = vld [vmem:[%s1649 + $0x18] sm:$0xff]
        %v1655 = vsel %vm515, %v1650, 0
        %v1658 = vsel %vm515, %v1651, 0
        %v1661 = vsel %vm515, %v1652, 0
        %v1664 = vsel %vm515, %v1653, 0
        %1666 = vmatprep.subr.mxu0 0.0
        %1667 = vmatpush1.msra.mxu0 0.0
        %1668 = vmatprep.subr.mxu0 0.0
        %1669 = vmatpush1.msra.mxu0 0.0
        %1670 = vmatprep.subr.mxu0 0.0
        %1671 = vmatpush1.msra.mxu0 0.0
        %1672 = vmatprep.subr.mxu0 0.0
        %1673 = vmatpush1.msra.mxu0 0.0
        %1674 = vmatprep.subr.mxu0 0.0
        %1675 = vmatpush1.msra.mxu0 0.0
        %1676 = vmatprep.subr.mxu0 0.0
        %1677 = vmatpush1.msra.mxu0 0.0
        %1678 = vmatprep.subr.mxu0 0.0
        %1679 = vmatpush1.msra.mxu0 0.0
        %1680 = vmatprep.subr.mxu0 0.0
        %1681 = vmatpush1.msra.mxu0 0.0
        %1682 = vmatprep.subr.mxu0 0.0
        %1683 = vmatpush1.msra.mxu0 0.0
        %1684 = vmatprep.subr.mxu0 0.0
        %1685 = vmatpush1.msra.mxu0 0.0
        %1686 = vmatprep.subr.mxu0 0.0
        %1687 = vmatpush1.msra.mxu0 0.0
        %1688 = vmatprep.subr.mxu0 0.0
        %1689 = vmatpush1.msra.mxu0 0.0
        %1690 = vmatprep.subr.mxu0 %v1528
        %1691 = vmatpush1.msra.mxu0 %v1527
        %1692 = vmatprep.subr.mxu0 %v1526
        %1693 = vmatpush1.msra.mxu0 %v1525
        %1694 = vmatprep.subr.mxu0 %v1524
        %1695 = vmatpush1.msra.mxu0 %v1523
        %1696 = vmatprep.subr.mxu0 %v1522
        %1697 = vmatpush1.msra.mxu0 %v1521
        %1698 = vmatprep.subr.mxu0 0.0
        %1699 = vmatpush2.msra.mxu0 0.0
        %1700 = vmatprep.subr.mxu0 0.0
        %1701 = vmatpush2.msra.mxu0 0.0
        %1702 = vmatprep.subr.mxu0 0.0
        %1703 = vmatpush2.msra.mxu0 0.0
        %1704 = vmatprep.subr.mxu0 0.0
        %1705 = vmatpush2.msra.mxu0 0.0
        %1706 = vmatprep.subr.mxu0 0.0
        %1707 = vmatpush2.msra.mxu0 0.0
        %1708 = vmatprep.subr.mxu0 0.0
        %1709 = vmatpush2.msra.mxu0 0.0
        %1710 = vmatprep.subr.mxu0 0.0
        %1711 = vmatpush2.msra.mxu0 0.0
        %1712 = vmatprep.subr.mxu0 0.0
        %1713 = vmatpush2.msra.mxu0 0.0
        %1714 = vmatprep.subr.mxu0 0.0
        %1715 = vmatpush2.msra.mxu0 0.0
        %1716 = vmatprep.subr.mxu0 0.0
        %1717 = vmatpush2.msra.mxu0 0.0
        %1718 = vmatprep.subr.mxu0 0.0
        %1719 = vmatpush2.msra.mxu0 0.0
        %1720 = vmatprep.subr.mxu0 0.0
        %1721 = vmatpush2.msra.mxu0 0.0
        %1722 = vmatprep.subr.mxu0 0.0
        %1723 = vmatpush2.msra.mxu0 0.0
        %1724 = vmatprep.subr.mxu0 0.0
        %1725 = vmatpush2.msra.mxu0 0.0
        %1726 = vmatprep.subr.mxu0 0.0
        %1727 = vmatpush2.msra.mxu0 0.0
        %1728 = vmatprep.subr.mxu0 0.0
        %1729 = vmatpush2.msra.mxu0 0.0
        %1730 = vmatprep.mubr.f32.mxu0 0.0
        %1731 = vmatmul.mubr.f32.gmra.mxu0 %v1655
        %v1732 = vpop.f32.mrf.mxu0
        %v1733 = vadd.f32 0.0, %v1732
        %v1734 = vpop.f32.mrf.mxu0
        %v1735 = vadd.f32 0.0, %v1734
        %1736 = vmatprep.mubr.f32.mxu0 0.0
        %1737 = vmatmul.mubr.f32.gmra.mxu0 %v1658
        %v1738 = vpop.f32.mrf.mxu0
        %v1739 = vadd.f32 0.0, %v1738
        %v1740 = vpop.f32.mrf.mxu0
        %v1741 = vadd.f32 0.0, %v1740
        %1742 = vmatprep.mubr.f32.mxu0 0.0
        %1743 = vmatmul.mubr.f32.gmra.mxu0 %v1661
        %v1744 = vpop.f32.mrf.mxu0
        %v1745 = vadd.f32 0.0, %v1744
        %v1746 = vpop.f32.mrf.mxu0
        %v1747 = vadd.f32 0.0, %v1746
        %1748 = vmatprep.mubr.f32.mxu0 0.0
        %1749 = vmatmul.mubr.f32.gmra.mxu0 %v1664
        %v1750 = vpop.f32.mrf.mxu0
        %v1751 = vadd.f32 0.0, %v1750
        %v1752 = vpop.f32.mrf.mxu0
        %v1753 = vadd.f32 0.0, %v1752
        %1754 = vdwg.mxu0
        %v1755 = vadd.f32 %v918, %v1733
        %v1756 = vadd.f32 %v919, %v1735
        %v1757 = vadd.f32 %v920, %v1739
        %v1758 = vadd.f32 %v921, %v1741
        %v1759 = vadd.f32 %v922, %v1745
        %v1760 = vadd.f32 %v923, %v1747
        %v1761 = vadd.f32 %v924, %v1751
        %v1762 = vadd.f32 %v925, %v1753
        %s1763 = scalar_lea.vmem [#allocation10], 32
        %v1764 = vld [vmem:[%s1763] sm:$0xff]
        %v1765 = vld [vmem:[%s1763 + $0x8] sm:$0xff]
        %v1766 = vld [vmem:[%s1763 + $0x10] sm:$0xff]
        %v1767 = vld [vmem:[%s1763 + $0x18] sm:$0xff]
        %v1769 = vsel %vm515, %v1764, 0
        %v1772 = vsel %vm515, %v1765, 0
        %v1775 = vsel %vm515, %v1766, 0
        %v1778 = vsel %vm515, %v1767, 0
        %1780 = vmatprep.subr.mxu0 0.0
        %1781 = vmatpush1.msra.mxu0 0.0
        %1782 = vmatprep.subr.mxu0 0.0
        %1783 = vmatpush1.msra.mxu0 0.0
        %1784 = vmatprep.subr.mxu0 0.0
        %1785 = vmatpush1.msra.mxu0 0.0
        %1786 = vmatprep.subr.mxu0 0.0
        %1787 = vmatpush1.msra.mxu0 0.0
        %1788 = vmatprep.subr.mxu0 0.0
        %1789 = vmatpush1.msra.mxu0 0.0
        %1790 = vmatprep.subr.mxu0 0.0
        %1791 = vmatpush1.msra.mxu0 0.0
        %1792 = vmatprep.subr.mxu0 0.0
        %1793 = vmatpush1.msra.mxu0 0.0
        %1794 = vmatprep.subr.mxu0 0.0
        %1795 = vmatpush1.msra.mxu0 0.0
        %1796 = vmatprep.subr.mxu0 0.0
        %1797 = vmatpush1.msra.mxu0 0.0
        %1798 = vmatprep.subr.mxu0 0.0
        %1799 = vmatpush1.msra.mxu0 0.0
        %1800 = vmatprep.subr.mxu0 0.0
        %1801 = vmatpush1.msra.mxu0 0.0
        %1802 = vmatprep.subr.mxu0 0.0
        %1803 = vmatpush1.msra.mxu0 0.0
        %1804 = vmatprep.subr.mxu0 %v1644
        %1805 = vmatpush1.msra.mxu0 %v1643
        %1806 = vmatprep.subr.mxu0 %v1638
        %1807 = vmatpush1.msra.mxu0 %v1637
        %1808 = vmatprep.subr.mxu0 %v1632
        %1809 = vmatpush1.msra.mxu0 %v1631
        %1810 = vmatprep.subr.mxu0 %v1626
        %1811 = vmatpush1.msra.mxu0 %v1625
        %1812 = vmatprep.subr.mxu0 0.0
        %1813 = vmatpush2.msra.mxu0 0.0
        %1814 = vmatprep.subr.mxu0 0.0
        %1815 = vmatpush2.msra.mxu0 0.0
        %1816 = vmatprep.subr.mxu0 0.0
        %1817 = vmatpush2.msra.mxu0 0.0
        %1818 = vmatprep.subr.mxu0 0.0
        %1819 = vmatpush2.msra.mxu0 0.0
        %1820 = vmatprep.subr.mxu0 0.0
        %1821 = vmatpush2.msra.mxu0 0.0
        %1822 = vmatprep.subr.mxu0 0.0
        %1823 = vmatpush2.msra.mxu0 0.0
        %1824 = vmatprep.subr.mxu0 0.0
        %1825 = vmatpush2.msra.mxu0 0.0
        %1826 = vmatprep.subr.mxu0 0.0
        %1827 = vmatpush2.msra.mxu0 0.0
        %1828 = vmatprep.subr.mxu0 0.0
        %1829 = vmatpush2.msra.mxu0 0.0
        %1830 = vmatprep.subr.mxu0 0.0
        %1831 = vmatpush2.msra.mxu0 0.0
        %1832 = vmatprep.subr.mxu0 0.0
        %1833 = vmatpush2.msra.mxu0 0.0
        %1834 = vmatprep.subr.mxu0 0.0
        %1835 = vmatpush2.msra.mxu0 0.0
        %1836 = vmatprep.subr.mxu0 0.0
        %1837 = vmatpush2.msra.mxu0 0.0
        %1838 = vmatprep.subr.mxu0 0.0
        %1839 = vmatpush2.msra.mxu0 0.0
        %1840 = vmatprep.subr.mxu0 0.0
        %1841 = vmatpush2.msra.mxu0 0.0
        %1842 = vmatprep.subr.mxu0 0.0
        %1843 = vmatpush2.msra.mxu0 0.0
        %1844 = vmatprep.mubr.f32.mxu0 0.0
        %1845 = vmatmul.mubr.f32.gmra.mxu0 %v1769
        %v1846 = vpop.f32.mrf.mxu0
        %v1847 = vadd.f32 0.0, %v1846
        %v1848 = vpop.f32.mrf.mxu0
        %v1849 = vadd.f32 0.0, %v1848
        %1850 = vmatprep.mubr.f32.mxu0 0.0
        %1851 = vmatmul.mubr.f32.gmra.mxu0 %v1772
        %v1852 = vpop.f32.mrf.mxu0
        %v1853 = vadd.f32 0.0, %v1852
        %v1854 = vpop.f32.mrf.mxu0
        %v1855 = vadd.f32 0.0, %v1854
        %1856 = vmatprep.mubr.f32.mxu0 0.0
        %1857 = vmatmul.mubr.f32.gmra.mxu0 %v1775
        %v1858 = vpop.f32.mrf.mxu0
        %v1859 = vadd.f32 0.0, %v1858
        %v1860 = vpop.f32.mrf.mxu0
        %v1861 = vadd.f32 0.0, %v1860
        %1862 = vmatprep.mubr.f32.mxu0 0.0
        %1863 = vmatmul.mubr.f32.gmra.mxu0 %v1778
        %v1864 = vpop.f32.mrf.mxu0
        %v1865 = vadd.f32 0.0, %v1864
        %v1866 = vpop.f32.mrf.mxu0
        %v1867 = vadd.f32 0.0, %v1866
        %1868 = vdwg.mxu0
        %1869 = vmatprep.subr.mxu0 0.0
        %1870 = vmatpush1.msra.mxu0 0.0
        %1871 = vmatprep.subr.mxu0 0.0
        %1872 = vmatpush1.msra.mxu0 0.0
        %1873 = vmatprep.subr.mxu0 0.0
        %1874 = vmatpush1.msra.mxu0 0.0
        %1875 = vmatprep.subr.mxu0 0.0
        %1876 = vmatpush1.msra.mxu0 0.0
        %1877 = vmatprep.subr.mxu0 0.0
        %1878 = vmatpush1.msra.mxu0 0.0
        %1879 = vmatprep.subr.mxu0 0.0
        %1880 = vmatpush1.msra.mxu0 0.0
        %1881 = vmatprep.subr.mxu0 0.0
        %1882 = vmatpush1.msra.mxu0 0.0
        %1883 = vmatprep.subr.mxu0 0.0
        %1884 = vmatpush1.msra.mxu0 0.0
        %1885 = vmatprep.subr.mxu0 0.0
        %1886 = vmatpush1.msra.mxu0 0.0
        %1887 = vmatprep.subr.mxu0 0.0
        %1888 = vmatpush1.msra.mxu0 0.0
        %1889 = vmatprep.subr.mxu0 0.0
        %1890 = vmatpush1.msra.mxu0 0.0
        %1891 = vmatprep.subr.mxu0 0.0
        %1892 = vmatpush1.msra.mxu0 0.0
        %1893 = vmatprep.subr.mxu0 %v1646
        %1894 = vmatpush1.msra.mxu0 %v1645
        %1895 = vmatprep.subr.mxu0 %v1640
        %1896 = vmatpush1.msra.mxu0 %v1639
        %1897 = vmatprep.subr.mxu0 %v1634
        %1898 = vmatpush1.msra.mxu0 %v1633
        %1899 = vmatprep.subr.mxu0 %v1628
        %1900 = vmatpush1.msra.mxu0 %v1627
        %1901 = vmatprep.subr.mxu0 0.0
        %1902 = vmatpush2.msra.mxu0 0.0
        %1903 = vmatprep.subr.mxu0 0.0
        %1904 = vmatpush2.msra.mxu0 0.0
        %1905 = vmatprep.subr.mxu0 0.0
        %1906 = vmatpush2.msra.mxu0 0.0
        %1907 = vmatprep.subr.mxu0 0.0
        %1908 = vmatpush2.msra.mxu0 0.0
        %1909 = vmatprep.subr.mxu0 0.0
        %1910 = vmatpush2.msra.mxu0 0.0
        %1911 = vmatprep.subr.mxu0 0.0
        %1912 = vmatpush2.msra.mxu0 0.0
        %1913 = vmatprep.subr.mxu0 0.0
        %1914 = vmatpush2.msra.mxu0 0.0
        %1915 = vmatprep.subr.mxu0 0.0
        %1916 = vmatpush2.msra.mxu0 0.0
        %1917 = vmatprep.subr.mxu0 0.0
        %1918 = vmatpush2.msra.mxu0 0.0
        %1919 = vmatprep.subr.mxu0 0.0
        %1920 = vmatpush2.msra.mxu0 0.0
        %1921 = vmatprep.subr.mxu0 0.0
        %1922 = vmatpush2.msra.mxu0 0.0
        %1923 = vmatprep.subr.mxu0 0.0
        %1924 = vmatpush2.msra.mxu0 0.0
        %1925 = vmatprep.subr.mxu0 0.0
        %1926 = vmatpush2.msra.mxu0 0.0
        %1927 = vmatprep.subr.mxu0 0.0
        %1928 = vmatpush2.msra.mxu0 0.0
        %1929 = vmatprep.subr.mxu0 0.0
        %1930 = vmatpush2.msra.mxu0 0.0
        %1931 = vmatprep.subr.mxu0 0.0
        %1932 = vmatpush2.msra.mxu0 0.0
        %1933 = vmatprep.mubr.f32.mxu0 0.0
        %1934 = vmatmul.mubr.f32.gmra.mxu0 %v1769
        %v1935 = vpop.f32.mrf.mxu0
        %v1936 = vadd.f32 0.0, %v1935
        %v1937 = vpop.f32.mrf.mxu0
        %v1938 = vadd.f32 0.0, %v1937
        %1939 = vmatprep.mubr.f32.mxu0 0.0
        %1940 = vmatmul.mubr.f32.gmra.mxu0 %v1772
        %v1941 = vpop.f32.mrf.mxu0
        %v1942 = vadd.f32 0.0, %v1941
        %v1943 = vpop.f32.mrf.mxu0
        %v1944 = vadd.f32 0.0, %v1943
        %1945 = vmatprep.mubr.f32.mxu0 0.0
        %1946 = vmatmul.mubr.f32.gmra.mxu0 %v1775
        %v1947 = vpop.f32.mrf.mxu0
        %v1948 = vadd.f32 0.0, %v1947
        %v1949 = vpop.f32.mrf.mxu0
        %v1950 = vadd.f32 0.0, %v1949
        %1951 = vmatprep.mubr.f32.mxu0 0.0
        %1952 = vmatmul.mubr.f32.gmra.mxu0 %v1778
        %v1953 = vpop.f32.mrf.mxu0
        %v1954 = vadd.f32 0.0, %v1953
        %v1955 = vpop.f32.mrf.mxu0
        %v1956 = vadd.f32 0.0, %v1955
        %1957 = vdwg.mxu0
        %1958 = vmatprep.subr.mxu0 0.0
        %1959 = vmatpush1.msra.mxu0 0.0
        %1960 = vmatprep.subr.mxu0 0.0
        %1961 = vmatpush1.msra.mxu0 0.0
        %1962 = vmatprep.subr.mxu0 0.0
        %1963 = vmatpush1.msra.mxu0 0.0
        %1964 = vmatprep.subr.mxu0 0.0
        %1965 = vmatpush1.msra.mxu0 0.0
        %1966 = vmatprep.subr.mxu0 0.0
        %1967 = vmatpush1.msra.mxu0 0.0
        %1968 = vmatprep.subr.mxu0 0.0
        %1969 = vmatpush1.msra.mxu0 0.0
        %1970 = vmatprep.subr.mxu0 0.0
        %1971 = vmatpush1.msra.mxu0 0.0
        %1972 = vmatprep.subr.mxu0 0.0
        %1973 = vmatpush1.msra.mxu0 0.0
        %1974 = vmatprep.subr.mxu0 0.0
        %1975 = vmatpush1.msra.mxu0 0.0
        %1976 = vmatprep.subr.mxu0 0.0
        %1977 = vmatpush1.msra.mxu0 0.0
        %1978 = vmatprep.subr.mxu0 0.0
        %1979 = vmatpush1.msra.mxu0 0.0
        %1980 = vmatprep.subr.mxu0 0.0
        %1981 = vmatpush1.msra.mxu0 0.0
        %1982 = vmatprep.subr.mxu0 %v1648
        %1983 = vmatpush1.msra.mxu0 %v1647
        %1984 = vmatprep.subr.mxu0 %v1642
        %1985 = vmatpush1.msra.mxu0 %v1641
        %1986 = vmatprep.subr.mxu0 %v1636
        %1987 = vmatpush1.msra.mxu0 %v1635
        %1988 = vmatprep.subr.mxu0 %v1630
        %1989 = vmatpush1.msra.mxu0 %v1629
        %1990 = vmatprep.subr.mxu0 0.0
        %1991 = vmatpush2.msra.mxu0 0.0
        %1992 = vmatprep.subr.mxu0 0.0
        %1993 = vmatpush2.msra.mxu0 0.0
        %1994 = vmatprep.subr.mxu0 0.0
        %1995 = vmatpush2.msra.mxu0 0.0
        %1996 = vmatprep.subr.mxu0 0.0
        %1997 = vmatpush2.msra.mxu0 0.0
        %1998 = vmatprep.subr.mxu0 0.0
        %1999 = vmatpush2.msra.mxu0 0.0
        %2000 = vmatprep.subr.mxu0 0.0
        %2001 = vmatpush2.msra.mxu0 0.0
        %2002 = vmatprep.subr.mxu0 0.0
        %2003 = vmatpush2.msra.mxu0 0.0
        %2004 = vmatprep.subr.mxu0 0.0
        %2005 = vmatpush2.msra.mxu0 0.0
        %2006 = vmatprep.subr.mxu0 0.0
        %2007 = vmatpush2.msra.mxu0 0.0
        %2008 = vmatprep.subr.mxu0 0.0
        %2009 = vmatpush2.msra.mxu0 0.0
        %2010 = vmatprep.subr.mxu0 0.0
        %2011 = vmatpush2.msra.mxu0 0.0
        %2012 = vmatprep.subr.mxu0 0.0
        %2013 = vmatpush2.msra.mxu0 0.0
        %2014 = vmatprep.subr.mxu0 0.0
        %2015 = vmatpush2.msra.mxu0 0.0
        %2016 = vmatprep.subr.mxu0 0.0
        %2017 = vmatpush2.msra.mxu0 0.0
        %2018 = vmatprep.subr.mxu0 0.0
        %2019 = vmatpush2.msra.mxu0 0.0
        %2020 = vmatprep.subr.mxu0 0.0
        %2021 = vmatpush2.msra.mxu0 0.0
        %2022 = vmatprep.mubr.f32.mxu0 0.0
        %2023 = vmatmul.mubr.f32.gmra.mxu0 %v1769
        %v2024 = vpop.f32.mrf.mxu0
        %v2025 = vadd.f32 0.0, %v2024
        %v2026 = vpop.f32.mrf.mxu0
        %v2027 = vadd.f32 0.0, %v2026
        %2028 = vmatprep.mubr.f32.mxu0 0.0
        %2029 = vmatmul.mubr.f32.gmra.mxu0 %v1772
        %v2030 = vpop.f32.mrf.mxu0
        %v2031 = vadd.f32 0.0, %v2030
        %v2032 = vpop.f32.mrf.mxu0
        %v2033 = vadd.f32 0.0, %v2032
        %2034 = vmatprep.mubr.f32.mxu0 0.0
        %2035 = vmatmul.mubr.f32.gmra.mxu0 %v1775
        %v2036 = vpop.f32.mrf.mxu0
        %v2037 = vadd.f32 0.0, %v2036
        %v2038 = vpop.f32.mrf.mxu0
        %v2039 = vadd.f32 0.0, %v2038
        %2040 = vmatprep.mubr.f32.mxu0 0.0
        %2041 = vmatmul.mubr.f32.gmra.mxu0 %v1778
        %v2042 = vpop.f32.mrf.mxu0
        %v2043 = vadd.f32 0.0, %v2042
        %v2044 = vpop.f32.mrf.mxu0
        %v2045 = vadd.f32 0.0, %v2044
        %2046 = vdwg.mxu0
        %v2047 = vadd.f32 %v1288, %v1847
        %v2048 = vadd.f32 %v1290, %v1849
        %v2049 = vadd.f32 %v1377, %v1936
        %v2050 = vadd.f32 %v1379, %v1938
        %v2051 = vadd.f32 %v1466, %v2025
        %v2052 = vadd.f32 %v1468, %v2027
        %v2053 = vadd.f32 %v1294, %v1853
        %v2054 = vadd.f32 %v1296, %v1855
        %v2055 = vadd.f32 %v1383, %v1942
        %v2056 = vadd.f32 %v1385, %v1944
        %v2057 = vadd.f32 %v1472, %v2031
        %v2058 = vadd.f32 %v1474, %v2033
        %v2059 = vadd.f32 %v1300, %v1859
        %v2060 = vadd.f32 %v1302, %v1861
        %v2061 = vadd.f32 %v1389, %v1948
        %v2062 = vadd.f32 %v1391, %v1950
        %v2063 = vadd.f32 %v1478, %v2037
        %v2064 = vadd.f32 %v1480, %v2039
        %v2065 = vadd.f32 %v1306, %v1865
        %v2066 = vadd.f32 %v1308, %v1867
        %v2067 = vadd.f32 %v1395, %v1954
        %v2068 = vadd.f32 %v1397, %v1956
        %v2069 = vadd.f32 %v1484, %v2043
        %v2070 = vadd.f32 %v1486, %v2045
        %2071 = vrot.lane.b32.xlu0 %v422, 15
        %v2072 = vpop.permute.xlu0 %2071
        %2073 = vrot.lane.b32.xlu0 %v424, 15
        %v2074 = vpop.permute.xlu0 %2073
        %2075 = vrot.lane.b32.xlu0 %v426, 15
        %v2076 = vpop.permute.xlu0 %2075
        %2077 = vrot.lane.b32.xlu0 %v428, 15
        %v2078 = vpop.permute.xlu0 %2077
        %2079 = vrot.lane.b32.xlu0 %v423, 15
        %v2080 = vpop.permute.xlu0 %2079
        %2081 = vrot.lane.b32.xlu0 %v425, 15
        %v2082 = vpop.permute.xlu0 %2081
        %2083 = vrot.lane.b32.xlu0 %v427, 15
        %v2084 = vpop.permute.xlu0 %2083
        %2085 = vrot.lane.b32.xlu0 %v429, 15
        %v2086 = vpop.permute.xlu0 %2085
        %vm2087 = vcmp.lt.s32.totalorder %v667, 15
        %v2088 = vsel %vm2087, %v2072, %v2080
        %v2089 = vsel %vm2087, %v2074, %v2082
        %v2090 = vsel %vm2087, %v2076, %v2084
        %v2091 = vsel %vm2087, %v2078, %v2086
        %v2092 = vsel %vm2087, %v2080, %v2072
        %v2093 = vsel %vm2087, %v2082, %v2074
        %v2094 = vsel %vm2087, %v2084, %v2076
        %v2095 = vsel %vm2087, %v2086, %v2078
        %v2096 = vlaneseq
        %v2097 = vshrl.u32 %v2096, 7
        %v2098 = vsub.s32 2, %v2097
        %v2099 = vrot.slane %v504, %v2098
        %v2100 = vlaneseq
        %v2101 = vshrl.u32 %v2100, 7
        %v2102 = vsub.s32 2, %v2101
        %v2103 = vrot.slane %v505, %v2102
        %v2104 = vmul.f32 %v2092, %v2099
        %v2105 = vmul.f32 %v2088, %v2103
        %v2106 = vmul.f32 %v2093, %v2099
        %v2107 = vmul.f32 %v2089, %v2103
        %v2108 = vmul.f32 %v2094, %v2099
        %v2109 = vmul.f32 %v2090, %v2103
        %v2110 = vmul.f32 %v2095, %v2099
        %v2111 = vmul.f32 %v2091, %v2103
        %2112 = vrot.lane.b32.xlu0 %v474, 15
        %v2113 = vpop.permute.xlu0 %2112
        %2114 = vrot.lane.b32.xlu0 %v480, 15
        %v2115 = vpop.permute.xlu0 %2114
        %2116 = vrot.lane.b32.xlu0 %v486, 15
        %v2117 = vpop.permute.xlu0 %2116
        %2118 = vrot.lane.b32.xlu0 %v492, 15
        %v2119 = vpop.permute.xlu0 %2118
        %2120 = vrot.lane.b32.xlu0 %v475, 15
        %v2121 = vpop.permute.xlu0 %2120
        %2122 = vrot.lane.b32.xlu0 %v481, 15
        %v2123 = vpop.permute.xlu0 %2122
        %2124 = vrot.lane.b32.xlu0 %v487, 15
        %v2125 = vpop.permute.xlu0 %2124
        %2126 = vrot.lane.b32.xlu0 %v493, 15
        %v2127 = vpop.permute.xlu0 %2126
        %2128 = vrot.lane.b32.xlu0 %v476, 15
        %v2129 = vpop.permute.xlu0 %2128
        %2130 = vrot.lane.b32.xlu0 %v482, 15
        %v2131 = vpop.permute.xlu0 %2130
        %2132 = vrot.lane.b32.xlu0 %v488, 15
        %v2133 = vpop.permute.xlu0 %2132
        %2134 = vrot.lane.b32.xlu0 %v494, 15
        %v2135 = vpop.permute.xlu0 %2134
        %2136 = vrot.lane.b32.xlu0 %v477, 15
        %v2137 = vpop.permute.xlu0 %2136
        %2138 = vrot.lane.b32.xlu0 %v483, 15
        %v2139 = vpop.permute.xlu0 %2138
        %2140 = vrot.lane.b32.xlu0 %v489, 15
        %v2141 = vpop.permute.xlu0 %2140
        %2142 = vrot.lane.b32.xlu0 %v495, 15
        %v2143 = vpop.permute.xlu0 %2142
        %2144 = vrot.lane.b32.xlu0 %v478, 15
        %v2145 = vpop.permute.xlu0 %2144
        %2146 = vrot.lane.b32.xlu0 %v484, 15
        %v2147 = vpop.permute.xlu0 %2146
        %2148 = vrot.lane.b32.xlu0 %v490, 15
        %v2149 = vpop.permute.xlu0 %2148
        %2150 = vrot.lane.b32.xlu0 %v496, 15
        %v2151 = vpop.permute.xlu0 %2150
        %2152 = vrot.lane.b32.xlu0 %v479, 15
        %v2153 = vpop.permute.xlu0 %2152
        %2154 = vrot.lane.b32.xlu0 %v485, 15
        %v2155 = vpop.permute.xlu0 %2154
        %2156 = vrot.lane.b32.xlu0 %v491, 15
        %v2157 = vpop.permute.xlu0 %2156
        %2158 = vrot.lane.b32.xlu0 %v497, 15
        %v2159 = vpop.permute.xlu0 %2158
        %v2160 = vsel %vm2087, %v2145, %v2153
        %v2161 = vsel %vm2087, %v2147, %v2155
        %v2162 = vsel %vm2087, %v2149, %v2157
        %v2163 = vsel %vm2087, %v2151, %v2159
        %v2164 = vsel %vm2087, %v2137, %v2145
        %v2165 = vsel %vm2087, %v2139, %v2147
        %v2166 = vsel %vm2087, %v2141, %v2149
        %v2167 = vsel %vm2087, %v2143, %v2151
        %v2168 = vsel %vm2087, %v2129, %v2137
        %v2169 = vsel %vm2087, %v2131, %v2139
        %v2170 = vsel %vm2087, %v2133, %v2141
        %v2171 = vsel %vm2087, %v2135, %v2143
        %v2172 = vsel %vm2087, %v2121, %v2129
        %v2173 = vsel %vm2087, %v2123, %v2131
        %v2174 = vsel %vm2087, %v2125, %v2133
        %v2175 = vsel %vm2087, %v2127, %v2135
        %v2176 = vsel %vm2087, %v2113, %v2121
        %v2177 = vsel %vm2087, %v2115, %v2123
        %v2178 = vsel %vm2087, %v2117, %v2125
        %v2179 = vsel %vm2087, %v2119, %v2127
        %v2180 = vsel %vm2087, %v2153, %v2113
        %v2181 = vsel %vm2087, %v2155, %v2115
        %v2182 = vsel %vm2087, %v2157, %v2117
        %v2183 = vsel %vm2087, %v2159, %v2119
        %v2184 = vlaneseq
        %v2185 = vshrl.u32 %v2184, 7
        %v2186 = vsub.s32 2, %v2185
        %v2187 = vrot.slane %v498, %v2186
        %v2188 = vlaneseq
        %v2189 = vshrl.u32 %v2188, 7
        %v2190 = vsub.s32 2, %v2189
        %v2191 = vrot.slane %v499, %v2190
        %v2192 = vlaneseq
        %v2193 = vshrl.u32 %v2192, 7
        %v2194 = vsub.s32 2, %v2193
        %v2195 = vrot.slane %v500, %v2194
        %v2196 = vlaneseq
        %v2197 = vshrl.u32 %v2196, 7
        %v2198 = vsub.s32 2, %v2197
        %v2199 = vrot.slane %v501, %v2198
        %v2200 = vlaneseq
        %v2201 = vshrl.u32 %v2200, 7
        %v2202 = vsub.s32 2, %v2201
        %v2203 = vrot.slane %v502, %v2202
        %v2204 = vlaneseq
        %v2205 = vshrl.u32 %v2204, 7
        %v2206 = vsub.s32 2, %v2205
        %v2207 = vrot.slane %v503, %v2206
        %v2208 = vmul.f32 %v2180, %v2187
        %v2209 = vmul.f32 %v2176, %v2191
        %v2210 = vmul.f32 %v2172, %v2195
        %v2211 = vmul.f32 %v2168, %v2199
        %v2212 = vmul.f32 %v2164, %v2203
        %v2213 = vmul.f32 %v2160, %v2207
        %v2214 = vmul.f32 %v2181, %v2187
        %v2215 = vmul.f32 %v2177, %v2191
        %v2216 = vmul.f32 %v2173, %v2195
        %v2217 = vmul.f32 %v2169, %v2199
        %v2218 = vmul.f32 %v2165, %v2203
        %v2219 = vmul.f32 %v2161, %v2207
        %v2220 = vmul.f32 %v2182, %v2187
        %v2221 = vmul.f32 %v2178, %v2191
        %v2222 = vmul.f32 %v2174, %v2195
        %v2223 = vmul.f32 %v2170, %v2199
        %v2224 = vmul.f32 %v2166, %v2203
        %v2225 = vmul.f32 %v2162, %v2207
        %v2226 = vmul.f32 %v2183, %v2187
        %v2227 = vmul.f32 %v2179, %v2191
        %v2228 = vmul.f32 %v2175, %v2195
        %v2229 = vmul.f32 %v2171, %v2199
        %v2230 = vmul.f32 %v2167, %v2203
        %v2231 = vmul.f32 %v2163, %v2207
        %s2232 = scalar_lea.vmem [#allocation8], 64
        %v2233 = vld [vmem:[%s2232] sm:$0xff]
        %v2234 = vld [vmem:[%s2232 + $0x8] sm:$0xff]
        %v2235 = vld [vmem:[%s2232 + $0x10] sm:$0xff]
        %v2236 = vld [vmem:[%s2232 + $0x18] sm:$0xff]
        %v2238 = vsel %vm515, %v2233, 0
        %v2241 = vsel %vm515, %v2234, 0
        %v2244 = vsel %vm515, %v2235, 0
        %v2247 = vsel %vm515, %v2236, 0
        %2249 = vmatprep.subr.mxu0 0.0
        %2250 = vmatpush1.msra.mxu0 0.0
        %2251 = vmatprep.subr.mxu0 0.0
        %2252 = vmatpush1.msra.mxu0 0.0
        %2253 = vmatprep.subr.mxu0 0.0
        %2254 = vmatpush1.msra.mxu0 0.0
        %2255 = vmatprep.subr.mxu0 0.0
        %2256 = vmatpush1.msra.mxu0 0.0
        %2257 = vmatprep.subr.mxu0 0.0
        %2258 = vmatpush1.msra.mxu0 0.0
        %2259 = vmatprep.subr.mxu0 0.0
        %2260 = vmatpush1.msra.mxu0 0.0
        %2261 = vmatprep.subr.mxu0 0.0
        %2262 = vmatpush1.msra.mxu0 0.0
        %2263 = vmatprep.subr.mxu0 0.0
        %2264 = vmatpush1.msra.mxu0 0.0
        %2265 = vmatprep.subr.mxu0 0.0
        %2266 = vmatpush1.msra.mxu0 0.0
        %2267 = vmatprep.subr.mxu0 0.0
        %2268 = vmatpush1.msra.mxu0 0.0
        %2269 = vmatprep.subr.mxu0 0.0
        %2270 = vmatpush1.msra.mxu0 0.0
        %2271 = vmatprep.subr.mxu0 0.0
        %2272 = vmatpush1.msra.mxu0 0.0
        %2273 = vmatprep.subr.mxu0 %v2111
        %2274 = vmatpush1.msra.mxu0 %v2110
        %2275 = vmatprep.subr.mxu0 %v2109
        %2276 = vmatpush1.msra.mxu0 %v2108
        %2277 = vmatprep.subr.mxu0 %v2107
        %2278 = vmatpush1.msra.mxu0 %v2106
        %2279 = vmatprep.subr.mxu0 %v2105
        %2280 = vmatpush1.msra.mxu0 %v2104
        %2281 = vmatprep.subr.mxu0 0.0
        %2282 = vmatpush2.msra.mxu0 0.0
        %2283 = vmatprep.subr.mxu0 0.0
        %2284 = vmatpush2.msra.mxu0 0.0
        %2285 = vmatprep.subr.mxu0 0.0
        %2286 = vmatpush2.msra.mxu0 0.0
        %2287 = vmatprep.subr.mxu0 0.0
        %2288 = vmatpush2.msra.mxu0 0.0
        %2289 = vmatprep.subr.mxu0 0.0
        %2290 = vmatpush2.msra.mxu0 0.0
        %2291 = vmatprep.subr.mxu0 0.0
        %2292 = vmatpush2.msra.mxu0 0.0
        %2293 = vmatprep.subr.mxu0 0.0
        %2294 = vmatpush2.msra.mxu0 0.0
        %2295 = vmatprep.subr.mxu0 0.0
        %2296 = vmatpush2.msra.mxu0 0.0
        %2297 = vmatprep.subr.mxu0 0.0
        %2298 = vmatpush2.msra.mxu0 0.0
        %2299 = vmatprep.subr.mxu0 0.0
        %2300 = vmatpush2.msra.mxu0 0.0
        %2301 = vmatprep.subr.mxu0 0.0
        %2302 = vmatpush2.msra.mxu0 0.0
        %2303 = vmatprep.subr.mxu0 0.0
        %2304 = vmatpush2.msra.mxu0 0.0
        %2305 = vmatprep.subr.mxu0 0.0
        %2306 = vmatpush2.msra.mxu0 0.0
        %2307 = vmatprep.subr.mxu0 0.0
        %2308 = vmatpush2.msra.mxu0 0.0
        %2309 = vmatprep.subr.mxu0 0.0
        %2310 = vmatpush2.msra.mxu0 0.0
        %2311 = vmatprep.subr.mxu0 0.0
        %2312 = vmatpush2.msra.mxu0 0.0
        %2313 = vmatprep.mubr.f32.mxu0 0.0
        %2314 = vmatmul.mubr.f32.gmra.mxu0 %v2238
        %v2315 = vpop.f32.mrf.mxu0
        %v2316 = vadd.f32 0.0, %v2315
        %v2317 = vpop.f32.mrf.mxu0
        %v2318 = vadd.f32 0.0, %v2317
        %2319 = vmatprep.mubr.f32.mxu0 0.0
        %2320 = vmatmul.mubr.f32.gmra.mxu0 %v2241
        %v2321 = vpop.f32.mrf.mxu0
        %v2322 = vadd.f32 0.0, %v2321
        %v2323 = vpop.f32.mrf.mxu0
        %v2324 = vadd.f32 0.0, %v2323
        %2325 = vmatprep.mubr.f32.mxu0 0.0
        %2326 = vmatmul.mubr.f32.gmra.mxu0 %v2244
        %v2327 = vpop.f32.mrf.mxu0
        %v2328 = vadd.f32 0.0, %v2327
        %v2329 = vpop.f32.mrf.mxu0
        %v2330 = vadd.f32 0.0, %v2329
        %2331 = vmatprep.mubr.f32.mxu0 0.0
        %2332 = vmatmul.mubr.f32.gmra.mxu0 %v2247
        %v2333 = vpop.f32.mrf.mxu0
        %v2334 = vadd.f32 0.0, %v2333
        %v2335 = vpop.f32.mrf.mxu0
        %v2336 = vadd.f32 0.0, %v2335
        %2337 = vdwg.mxu0
        %v2338 = vadd.f32 %v1755, %v2316
        %v2339 = vadd.f32 %v1756, %v2318
        %v2340 = vadd.f32 %v1757, %v2322
        %v2341 = vadd.f32 %v1758, %v2324
        %v2342 = vadd.f32 %v1759, %v2328
        %v2343 = vadd.f32 %v1760, %v2330
        %v2344 = vadd.f32 %v1761, %v2334
        %v2345 = vadd.f32 %v1762, %v2336
        %s2346 = scalar_lea.vmem [#allocation10], 64
        %v2347 = vld [vmem:[%s2346] sm:$0xff]
        %v2348 = vld [vmem:[%s2346 + $0x8] sm:$0xff]
        %v2349 = vld [vmem:[%s2346 + $0x10] sm:$0xff]
        %v2350 = vld [vmem:[%s2346 + $0x18] sm:$0xff]
        %v2352 = vsel %vm515, %v2347, 0
        %v2355 = vsel %vm515, %v2348, 0
        %v2358 = vsel %vm515, %v2349, 0
        %v2361 = vsel %vm515, %v2350, 0
        %2363 = vmatprep.subr.mxu0 0.0
        %2364 = vmatpush1.msra.mxu0 0.0
        %2365 = vmatprep.subr.mxu0 0.0
        %2366 = vmatpush1.msra.mxu0 0.0
        %2367 = vmatprep.subr.mxu0 0.0
        %2368 = vmatpush1.msra.mxu0 0.0
        %2369 = vmatprep.subr.mxu0 0.0
        %2370 = vmatpush1.msra.mxu0 0.0
        %2371 = vmatprep.subr.mxu0 0.0
        %2372 = vmatpush1.msra.mxu0 0.0
        %2373 = vmatprep.subr.mxu0 0.0
        %2374 = vmatpush1.msra.mxu0 0.0
        %2375 = vmatprep.subr.mxu0 0.0
        %2376 = vmatpush1.msra.mxu0 0.0
        %2377 = vmatprep.subr.mxu0 0.0
        %2378 = vmatpush1.msra.mxu0 0.0
        %2379 = vmatprep.subr.mxu0 0.0
        %2380 = vmatpush1.msra.mxu0 0.0
        %2381 = vmatprep.subr.mxu0 0.0
        %2382 = vmatpush1.msra.mxu0 0.0
        %2383 = vmatprep.subr.mxu0 0.0
        %2384 = vmatpush1.msra.mxu0 0.0
        %2385 = vmatprep.subr.mxu0 0.0
        %2386 = vmatpush1.msra.mxu0 0.0
        %2387 = vmatprep.subr.mxu0 %v2227
        %2388 = vmatpush1.msra.mxu0 %v2226
        %2389 = vmatprep.subr.mxu0 %v2221
        %2390 = vmatpush1.msra.mxu0 %v2220
        %2391 = vmatprep.subr.mxu0 %v2215
        %2392 = vmatpush1.msra.mxu0 %v2214
        %2393 = vmatprep.subr.mxu0 %v2209
        %2394 = vmatpush1.msra.mxu0 %v2208
        %2395 = vmatprep.subr.mxu0 0.0
        %2396 = vmatpush2.msra.mxu0 0.0
        %2397 = vmatprep.subr.mxu0 0.0
        %2398 = vmatpush2.msra.mxu0 0.0
        %2399 = vmatprep.subr.mxu0 0.0
        %2400 = vmatpush2.msra.mxu0 0.0
        %2401 = vmatprep.subr.mxu0 0.0
        %2402 = vmatpush2.msra.mxu0 0.0
        %2403 = vmatprep.subr.mxu0 0.0
        %2404 = vmatpush2.msra.mxu0 0.0
        %2405 = vmatprep.subr.mxu0 0.0
        %2406 = vmatpush2.msra.mxu0 0.0
        %2407 = vmatprep.subr.mxu0 0.0
        %2408 = vmatpush2.msra.mxu0 0.0
        %2409 = vmatprep.subr.mxu0 0.0
        %2410 = vmatpush2.msra.mxu0 0.0
        %2411 = vmatprep.subr.mxu0 0.0
        %2412 = vmatpush2.msra.mxu0 0.0
        %2413 = vmatprep.subr.mxu0 0.0
        %2414 = vmatpush2.msra.mxu0 0.0
        %2415 = vmatprep.subr.mxu0 0.0
        %2416 = vmatpush2.msra.mxu0 0.0
        %2417 = vmatprep.subr.mxu0 0.0
        %2418 = vmatpush2.msra.mxu0 0.0
        %2419 = vmatprep.subr.mxu0 0.0
        %2420 = vmatpush2.msra.mxu0 0.0
        %2421 = vmatprep.subr.mxu0 0.0
        %2422 = vmatpush2.msra.mxu0 0.0
        %2423 = vmatprep.subr.mxu0 0.0
        %2424 = vmatpush2.msra.mxu0 0.0
        %2425 = vmatprep.subr.mxu0 0.0
        %2426 = vmatpush2.msra.mxu0 0.0
        %2427 = vmatprep.mubr.f32.mxu0 0.0
        %2428 = vmatmul.mubr.f32.gmra.mxu0 %v2352
        %v2429 = vpop.f32.mrf.mxu0
        %v2430 = vadd.f32 0.0, %v2429
        %v2431 = vpop.f32.mrf.mxu0
        %v2432 = vadd.f32 0.0, %v2431
        %2433 = vmatprep.mubr.f32.mxu0 0.0
        %2434 = vmatmul.mubr.f32.gmra.mxu0 %v2355
        %v2435 = vpop.f32.mrf.mxu0
        %v2436 = vadd.f32 0.0, %v2435
        %v2437 = vpop.f32.mrf.mxu0
        %v2438 = vadd.f32 0.0, %v2437
        %2439 = vmatprep.mubr.f32.mxu0 0.0
        %2440 = vmatmul.mubr.f32.gmra.mxu0 %v2358
        %v2441 = vpop.f32.mrf.mxu0
        %v2442 = vadd.f32 0.0, %v2441
        %v2443 = vpop.f32.mrf.mxu0
        %v2444 = vadd.f32 0.0, %v2443
        %2445 = vmatprep.mubr.f32.mxu0 0.0
        %2446 = vmatmul.mubr.f32.gmra.mxu0 %v2361
        %v2447 = vpop.f32.mrf.mxu0
        %v2448 = vadd.f32 0.0, %v2447
        %v2449 = vpop.f32.mrf.mxu0
        %v2450 = vadd.f32 0.0, %v2449
        %2451 = vdwg.mxu0
        %2452 = vmatprep.subr.mxu0 0.0
        %2453 = vmatpush1.msra.mxu0 0.0
        %2454 = vmatprep.subr.mxu0 0.0
        %2455 = vmatpush1.msra.mxu0 0.0
        %2456 = vmatprep.subr.mxu0 0.0
        %2457 = vmatpush1.msra.mxu0 0.0
        %2458 = vmatprep.subr.mxu0 0.0
        %2459 = vmatpush1.msra.mxu0 0.0
        %2460 = vmatprep.subr.mxu0 0.0
        %2461 = vmatpush1.msra.mxu0 0.0
        %2462 = vmatprep.subr.mxu0 0.0
        %2463 = vmatpush1.msra.mxu0 0.0
        %2464 = vmatprep.subr.mxu0 0.0
        %2465 = vmatpush1.msra.mxu0 0.0
        %2466 = vmatprep.subr.mxu0 0.0
        %2467 = vmatpush1.msra.mxu0 0.0
        %2468 = vmatprep.subr.mxu0 0.0
        %2469 = vmatpush1.msra.mxu0 0.0
        %2470 = vmatprep.subr.mxu0 0.0
        %2471 = vmatpush1.msra.mxu0 0.0
        %2472 = vmatprep.subr.mxu0 0.0
        %2473 = vmatpush1.msra.mxu0 0.0
        %2474 = vmatprep.subr.mxu0 0.0
        %2475 = vmatpush1.msra.mxu0 0.0
        %2476 = vmatprep.subr.mxu0 %v2229
        %2477 = vmatpush1.msra.mxu0 %v2228
        %2478 = vmatprep.subr.mxu0 %v2223
        %2479 = vmatpush1.msra.mxu0 %v2222
        %2480 = vmatprep.subr.mxu0 %v2217
        %2481 = vmatpush1.msra.mxu0 %v2216
        %2482 = vmatprep.subr.mxu0 %v2211
        %2483 = vmatpush1.msra.mxu0 %v2210
        %2484 = vmatprep.subr.mxu0 0.0
        %2485 = vmatpush2.msra.mxu0 0.0
        %2486 = vmatprep.subr.mxu0 0.0
        %2487 = vmatpush2.msra.mxu0 0.0
        %2488 = vmatprep.subr.mxu0 0.0
        %2489 = vmatpush2.msra.mxu0 0.0
        %2490 = vmatprep.subr.mxu0 0.0
        %2491 = vmatpush2.msra.mxu0 0.0
        %2492 = vmatprep.subr.mxu0 0.0
        %2493 = vmatpush2.msra.mxu0 0.0
        %2494 = vmatprep.subr.mxu0 0.0
        %2495 = vmatpush2.msra.mxu0 0.0
        %2496 = vmatprep.subr.mxu0 0.0
        %2497 = vmatpush2.msra.mxu0 0.0
        %2498 = vmatprep.subr.mxu0 0.0
        %2499 = vmatpush2.msra.mxu0 0.0
        %2500 = vmatprep.subr.mxu0 0.0
        %2501 = vmatpush2.msra.mxu0 0.0
        %2502 = vmatprep.subr.mxu0 0.0
        %2503 = vmatpush2.msra.mxu0 0.0
        %2504 = vmatprep.subr.mxu0 0.0
        %2505 = vmatpush2.msra.mxu0 0.0
        %2506 = vmatprep.subr.mxu0 0.0
        %2507 = vmatpush2.msra.mxu0 0.0
        %2508 = vmatprep.subr.mxu0 0.0
        %2509 = vmatpush2.msra.mxu0 0.0
        %2510 = vmatprep.subr.mxu0 0.0
        %2511 = vmatpush2.msra.mxu0 0.0
        %2512 = vmatprep.subr.mxu0 0.0
        %2513 = vmatpush2.msra.mxu0 0.0
        %2514 = vmatprep.subr.mxu0 0.0
        %2515 = vmatpush2.msra.mxu0 0.0
        %2516 = vmatprep.mubr.f32.mxu0 0.0
        %2517 = vmatmul.mubr.f32.gmra.mxu0 %v2352
        %v2518 = vpop.f32.mrf.mxu0
        %v2519 = vadd.f32 0.0, %v2518
        %v2520 = vpop.f32.mrf.mxu0
        %v2521 = vadd.f32 0.0, %v2520
        %2522 = vmatprep.mubr.f32.mxu0 0.0
        %2523 = vmatmul.mubr.f32.gmra.mxu0 %v2355
        %v2524 = vpop.f32.mrf.mxu0
        %v2525 = vadd.f32 0.0, %v2524
        %v2526 = vpop.f32.mrf.mxu0
        %v2527 = vadd.f32 0.0, %v2526
        %2528 = vmatprep.mubr.f32.mxu0 0.0
        %2529 = vmatmul.mubr.f32.gmra.mxu0 %v2358
        %v2530 = vpop.f32.mrf.mxu0
        %v2531 = vadd.f32 0.0, %v2530
        %v2532 = vpop.f32.mrf.mxu0
        %v2533 = vadd.f32 0.0, %v2532
        %2534 = vmatprep.mubr.f32.mxu0 0.0
        %2535 = vmatmul.mubr.f32.gmra.mxu0 %v2361
        %v2536 = vpop.f32.mrf.mxu0
        %v2537 = vadd.f32 0.0, %v2536
        %v2538 = vpop.f32.mrf.mxu0
        %v2539 = vadd.f32 0.0, %v2538
        %2540 = vdwg.mxu0
        %2541 = vmatprep.subr.mxu0 0.0
        %2542 = vmatpush1.msra.mxu0 0.0
        %2543 = vmatprep.subr.mxu0 0.0
        %2544 = vmatpush1.msra.mxu0 0.0
        %2545 = vmatprep.subr.mxu0 0.0
        %2546 = vmatpush1.msra.mxu0 0.0
        %2547 = vmatprep.subr.mxu0 0.0
        %2548 = vmatpush1.msra.mxu0 0.0
        %2549 = vmatprep.subr.mxu0 0.0
        %2550 = vmatpush1.msra.mxu0 0.0
        %2551 = vmatprep.subr.mxu0 0.0
        %2552 = vmatpush1.msra.mxu0 0.0
        %2553 = vmatprep.subr.mxu0 0.0
        %2554 = vmatpush1.msra.mxu0 0.0
        %2555 = vmatprep.subr.mxu0 0.0
        %2556 = vmatpush1.msra.mxu0 0.0
        %2557 = vmatprep.subr.mxu0 0.0
        %2558 = vmatpush1.msra.mxu0 0.0
        %2559 = vmatprep.subr.mxu0 0.0
        %2560 = vmatpush1.msra.mxu0 0.0
        %2561 = vmatprep.subr.mxu0 0.0
        %2562 = vmatpush1.msra.mxu0 0.0
        %2563 = vmatprep.subr.mxu0 0.0
        %2564 = vmatpush1.msra.mxu0 0.0
        %2565 = vmatprep.subr.mxu0 %v2231
        %2566 = vmatpush1.msra.mxu0 %v2230
        %2567 = vmatprep.subr.mxu0 %v2225
        %2568 = vmatpush1.msra.mxu0 %v2224
        %2569 = vmatprep.subr.mxu0 %v2219
        %2570 = vmatpush1.msra.mxu0 %v2218
        %2571 = vmatprep.subr.mxu0 %v2213
        %2572 = vmatpush1.msra.mxu0 %v2212
        %2573 = vmatprep.subr.mxu0 0.0
        %2574 = vmatpush2.msra.mxu0 0.0
        %2575 = vmatprep.subr.mxu0 0.0
        %2576 = vmatpush2.msra.mxu0 0.0
        %2577 = vmatprep.subr.mxu0 0.0
        %2578 = vmatpush2.msra.mxu0 0.0
        %2579 = vmatprep.subr.mxu0 0.0
        %2580 = vmatpush2.msra.mxu0 0.0
        %2581 = vmatprep.subr.mxu0 0.0
        %2582 = vmatpush2.msra.mxu0 0.0
        %2583 = vmatprep.subr.mxu0 0.0
        %2584 = vmatpush2.msra.mxu0 0.0
        %2585 = vmatprep.subr.mxu0 0.0
        %2586 = vmatpush2.msra.mxu0 0.0
        %2587 = vmatprep.subr.mxu0 0.0
        %2588 = vmatpush2.msra.mxu0 0.0
        %2589 = vmatprep.subr.mxu0 0.0
        %2590 = vmatpush2.msra.mxu0 0.0
        %2591 = vmatprep.subr.mxu0 0.0
        %2592 = vmatpush2.msra.mxu0 0.0
        %2593 = vmatprep.subr.mxu0 0.0
        %2594 = vmatpush2.msra.mxu0 0.0
        %2595 = vmatprep.subr.mxu0 0.0
        %2596 = vmatpush2.msra.mxu0 0.0
        %2597 = vmatprep.subr.mxu0 0.0
        %2598 = vmatpush2.msra.mxu0 0.0
        %2599 = vmatprep.subr.mxu0 0.0
        %2600 = vmatpush2.msra.mxu0 0.0
        %2601 = vmatprep.subr.mxu0 0.0
        %2602 = vmatpush2.msra.mxu0 0.0
        %2603 = vmatprep.subr.mxu0 0.0
        %2604 = vmatpush2.msra.mxu0 0.0
        %2605 = vmatprep.mubr.f32.mxu0 0.0
        %2606 = vmatmul.mubr.f32.gmra.mxu0 %v2352
        %v2607 = vpop.f32.mrf.mxu0
        %v2608 = vadd.f32 0.0, %v2607
        %v2609 = vpop.f32.mrf.mxu0
        %v2610 = vadd.f32 0.0, %v2609
        %2611 = vmatprep.mubr.f32.mxu0 0.0
        %2612 = vmatmul.mubr.f32.gmra.mxu0 %v2355
        %v2613 = vpop.f32.mrf.mxu0
        %v2614 = vadd.f32 0.0, %v2613
        %v2615 = vpop.f32.mrf.mxu0
        %v2616 = vadd.f32 0.0, %v2615
        %2617 = vmatprep.mubr.f32.mxu0 0.0
        %2618 = vmatmul.mubr.f32.gmra.mxu0 %v2358
        %v2619 = vpop.f32.mrf.mxu0
        %v2620 = vadd.f32 0.0, %v2619
        %v2621 = vpop.f32.mrf.mxu0
        %v2622 = vadd.f32 0.0, %v2621
        %2623 = vmatprep.mubr.f32.mxu0 0.0
        %2624 = vmatmul.mubr.f32.gmra.mxu0 %v2361
        %v2625 = vpop.f32.mrf.mxu0
        %v2626 = vadd.f32 0.0, %v2625
        %v2627 = vpop.f32.mrf.mxu0
        %v2628 = vadd.f32 0.0, %v2627
        %2629 = vdwg.mxu0
        %v2630 = vadd.f32 %v2047, %v2430
        %v2631 = vadd.f32 %v2048, %v2432
        %v2632 = vadd.f32 %v2049, %v2519
        %v2633 = vadd.f32 %v2050, %v2521
        %v2634 = vadd.f32 %v2051, %v2608
        %v2635 = vadd.f32 %v2052, %v2610
        %v2636 = vadd.f32 %v2053, %v2436
        %v2637 = vadd.f32 %v2054, %v2438
        %v2638 = vadd.f32 %v2055, %v2525
        %v2639 = vadd.f32 %v2056, %v2527
        %v2640 = vadd.f32 %v2057, %v2614
        %v2641 = vadd.f32 %v2058, %v2616
        %v2642 = vadd.f32 %v2059, %v2442
        %v2643 = vadd.f32 %v2060, %v2444
        %v2644 = vadd.f32 %v2061, %v2531
        %v2645 = vadd.f32 %v2062, %v2533
        %v2646 = vadd.f32 %v2063, %v2620
        %v2647 = vadd.f32 %v2064, %v2622
        %v2648 = vadd.f32 %v2065, %v2448
        %v2649 = vadd.f32 %v2066, %v2450
        %v2650 = vadd.f32 %v2067, %v2537
        %v2651 = vadd.f32 %v2068, %v2539
        %v2652 = vadd.f32 %v2069, %v2626
        %v2653 = vadd.f32 %v2070, %v2628
        %2654 = vrot.lane.b32.xlu0 %v422, 1
        %v2655 = vpop.permute.xlu0 %2654
        %2656 = vrot.lane.b32.xlu0 %v424, 1
        %v2657 = vpop.permute.xlu0 %2656
        %2658 = vrot.lane.b32.xlu0 %v426, 1
        %v2659 = vpop.permute.xlu0 %2658
        %2660 = vrot.lane.b32.xlu0 %v428, 1
        %v2661 = vpop.permute.xlu0 %2660
        %2662 = vrot.lane.b32.xlu0 %v423, 1
        %v2663 = vpop.permute.xlu0 %2662
        %2664 = vrot.lane.b32.xlu0 %v425, 1
        %v2665 = vpop.permute.xlu0 %2664
        %2666 = vrot.lane.b32.xlu0 %v427, 1
        %v2667 = vpop.permute.xlu0 %2666
        %2668 = vrot.lane.b32.xlu0 %v429, 1
        %v2669 = vpop.permute.xlu0 %2668
        %vm2670 = vcmp.lt.s32.totalorder %v667, 1
        %v2671 = vsel %vm2670, %v2655, %v2663
        %v2672 = vsel %vm2670, %v2657, %v2665
        %v2673 = vsel %vm2670, %v2659, %v2667
        %v2674 = vsel %vm2670, %v2661, %v2669
        %v2675 = vsel %vm2670, %v2663, %v2655
        %v2676 = vsel %vm2670, %v2665, %v2657
        %v2677 = vsel %vm2670, %v2667, %v2659
        %v2678 = vsel %vm2670, %v2669, %v2661
        %v2679 = vlaneseq
        %v2680 = vshrl.u32 %v2679, 7
        %v2681 = vsub.s32 3, %v2680
        %v2682 = vrot.slane %v504, %v2681
        %v2683 = vlaneseq
        %v2684 = vshrl.u32 %v2683, 7
        %v2685 = vsub.s32 3, %v2684
        %v2686 = vrot.slane %v505, %v2685
        %v2687 = vmul.f32 %v2675, %v2682
        %v2688 = vmul.f32 %v2671, %v2686
        %v2689 = vmul.f32 %v2676, %v2682
        %v2690 = vmul.f32 %v2672, %v2686
        %v2691 = vmul.f32 %v2677, %v2682
        %v2692 = vmul.f32 %v2673, %v2686
        %v2693 = vmul.f32 %v2678, %v2682
        %v2694 = vmul.f32 %v2674, %v2686
        %2695 = vrot.lane.b32.xlu0 %v474, 1
        %v2696 = vpop.permute.xlu0 %2695
        %2697 = vrot.lane.b32.xlu0 %v480, 1
        %v2698 = vpop.permute.xlu0 %2697
        %2699 = vrot.lane.b32.xlu0 %v486, 1
        %v2700 = vpop.permute.xlu0 %2699
        %2701 = vrot.lane.b32.xlu0 %v492, 1
        %v2702 = vpop.permute.xlu0 %2701
        %2703 = vrot.lane.b32.xlu0 %v475, 1
        %v2704 = vpop.permute.xlu0 %2703
        %2705 = vrot.lane.b32.xlu0 %v481, 1
        %v2706 = vpop.permute.xlu0 %2705
        %2707 = vrot.lane.b32.xlu0 %v487, 1
        %v2708 = vpop.permute.xlu0 %2707
        %2709 = vrot.lane.b32.xlu0 %v493, 1
        %v2710 = vpop.permute.xlu0 %2709
        %2711 = vrot.lane.b32.xlu0 %v476, 1
        %v2712 = vpop.permute.xlu0 %2711
        %2713 = vrot.lane.b32.xlu0 %v482, 1
        %v2714 = vpop.permute.xlu0 %2713
        %2715 = vrot.lane.b32.xlu0 %v488, 1
        %v2716 = vpop.permute.xlu0 %2715
        %2717 = vrot.lane.b32.xlu0 %v494, 1
        %v2718 = vpop.permute.xlu0 %2717
        %2719 = vrot.lane.b32.xlu0 %v477, 1
        %v2720 = vpop.permute.xlu0 %2719
        %2721 = vrot.lane.b32.xlu0 %v483, 1
        %v2722 = vpop.permute.xlu0 %2721
        %2723 = vrot.lane.b32.xlu0 %v489, 1
        %v2724 = vpop.permute.xlu0 %2723
        %2725 = vrot.lane.b32.xlu0 %v495, 1
        %v2726 = vpop.permute.xlu0 %2725
        %2727 = vrot.lane.b32.xlu0 %v478, 1
        %v2728 = vpop.permute.xlu0 %2727
        %2729 = vrot.lane.b32.xlu0 %v484, 1
        %v2730 = vpop.permute.xlu0 %2729
        %2731 = vrot.lane.b32.xlu0 %v490, 1
        %v2732 = vpop.permute.xlu0 %2731
        %2733 = vrot.lane.b32.xlu0 %v496, 1
        %v2734 = vpop.permute.xlu0 %2733
        %2735 = vrot.lane.b32.xlu0 %v479, 1
        %v2736 = vpop.permute.xlu0 %2735
        %2737 = vrot.lane.b32.xlu0 %v485, 1
        %v2738 = vpop.permute.xlu0 %2737
        %2739 = vrot.lane.b32.xlu0 %v491, 1
        %v2740 = vpop.permute.xlu0 %2739
        %2741 = vrot.lane.b32.xlu0 %v497, 1
        %v2742 = vpop.permute.xlu0 %2741
        %v2743 = vsel %vm2670, %v2728, %v2736
        %v2744 = vsel %vm2670, %v2730, %v2738
        %v2745 = vsel %vm2670, %v2732, %v2740
        %v2746 = vsel %vm2670, %v2734, %v2742
        %v2747 = vsel %vm2670, %v2720, %v2728
        %v2748 = vsel %vm2670, %v2722, %v2730
        %v2749 = vsel %vm2670, %v2724, %v2732
        %v2750 = vsel %vm2670, %v2726, %v2734
        %v2751 = vsel %vm2670, %v2712, %v2720
        %v2752 = vsel %vm2670, %v2714, %v2722
        %v2753 = vsel %vm2670, %v2716, %v2724
        %v2754 = vsel %vm2670, %v2718, %v2726
        %v2755 = vsel %vm2670, %v2704, %v2712
        %v2756 = vsel %vm2670, %v2706, %v2714
        %v2757 = vsel %vm2670, %v2708, %v2716
        %v2758 = vsel %vm2670, %v2710, %v2718
        %v2759 = vsel %vm2670, %v2696, %v2704
        %v2760 = vsel %vm2670, %v2698, %v2706
        %v2761 = vsel %vm2670, %v2700, %v2708
        %v2762 = vsel %vm2670, %v2702, %v2710
        %v2763 = vsel %vm2670, %v2736, %v2696
        %v2764 = vsel %vm2670, %v2738, %v2698
        %v2765 = vsel %vm2670, %v2740, %v2700
        %v2766 = vsel %vm2670, %v2742, %v2702
        %v2767 = vlaneseq
        %v2768 = vshrl.u32 %v2767, 7
        %v2769 = vsub.s32 3, %v2768
        %v2770 = vrot.slane %v498, %v2769
        %v2771 = vlaneseq
        %v2772 = vshrl.u32 %v2771, 7
        %v2773 = vsub.s32 3, %v2772
        %v2774 = vrot.slane %v499, %v2773
        %v2775 = vlaneseq
        %v2776 = vshrl.u32 %v2775, 7
        %v2777 = vsub.s32 3, %v2776
        %v2778 = vrot.slane %v500, %v2777
        %v2779 = vlaneseq
        %v2780 = vshrl.u32 %v2779, 7
        %v2781 = vsub.s32 3, %v2780
        %v2782 = vrot.slane %v501, %v2781
        %v2783 = vlaneseq
        %v2784 = vshrl.u32 %v2783, 7
        %v2785 = vsub.s32 3, %v2784
        %v2786 = vrot.slane %v502, %v2785
        %v2787 = vlaneseq
        %v2788 = vshrl.u32 %v2787, 7
        %v2789 = vsub.s32 3, %v2788
        %v2790 = vrot.slane %v503, %v2789
        %v2791 = vmul.f32 %v2763, %v2770
        %v2792 = vmul.f32 %v2759, %v2774
        %v2793 = vmul.f32 %v2755, %v2778
        %v2794 = vmul.f32 %v2751, %v2782
        %v2795 = vmul.f32 %v2747, %v2786
        %v2796 = vmul.f32 %v2743, %v2790
        %v2797 = vmul.f32 %v2764, %v2770
        %v2798 = vmul.f32 %v2760, %v2774
        %v2799 = vmul.f32 %v2756, %v2778
        %v2800 = vmul.f32 %v2752, %v2782
        %v2801 = vmul.f32 %v2748, %v2786
        %v2802 = vmul.f32 %v2744, %v2790
        %v2803 = vmul.f32 %v2765, %v2770
        %v2804 = vmul.f32 %v2761, %v2774
        %v2805 = vmul.f32 %v2757, %v2778
        %v2806 = vmul.f32 %v2753, %v2782
        %v2807 = vmul.f32 %v2749, %v2786
        %v2808 = vmul.f32 %v2745, %v2790
        %v2809 = vmul.f32 %v2766, %v2770
        %v2810 = vmul.f32 %v2762, %v2774
        %v2811 = vmul.f32 %v2758, %v2778
        %v2812 = vmul.f32 %v2754, %v2782
        %v2813 = vmul.f32 %v2750, %v2786
        %v2814 = vmul.f32 %v2746, %v2790
        %s2815 = scalar_lea.vmem [#allocation8], 96
        %v2816 = vld [vmem:[%s2815] sm:$0xff]
        %v2817 = vld [vmem:[%s2815 + $0x8] sm:$0xff]
        %v2818 = vld [vmem:[%s2815 + $0x10] sm:$0xff]
        %v2819 = vld [vmem:[%s2815 + $0x18] sm:$0xff]
        %v2821 = vsel %vm515, %v2816, 0
        %v2824 = vsel %vm515, %v2817, 0
        %v2827 = vsel %vm515, %v2818, 0
        %v2830 = vsel %vm515, %v2819, 0
        %2832 = vmatprep.subr.mxu0 0.0
        %2833 = vmatpush1.msra.mxu0 0.0
        %2834 = vmatprep.subr.mxu0 0.0
        %2835 = vmatpush1.msra.mxu0 0.0
        %2836 = vmatprep.subr.mxu0 0.0
        %2837 = vmatpush1.msra.mxu0 0.0
        %2838 = vmatprep.subr.mxu0 0.0
        %2839 = vmatpush1.msra.mxu0 0.0
        %2840 = vmatprep.subr.mxu0 0.0
        %2841 = vmatpush1.msra.mxu0 0.0
        %2842 = vmatprep.subr.mxu0 0.0
        %2843 = vmatpush1.msra.mxu0 0.0
        %2844 = vmatprep.subr.mxu0 0.0
        %2845 = vmatpush1.msra.mxu0 0.0
        %2846 = vmatprep.subr.mxu0 0.0
        %2847 = vmatpush1.msra.mxu0 0.0
        %2848 = vmatprep.subr.mxu0 0.0
        %2849 = vmatpush1.msra.mxu0 0.0
        %2850 = vmatprep.subr.mxu0 0.0
        %2851 = vmatpush1.msra.mxu0 0.0
        %2852 = vmatprep.subr.mxu0 0.0
        %2853 = vmatpush1.msra.mxu0 0.0
        %2854 = vmatprep.subr.mxu0 0.0
        %2855 = vmatpush1.msra.mxu0 0.0
        %2856 = vmatprep.subr.mxu0 %v2694
        %2857 = vmatpush1.msra.mxu0 %v2693
        %2858 = vmatprep.subr.mxu0 %v2692
        %2859 = vmatpush1.msra.mxu0 %v2691
        %2860 = vmatprep.subr.mxu0 %v2690
        %2861 = vmatpush1.msra.mxu0 %v2689
        %2862 = vmatprep.subr.mxu0 %v2688
        %2863 = vmatpush1.msra.mxu0 %v2687
        %2864 = vmatprep.subr.mxu0 0.0
        %2865 = vmatpush2.msra.mxu0 0.0
        %2866 = vmatprep.subr.mxu0 0.0
        %2867 = vmatpush2.msra.mxu0 0.0
        %2868 = vmatprep.subr.mxu0 0.0
        %2869 = vmatpush2.msra.mxu0 0.0
        %2870 = vmatprep.subr.mxu0 0.0
        %2871 = vmatpush2.msra.mxu0 0.0
        %2872 = vmatprep.subr.mxu0 0.0
        %2873 = vmatpush2.msra.mxu0 0.0
        %2874 = vmatprep.subr.mxu0 0.0
        %2875 = vmatpush2.msra.mxu0 0.0
        %2876 = vmatprep.subr.mxu0 0.0
        %2877 = vmatpush2.msra.mxu0 0.0
        %2878 = vmatprep.subr.mxu0 0.0
        %2879 = vmatpush2.msra.mxu0 0.0
        %2880 = vmatprep.subr.mxu0 0.0
        %2881 = vmatpush2.msra.mxu0 0.0
        %2882 = vmatprep.subr.mxu0 0.0
        %2883 = vmatpush2.msra.mxu0 0.0
        %2884 = vmatprep.subr.mxu0 0.0
        %2885 = vmatpush2.msra.mxu0 0.0
        %2886 = vmatprep.subr.mxu0 0.0
        %2887 = vmatpush2.msra.mxu0 0.0
        %2888 = vmatprep.subr.mxu0 0.0
        %2889 = vmatpush2.msra.mxu0 0.0
        %2890 = vmatprep.subr.mxu0 0.0
        %2891 = vmatpush2.msra.mxu0 0.0
        %2892 = vmatprep.subr.mxu0 0.0
        %2893 = vmatpush2.msra.mxu0 0.0
        %2894 = vmatprep.subr.mxu0 0.0
        %2895 = vmatpush2.msra.mxu0 0.0
        %2896 = vmatprep.mubr.f32.mxu0 0.0
        %2897 = vmatmul.mubr.f32.gmra.mxu0 %v2821
        %v2898 = vpop.f32.mrf.mxu0
        %v2899 = vadd.f32 0.0, %v2898
        %v2900 = vpop.f32.mrf.mxu0
        %v2901 = vadd.f32 0.0, %v2900
        %2902 = vmatprep.mubr.f32.mxu0 0.0
        %2903 = vmatmul.mubr.f32.gmra.mxu0 %v2824
        %v2904 = vpop.f32.mrf.mxu0
        %v2905 = vadd.f32 0.0, %v2904
        %v2906 = vpop.f32.mrf.mxu0
        %v2907 = vadd.f32 0.0, %v2906
        %2908 = vmatprep.mubr.f32.mxu0 0.0
        %2909 = vmatmul.mubr.f32.gmra.mxu0 %v2827
        %v2910 = vpop.f32.mrf.mxu0
        %v2911 = vadd.f32 0.0, %v2910
        %v2912 = vpop.f32.mrf.mxu0
        %v2913 = vadd.f32 0.0, %v2912
        %2914 = vmatprep.mubr.f32.mxu0 0.0
        %2915 = vmatmul.mubr.f32.gmra.mxu0 %v2830
        %v2916 = vpop.f32.mrf.mxu0
        %v2917 = vadd.f32 0.0, %v2916
        %v2918 = vpop.f32.mrf.mxu0
        %v2919 = vadd.f32 0.0, %v2918
        %2920 = vdwg.mxu0
        %v2921 = vadd.f32 %v2338, %v2899
        %v2922 = vadd.f32 %v2339, %v2901
        %v2923 = vadd.f32 %v2340, %v2905
        %v2924 = vadd.f32 %v2341, %v2907
        %v2925 = vadd.f32 %v2342, %v2911
        %v2926 = vadd.f32 %v2343, %v2913
        %v2927 = vadd.f32 %v2344, %v2917
        %v2928 = vadd.f32 %v2345, %v2919
        %s2929 = scalar_lea.vmem [#allocation10], 96
        %v2930 = vld [vmem:[%s2929] sm:$0xff]
        %v2931 = vld [vmem:[%s2929 + $0x8] sm:$0xff]
        %v2932 = vld [vmem:[%s2929 + $0x10] sm:$0xff]
        %v2933 = vld [vmem:[%s2929 + $0x18] sm:$0xff]
        %v2935 = vsel %vm515, %v2930, 0
        %v2938 = vsel %vm515, %v2931, 0
        %v2941 = vsel %vm515, %v2932, 0
        %v2944 = vsel %vm515, %v2933, 0
        %2946 = vmatprep.subr.mxu0 0.0
        %2947 = vmatpush1.msra.mxu0 0.0
        %2948 = vmatprep.subr.mxu0 0.0
        %2949 = vmatpush1.msra.mxu0 0.0
        %2950 = vmatprep.subr.mxu0 0.0
        %2951 = vmatpush1.msra.mxu0 0.0
        %2952 = vmatprep.subr.mxu0 0.0
        %2953 = vmatpush1.msra.mxu0 0.0
        %2954 = vmatprep.subr.mxu0 0.0
        %2955 = vmatpush1.msra.mxu0 0.0
        %2956 = vmatprep.subr.mxu0 0.0
        %2957 = vmatpush1.msra.mxu0 0.0
        %2958 = vmatprep.subr.mxu0 0.0
        %2959 = vmatpush1.msra.mxu0 0.0
        %2960 = vmatprep.subr.mxu0 0.0
        %2961 = vmatpush1.msra.mxu0 0.0
        %2962 = vmatprep.subr.mxu0 0.0
        %2963 = vmatpush1.msra.mxu0 0.0
        %2964 = vmatprep.subr.mxu0 0.0
        %2965 = vmatpush1.msra.mxu0 0.0
        %2966 = vmatprep.subr.mxu0 0.0
        %2967 = vmatpush1.msra.mxu0 0.0
        %2968 = vmatprep.subr.mxu0 0.0
        %2969 = vmatpush1.msra.mxu0 0.0
        %2970 = vmatprep.subr.mxu0 %v2810
        %2971 = vmatpush1.msra.mxu0 %v2809
        %2972 = vmatprep.subr.mxu0 %v2804
        %2973 = vmatpush1.msra.mxu0 %v2803
        %2974 = vmatprep.subr.mxu0 %v2798
        %2975 = vmatpush1.msra.mxu0 %v2797
        %2976 = vmatprep.subr.mxu0 %v2792
        %2977 = vmatpush1.msra.mxu0 %v2791
        %2978 = vmatprep.subr.mxu0 0.0
        %2979 = vmatpush2.msra.mxu0 0.0
        %2980 = vmatprep.subr.mxu0 0.0
        %2981 = vmatpush2.msra.mxu0 0.0
        %2982 = vmatprep.subr.mxu0 0.0
        %2983 = vmatpush2.msra.mxu0 0.0
        %2984 = vmatprep.subr.mxu0 0.0
        %2985 = vmatpush2.msra.mxu0 0.0
        %2986 = vmatprep.subr.mxu0 0.0
        %2987 = vmatpush2.msra.mxu0 0.0
        %2988 = vmatprep.subr.mxu0 0.0
        %2989 = vmatpush2.msra.mxu0 0.0
        %2990 = vmatprep.subr.mxu0 0.0
        %2991 = vmatpush2.msra.mxu0 0.0
        %2992 = vmatprep.subr.mxu0 0.0
        %2993 = vmatpush2.msra.mxu0 0.0
        %2994 = vmatprep.subr.mxu0 0.0
        %2995 = vmatpush2.msra.mxu0 0.0
        %2996 = vmatprep.subr.mxu0 0.0
        %2997 = vmatpush2.msra.mxu0 0.0
        %2998 = vmatprep.subr.mxu0 0.0
        %2999 = vmatpush2.msra.mxu0 0.0
        %3000 = vmatprep.subr.mxu0 0.0
        %3001 = vmatpush2.msra.mxu0 0.0
        %3002 = vmatprep.subr.mxu0 0.0
        %3003 = vmatpush2.msra.mxu0 0.0
        %3004 = vmatprep.subr.mxu0 0.0
        %3005 = vmatpush2.msra.mxu0 0.0
        %3006 = vmatprep.subr.mxu0 0.0
        %3007 = vmatpush2.msra.mxu0 0.0
        %3008 = vmatprep.subr.mxu0 0.0
        %3009 = vmatpush2.msra.mxu0 0.0
        %3010 = vmatprep.mubr.f32.mxu0 0.0
        %3011 = vmatmul.mubr.f32.gmra.mxu0 %v2935
        %v3012 = vpop.f32.mrf.mxu0
        %v3013 = vadd.f32 0.0, %v3012
        %v3014 = vpop.f32.mrf.mxu0
        %v3015 = vadd.f32 0.0, %v3014
        %3016 = vmatprep.mubr.f32.mxu0 0.0
        %3017 = vmatmul.mubr.f32.gmra.mxu0 %v2938
        %v3018 = vpop.f32.mrf.mxu0
        %v3019 = vadd.f32 0.0, %v3018
        %v3020 = vpop.f32.mrf.mxu0
        %v3021 = vadd.f32 0.0, %v3020
        %3022 = vmatprep.mubr.f32.mxu0 0.0
        %3023 = vmatmul.mubr.f32.gmra.mxu0 %v2941
        %v3024 = vpop.f32.mrf.mxu0
        %v3025 = vadd.f32 0.0, %v3024
        %v3026 = vpop.f32.mrf.mxu0
        %v3027 = vadd.f32 0.0, %v3026
        %3028 = vmatprep.mubr.f32.mxu0 0.0
        %3029 = vmatmul.mubr.f32.gmra.mxu0 %v2944
        %v3030 = vpop.f32.mrf.mxu0
        %v3031 = vadd.f32 0.0, %v3030
        %v3032 = vpop.f32.mrf.mxu0
        %v3033 = vadd.f32 0.0, %v3032
        %3034 = vdwg.mxu0
        %3035 = vmatprep.subr.mxu0 0.0
        %3036 = vmatpush1.msra.mxu0 0.0
        %3037 = vmatprep.subr.mxu0 0.0
        %3038 = vmatpush1.msra.mxu0 0.0
        %3039 = vmatprep.subr.mxu0 0.0
        %3040 = vmatpush1.msra.mxu0 0.0
        %3041 = vmatprep.subr.mxu0 0.0
        %3042 = vmatpush1.msra.mxu0 0.0
        %3043 = vmatprep.subr.mxu0 0.0
        %3044 = vmatpush1.msra.mxu0 0.0
        %3045 = vmatprep.subr.mxu0 0.0
        %3046 = vmatpush1.msra.mxu0 0.0
        %3047 = vmatprep.subr.mxu0 0.0
        %3048 = vmatpush1.msra.mxu0 0.0
        %3049 = vmatprep.subr.mxu0 0.0
        %3050 = vmatpush1.msra.mxu0 0.0
        %3051 = vmatprep.subr.mxu0 0.0
        %3052 = vmatpush1.msra.mxu0 0.0
        %3053 = vmatprep.subr.mxu0 0.0
        %3054 = vmatpush1.msra.mxu0 0.0
        %3055 = vmatprep.subr.mxu0 0.0
        %3056 = vmatpush1.msra.mxu0 0.0
        %3057 = vmatprep.subr.mxu0 0.0
        %3058 = vmatpush1.msra.mxu0 0.0
        %3059 = vmatprep.subr.mxu0 %v2812
        %3060 = vmatpush1.msra.mxu0 %v2811
        %3061 = vmatprep.subr.mxu0 %v2806
        %3062 = vmatpush1.msra.mxu0 %v2805
        %3063 = vmatprep.subr.mxu0 %v2800
        %3064 = vmatpush1.msra.mxu0 %v2799
        %3065 = vmatprep.subr.mxu0 %v2794
        %3066 = vmatpush1.msra.mxu0 %v2793
        %3067 = vmatprep.subr.mxu0 0.0
        %3068 = vmatpush2.msra.mxu0 0.0
        %3069 = vmatprep.subr.mxu0 0.0
        %3070 = vmatpush2.msra.mxu0 0.0
        %3071 = vmatprep.subr.mxu0 0.0
        %3072 = vmatpush2.msra.mxu0 0.0
        %3073 = vmatprep.subr.mxu0 0.0
        %3074 = vmatpush2.msra.mxu0 0.0
        %3075 = vmatprep.subr.mxu0 0.0
        %3076 = vmatpush2.msra.mxu0 0.0
        %3077 = vmatprep.subr.mxu0 0.0
        %3078 = vmatpush2.msra.mxu0 0.0
        %3079 = vmatprep.subr.mxu0 0.0
        %3080 = vmatpush2.msra.mxu0 0.0
        %3081 = vmatprep.subr.mxu0 0.0
        %3082 = vmatpush2.msra.mxu0 0.0
        %3083 = vmatprep.subr.mxu0 0.0
        %3084 = vmatpush2.msra.mxu0 0.0
        %3085 = vmatprep.subr.mxu0 0.0
        %3086 = vmatpush2.msra.mxu0 0.0
        %3087 = vmatprep.subr.mxu0 0.0
        %3088 = vmatpush2.msra.mxu0 0.0
        %3089 = vmatprep.subr.mxu0 0.0
        %3090 = vmatpush2.msra.mxu0 0.0
        %3091 = vmatprep.subr.mxu0 0.0
        %3092 = vmatpush2.msra.mxu0 0.0
        %3093 = vmatprep.subr.mxu0 0.0
        %3094 = vmatpush2.msra.mxu0 0.0
        %3095 = vmatprep.subr.mxu0 0.0
        %3096 = vmatpush2.msra.mxu0 0.0
        %3097 = vmatprep.subr.mxu0 0.0
        %3098 = vmatpush2.msra.mxu0 0.0
        %3099 = vmatprep.mubr.f32.mxu0 0.0
        %3100 = vmatmul.mubr.f32.gmra.mxu0 %v2935
        %v3101 = vpop.f32.mrf.mxu0
        %v3102 = vadd.f32 0.0, %v3101
        %v3103 = vpop.f32.mrf.mxu0
        %v3104 = vadd.f32 0.0, %v3103
        %3105 = vmatprep.mubr.f32.mxu0 0.0
        %3106 = vmatmul.mubr.f32.gmra.mxu0 %v2938
        %v3107 = vpop.f32.mrf.mxu0
        %v3108 = vadd.f32 0.0, %v3107
        %v3109 = vpop.f32.mrf.mxu0
        %v3110 = vadd.f32 0.0, %v3109
        %3111 = vmatprep.mubr.f32.mxu0 0.0
        %3112 = vmatmul.mubr.f32.gmra.mxu0 %v2941
        %v3113 = vpop.f32.mrf.mxu0
        %v3114 = vadd.f32 0.0, %v3113
        %v3115 = vpop.f32.mrf.mxu0
        %v3116 = vadd.f32 0.0, %v3115
        %3117 = vmatprep.mubr.f32.mxu0 0.0
        %3118 = vmatmul.mubr.f32.gmra.mxu0 %v2944
        %v3119 = vpop.f32.mrf.mxu0
        %v3120 = vadd.f32 0.0, %v3119
        %v3121 = vpop.f32.mrf.mxu0
        %v3122 = vadd.f32 0.0, %v3121
        %3123 = vdwg.mxu0
        %3124 = vmatprep.subr.mxu0 0.0
        %3125 = vmatpush1.msra.mxu0 0.0
        %3126 = vmatprep.subr.mxu0 0.0
        %3127 = vmatpush1.msra.mxu0 0.0
        %3128 = vmatprep.subr.mxu0 0.0
        %3129 = vmatpush1.msra.mxu0 0.0
        %3130 = vmatprep.subr.mxu0 0.0
        %3131 = vmatpush1.msra.mxu0 0.0
        %3132 = vmatprep.subr.mxu0 0.0
        %3133 = vmatpush1.msra.mxu0 0.0
        %3134 = vmatprep.subr.mxu0 0.0
        %3135 = vmatpush1.msra.mxu0 0.0
        %3136 = vmatprep.subr.mxu0 0.0
        %3137 = vmatpush1.msra.mxu0 0.0
        %3138 = vmatprep.subr.mxu0 0.0
        %3139 = vmatpush1.msra.mxu0 0.0
        %3140 = vmatprep.subr.mxu0 0.0
        %3141 = vmatpush1.msra.mxu0 0.0
        %3142 = vmatprep.subr.mxu0 0.0
        %3143 = vmatpush1.msra.mxu0 0.0
        %3144 = vmatprep.subr.mxu0 0.0
        %3145 = vmatpush1.msra.mxu0 0.0
        %3146 = vmatprep.subr.mxu0 0.0
        %3147 = vmatpush1.msra.mxu0 0.0
        %3148 = vmatprep.subr.mxu0 %v2814
        %3149 = vmatpush1.msra.mxu0 %v2813
        %3150 = vmatprep.subr.mxu0 %v2808
        %3151 = vmatpush1.msra.mxu0 %v2807
        %3152 = vmatprep.subr.mxu0 %v2802
        %3153 = vmatpush1.msra.mxu0 %v2801
        %3154 = vmatprep.subr.mxu0 %v2796
        %3155 = vmatpush1.msra.mxu0 %v2795
        %3156 = vmatprep.subr.mxu0 0.0
        %3157 = vmatpush2.msra.mxu0 0.0
        %3158 = vmatprep.subr.mxu0 0.0
        %3159 = vmatpush2.msra.mxu0 0.0
        %3160 = vmatprep.subr.mxu0 0.0
        %3161 = vmatpush2.msra.mxu0 0.0
        %3162 = vmatprep.subr.mxu0 0.0
        %3163 = vmatpush2.msra.mxu0 0.0
        %3164 = vmatprep.subr.mxu0 0.0
        %3165 = vmatpush2.msra.mxu0 0.0
        %3166 = vmatprep.subr.mxu0 0.0
        %3167 = vmatpush2.msra.mxu0 0.0
        %3168 = vmatprep.subr.mxu0 0.0
        %3169 = vmatpush2.msra.mxu0 0.0
        %3170 = vmatprep.subr.mxu0 0.0
        %3171 = vmatpush2.msra.mxu0 0.0
        %3172 = vmatprep.subr.mxu0 0.0
        %3173 = vmatpush2.msra.mxu0 0.0
        %3174 = vmatprep.subr.mxu0 0.0
        %3175 = vmatpush2.msra.mxu0 0.0
        %3176 = vmatprep.subr.mxu0 0.0
        %3177 = vmatpush2.msra.mxu0 0.0
        %3178 = vmatprep.subr.mxu0 0.0
        %3179 = vmatpush2.msra.mxu0 0.0
        %3180 = vmatprep.subr.mxu0 0.0
        %3181 = vmatpush2.msra.mxu0 0.0
        %3182 = vmatprep.subr.mxu0 0.0
        %3183 = vmatpush2.msra.mxu0 0.0
        %3184 = vmatprep.subr.mxu0 0.0
        %3185 = vmatpush2.msra.mxu0 0.0
        %3186 = vmatprep.subr.mxu0 0.0
        %3187 = vmatpush2.msra.mxu0 0.0
        %3188 = vmatprep.mubr.f32.mxu0 0.0
        %3189 = vmatmul.mubr.f32.gmra.mxu0 %v2935
        %v3190 = vpop.f32.mrf.mxu0
        %v3191 = vadd.f32 0.0, %v3190
        %v3192 = vpop.f32.mrf.mxu0
        %v3193 = vadd.f32 0.0, %v3192
        %3194 = vmatprep.mubr.f32.mxu0 0.0
        %3195 = vmatmul.mubr.f32.gmra.mxu0 %v2938
        %v3196 = vpop.f32.mrf.mxu0
        %v3197 = vadd.f32 0.0, %v3196
        %v3198 = vpop.f32.mrf.mxu0
        %v3199 = vadd.f32 0.0, %v3198
        %3200 = vmatprep.mubr.f32.mxu0 0.0
        %3201 = vmatmul.mubr.f32.gmra.mxu0 %v2941
        %v3202 = vpop.f32.mrf.mxu0
        %v3203 = vadd.f32 0.0, %v3202
        %v3204 = vpop.f32.mrf.mxu0
        %v3205 = vadd.f32 0.0, %v3204
        %3206 = vmatprep.mubr.f32.mxu0 0.0
        %3207 = vmatmul.mubr.f32.gmra.mxu0 %v2944
        %v3208 = vpop.f32.mrf.mxu0
        %v3209 = vadd.f32 0.0, %v3208
        %v3210 = vpop.f32.mrf.mxu0
        %v3211 = vadd.f32 0.0, %v3210
        %3212 = vdwg.mxu0
        %v3213 = vadd.f32 %v2630, %v3013
        %v3214 = vadd.f32 %v2631, %v3015
        %v3215 = vadd.f32 %v2632, %v3102
        %v3216 = vadd.f32 %v2633, %v3104
        %v3217 = vadd.f32 %v2634, %v3191
        %v3218 = vadd.f32 %v2635, %v3193
        %v3219 = vadd.f32 %v2636, %v3019
        %v3220 = vadd.f32 %v2637, %v3021
        %v3221 = vadd.f32 %v2638, %v3108
        %v3222 = vadd.f32 %v2639, %v3110
        %v3223 = vadd.f32 %v2640, %v3197
        %v3224 = vadd.f32 %v2641, %v3199
        %v3225 = vadd.f32 %v2642, %v3025
        %v3226 = vadd.f32 %v2643, %v3027
        %v3227 = vadd.f32 %v2644, %v3114
        %v3228 = vadd.f32 %v2645, %v3116
        %v3229 = vadd.f32 %v2646, %v3203
        %v3230 = vadd.f32 %v2647, %v3205
        %v3231 = vadd.f32 %v2648, %v3031
        %v3232 = vadd.f32 %v2649, %v3033
        %v3233 = vadd.f32 %v2650, %v3120
        %v3234 = vadd.f32 %v2651, %v3122
        %v3235 = vadd.f32 %v2652, %v3209
        %v3236 = vadd.f32 %v2653, %v3211
        %3237 = vrot.lane.b32.xlu0 %v422, 127
        %v3238 = vpop.permute.xlu0 %3237
        %3239 = vrot.lane.b32.xlu0 %v424, 127
        %v3240 = vpop.permute.xlu0 %3239
        %3241 = vrot.lane.b32.xlu0 %v426, 127
        %v3242 = vpop.permute.xlu0 %3241
        %3243 = vrot.lane.b32.xlu0 %v428, 127
        %v3244 = vpop.permute.xlu0 %3243
        %3245 = vrot.lane.b32.xlu0 %v423, 127
        %v3246 = vpop.permute.xlu0 %3245
        %3247 = vrot.lane.b32.xlu0 %v425, 127
        %v3248 = vpop.permute.xlu0 %3247
        %3249 = vrot.lane.b32.xlu0 %v427, 127
        %v3250 = vpop.permute.xlu0 %3249
        %3251 = vrot.lane.b32.xlu0 %v429, 127
        %v3252 = vpop.permute.xlu0 %3251
        %vm3253 = vcmp.lt.s32.totalorder %v667, 127
        %v3254 = vsel %vm3253, %v3238, %v3246
        %v3255 = vsel %vm3253, %v3240, %v3248
        %v3256 = vsel %vm3253, %v3242, %v3250
        %v3257 = vsel %vm3253, %v3244, %v3252
        %v3258 = vsel %vm3253, %v3246, %v3238
        %v3259 = vsel %vm3253, %v3248, %v3240
        %v3260 = vsel %vm3253, %v3250, %v3242
        %v3261 = vsel %vm3253, %v3252, %v3244
        %v3262 = vlaneseq
        %v3263 = vshrl.u32 %v3262, 7
        %v3264 = vsub.s32 4, %v3263
        %v3265 = vrot.slane %v504, %v3264
        %v3266 = vlaneseq
        %v3267 = vshrl.u32 %v3266, 7
        %v3268 = vsub.s32 4, %v3267
        %v3269 = vrot.slane %v505, %v3268
        %v3270 = vmul.f32 %v3254, %v3265
        %v3271 = vmul.f32 %v3258, %v3269
        %v3272 = vmul.f32 %v3255, %v3265
        %v3273 = vmul.f32 %v3259, %v3269
        %v3274 = vmul.f32 %v3256, %v3265
        %v3275 = vmul.f32 %v3260, %v3269
        %v3276 = vmul.f32 %v3257, %v3265
        %v3277 = vmul.f32 %v3261, %v3269
        %3278 = vrot.lane.b32.xlu0 %v474, 127
        %v3279 = vpop.permute.xlu0 %3278
        %3280 = vrot.lane.b32.xlu0 %v480, 127
        %v3281 = vpop.permute.xlu0 %3280
        %3282 = vrot.lane.b32.xlu0 %v486, 127
        %v3283 = vpop.permute.xlu0 %3282
        %3284 = vrot.lane.b32.xlu0 %v492, 127
        %v3285 = vpop.permute.xlu0 %3284
        %3286 = vrot.lane.b32.xlu0 %v475, 127
        %v3287 = vpop.permute.xlu0 %3286
        %3288 = vrot.lane.b32.xlu0 %v481, 127
        %v3289 = vpop.permute.xlu0 %3288
        %3290 = vrot.lane.b32.xlu0 %v487, 127
        %v3291 = vpop.permute.xlu0 %3290
        %3292 = vrot.lane.b32.xlu0 %v493, 127
        %v3293 = vpop.permute.xlu0 %3292
        %3294 = vrot.lane.b32.xlu0 %v476, 127
        %v3295 = vpop.permute.xlu0 %3294
        %3296 = vrot.lane.b32.xlu0 %v482, 127
        %v3297 = vpop.permute.xlu0 %3296
        %3298 = vrot.lane.b32.xlu0 %v488, 127
        %v3299 = vpop.permute.xlu0 %3298
        %3300 = vrot.lane.b32.xlu0 %v494, 127
        %v3301 = vpop.permute.xlu0 %3300
        %3302 = vrot.lane.b32.xlu0 %v477, 127
        %v3303 = vpop.permute.xlu0 %3302
        %3304 = vrot.lane.b32.xlu0 %v483, 127
        %v3305 = vpop.permute.xlu0 %3304
        %3306 = vrot.lane.b32.xlu0 %v489, 127
        %v3307 = vpop.permute.xlu0 %3306
        %3308 = vrot.lane.b32.xlu0 %v495, 127
        %v3309 = vpop.permute.xlu0 %3308
        %3310 = vrot.lane.b32.xlu0 %v478, 127
        %v3311 = vpop.permute.xlu0 %3310
        %3312 = vrot.lane.b32.xlu0 %v484, 127
        %v3313 = vpop.permute.xlu0 %3312
        %3314 = vrot.lane.b32.xlu0 %v490, 127
        %v3315 = vpop.permute.xlu0 %3314
        %3316 = vrot.lane.b32.xlu0 %v496, 127
        %v3317 = vpop.permute.xlu0 %3316
        %3318 = vrot.lane.b32.xlu0 %v479, 127
        %v3319 = vpop.permute.xlu0 %3318
        %3320 = vrot.lane.b32.xlu0 %v485, 127
        %v3321 = vpop.permute.xlu0 %3320
        %3322 = vrot.lane.b32.xlu0 %v491, 127
        %v3323 = vpop.permute.xlu0 %3322
        %3324 = vrot.lane.b32.xlu0 %v497, 127
        %v3325 = vpop.permute.xlu0 %3324
        %v3326 = vsel %vm3253, %v3311, %v3319
        %v3327 = vsel %vm3253, %v3313, %v3321
        %v3328 = vsel %vm3253, %v3315, %v3323
        %v3329 = vsel %vm3253, %v3317, %v3325
        %v3330 = vsel %vm3253, %v3303, %v3311
        %v3331 = vsel %vm3253, %v3305, %v3313
        %v3332 = vsel %vm3253, %v3307, %v3315
        %v3333 = vsel %vm3253, %v3309, %v3317
        %v3334 = vsel %vm3253, %v3295, %v3303
        %v3335 = vsel %vm3253, %v3297, %v3305
        %v3336 = vsel %vm3253, %v3299, %v3307
        %v3337 = vsel %vm3253, %v3301, %v3309
        %v3338 = vsel %vm3253, %v3287, %v3295
        %v3339 = vsel %vm3253, %v3289, %v3297
        %v3340 = vsel %vm3253, %v3291, %v3299
        %v3341 = vsel %vm3253, %v3293, %v3301
        %v3342 = vsel %vm3253, %v3279, %v3287
        %v3343 = vsel %vm3253, %v3281, %v3289
        %v3344 = vsel %vm3253, %v3283, %v3291
        %v3345 = vsel %vm3253, %v3285, %v3293
        %v3346 = vsel %vm3253, %v3319, %v3279
        %v3347 = vsel %vm3253, %v3321, %v3281
        %v3348 = vsel %vm3253, %v3323, %v3283
        %v3349 = vsel %vm3253, %v3325, %v3285
        %v3350 = vlaneseq
        %v3351 = vshrl.u32 %v3350, 7
        %v3352 = vsub.s32 4, %v3351
        %v3353 = vrot.slane %v498, %v3352
        %v3354 = vlaneseq
        %v3355 = vshrl.u32 %v3354, 7
        %v3356 = vsub.s32 4, %v3355
        %v3357 = vrot.slane %v499, %v3356
        %v3358 = vlaneseq
        %v3359 = vshrl.u32 %v3358, 7
        %v3360 = vsub.s32 4, %v3359
        %v3361 = vrot.slane %v500, %v3360
        %v3362 = vlaneseq
        %v3363 = vshrl.u32 %v3362, 7
        %v3364 = vsub.s32 4, %v3363
        %v3365 = vrot.slane %v501, %v3364
        %v3366 = vlaneseq
        %v3367 = vshrl.u32 %v3366, 7
        %v3368 = vsub.s32 4, %v3367
        %v3369 = vrot.slane %v502, %v3368
        %v3370 = vlaneseq
        %v3371 = vshrl.u32 %v3370, 7
        %v3372 = vsub.s32 4, %v3371
        %v3373 = vrot.slane %v503, %v3372
        %v3374 = vmul.f32 %v3342, %v3353
        %v3375 = vmul.f32 %v3338, %v3357
        %v3376 = vmul.f32 %v3334, %v3361
        %v3377 = vmul.f32 %v3330, %v3365
        %v3378 = vmul.f32 %v3326, %v3369
        %v3379 = vmul.f32 %v3346, %v3373
        %v3380 = vmul.f32 %v3343, %v3353
        %v3381 = vmul.f32 %v3339, %v3357
        %v3382 = vmul.f32 %v3335, %v3361
        %v3383 = vmul.f32 %v3331, %v3365
        %v3384 = vmul.f32 %v3327, %v3369
        %v3385 = vmul.f32 %v3347, %v3373
        %v3386 = vmul.f32 %v3344, %v3353
        %v3387 = vmul.f32 %v3340, %v3357
        %v3388 = vmul.f32 %v3336, %v3361
        %v3389 = vmul.f32 %v3332, %v3365
        %v3390 = vmul.f32 %v3328, %v3369
        %v3391 = vmul.f32 %v3348, %v3373
        %v3392 = vmul.f32 %v3345, %v3353
        %v3393 = vmul.f32 %v3341, %v3357
        %v3394 = vmul.f32 %v3337, %v3361
        %v3395 = vmul.f32 %v3333, %v3365
        %v3396 = vmul.f32 %v3329, %v3369
        %v3397 = vmul.f32 %v3349, %v3373
        %s3398 = scalar_lea.vmem [#allocation8], 160
        %v3399 = vld [vmem:[%s3398] sm:$0xff]
        %v3400 = vld [vmem:[%s3398 + $0x8] sm:$0xff]
        %v3401 = vld [vmem:[%s3398 + $0x10] sm:$0xff]
        %v3402 = vld [vmem:[%s3398 + $0x18] sm:$0xff]
        %v3404 = vsel %vm515, %v3399, 0
        %v3407 = vsel %vm515, %v3400, 0
        %v3410 = vsel %vm515, %v3401, 0
        %v3413 = vsel %vm515, %v3402, 0
        %3415 = vmatprep.subr.mxu0 0.0
        %3416 = vmatpush1.msra.mxu0 0.0
        %3417 = vmatprep.subr.mxu0 0.0
        %3418 = vmatpush1.msra.mxu0 0.0
        %3419 = vmatprep.subr.mxu0 0.0
        %3420 = vmatpush1.msra.mxu0 0.0
        %3421 = vmatprep.subr.mxu0 0.0
        %3422 = vmatpush1.msra.mxu0 0.0
        %3423 = vmatprep.subr.mxu0 0.0
        %3424 = vmatpush1.msra.mxu0 0.0
        %3425 = vmatprep.subr.mxu0 0.0
        %3426 = vmatpush1.msra.mxu0 0.0
        %3427 = vmatprep.subr.mxu0 0.0
        %3428 = vmatpush1.msra.mxu0 0.0
        %3429 = vmatprep.subr.mxu0 0.0
        %3430 = vmatpush1.msra.mxu0 0.0
        %3431 = vmatprep.subr.mxu0 0.0
        %3432 = vmatpush1.msra.mxu0 0.0
        %3433 = vmatprep.subr.mxu0 0.0
        %3434 = vmatpush1.msra.mxu0 0.0
        %3435 = vmatprep.subr.mxu0 0.0
        %3436 = vmatpush1.msra.mxu0 0.0
        %3437 = vmatprep.subr.mxu0 0.0
        %3438 = vmatpush1.msra.mxu0 0.0
        %3439 = vmatprep.subr.mxu0 %v3277
        %3440 = vmatpush1.msra.mxu0 %v3276
        %3441 = vmatprep.subr.mxu0 %v3275
        %3442 = vmatpush1.msra.mxu0 %v3274
        %3443 = vmatprep.subr.mxu0 %v3273
        %3444 = vmatpush1.msra.mxu0 %v3272
        %3445 = vmatprep.subr.mxu0 %v3271
        %3446 = vmatpush1.msra.mxu0 %v3270
        %3447 = vmatprep.subr.mxu0 0.0
        %3448 = vmatpush2.msra.mxu0 0.0
        %3449 = vmatprep.subr.mxu0 0.0
        %3450 = vmatpush2.msra.mxu0 0.0
        %3451 = vmatprep.subr.mxu0 0.0
        %3452 = vmatpush2.msra.mxu0 0.0
        %3453 = vmatprep.subr.mxu0 0.0
        %3454 = vmatpush2.msra.mxu0 0.0
        %3455 = vmatprep.subr.mxu0 0.0
        %3456 = vmatpush2.msra.mxu0 0.0
        %3457 = vmatprep.subr.mxu0 0.0
        %3458 = vmatpush2.msra.mxu0 0.0
        %3459 = vmatprep.subr.mxu0 0.0
        %3460 = vmatpush2.msra.mxu0 0.0
        %3461 = vmatprep.subr.mxu0 0.0
        %3462 = vmatpush2.msra.mxu0 0.0
        %3463 = vmatprep.subr.mxu0 0.0
        %3464 = vmatpush2.msra.mxu0 0.0
        %3465 = vmatprep.subr.mxu0 0.0
        %3466 = vmatpush2.msra.mxu0 0.0
        %3467 = vmatprep.subr.mxu0 0.0
        %3468 = vmatpush2.msra.mxu0 0.0
        %3469 = vmatprep.subr.mxu0 0.0
        %3470 = vmatpush2.msra.mxu0 0.0
        %3471 = vmatprep.subr.mxu0 0.0
        %3472 = vmatpush2.msra.mxu0 0.0
        %3473 = vmatprep.subr.mxu0 0.0
        %3474 = vmatpush2.msra.mxu0 0.0
        %3475 = vmatprep.subr.mxu0 0.0
        %3476 = vmatpush2.msra.mxu0 0.0
        %3477 = vmatprep.subr.mxu0 0.0
        %3478 = vmatpush2.msra.mxu0 0.0
        %3479 = vmatprep.mubr.f32.mxu0 0.0
        %3480 = vmatmul.mubr.f32.gmra.mxu0 %v3404
        %v3481 = vpop.f32.mrf.mxu0
        %v3482 = vadd.f32 0.0, %v3481
        %v3483 = vpop.f32.mrf.mxu0
        %v3484 = vadd.f32 0.0, %v3483
        %3485 = vmatprep.mubr.f32.mxu0 0.0
        %3486 = vmatmul.mubr.f32.gmra.mxu0 %v3407
        %v3487 = vpop.f32.mrf.mxu0
        %v3488 = vadd.f32 0.0, %v3487
        %v3489 = vpop.f32.mrf.mxu0
        %v3490 = vadd.f32 0.0, %v3489
        %3491 = vmatprep.mubr.f32.mxu0 0.0
        %3492 = vmatmul.mubr.f32.gmra.mxu0 %v3410
        %v3493 = vpop.f32.mrf.mxu0
        %v3494 = vadd.f32 0.0, %v3493
        %v3495 = vpop.f32.mrf.mxu0
        %v3496 = vadd.f32 0.0, %v3495
        %3497 = vmatprep.mubr.f32.mxu0 0.0
        %3498 = vmatmul.mubr.f32.gmra.mxu0 %v3413
        %v3499 = vpop.f32.mrf.mxu0
        %v3500 = vadd.f32 0.0, %v3499
        %v3501 = vpop.f32.mrf.mxu0
        %v3502 = vadd.f32 0.0, %v3501
        %3503 = vdwg.mxu0
        %v3504 = vadd.f32 %v2921, %v3482
        %v3505 = vadd.f32 %v2922, %v3484
        %v3506 = vadd.f32 %v2923, %v3488
        %v3507 = vadd.f32 %v2924, %v3490
        %v3508 = vadd.f32 %v2925, %v3494
        %v3509 = vadd.f32 %v2926, %v3496
        %v3510 = vadd.f32 %v2927, %v3500
        %v3511 = vadd.f32 %v2928, %v3502
        %s3512 = scalar_lea.vmem [#allocation10], 160
        %v3513 = vld [vmem:[%s3512] sm:$0xff]
        %v3514 = vld [vmem:[%s3512 + $0x8] sm:$0xff]
        %v3515 = vld [vmem:[%s3512 + $0x10] sm:$0xff]
        %v3516 = vld [vmem:[%s3512 + $0x18] sm:$0xff]
        %v3518 = vsel %vm515, %v3513, 0
        %v3521 = vsel %vm515, %v3514, 0
        %v3524 = vsel %vm515, %v3515, 0
        %v3527 = vsel %vm515, %v3516, 0
        %3529 = vmatprep.subr.mxu0 0.0
        %3530 = vmatpush1.msra.mxu0 0.0
        %3531 = vmatprep.subr.mxu0 0.0
        %3532 = vmatpush1.msra.mxu0 0.0
        %3533 = vmatprep.subr.mxu0 0.0
        %3534 = vmatpush1.msra.mxu0 0.0
        %3535 = vmatprep.subr.mxu0 0.0
        %3536 = vmatpush1.msra.mxu0 0.0
        %3537 = vmatprep.subr.mxu0 0.0
        %3538 = vmatpush1.msra.mxu0 0.0
        %3539 = vmatprep.subr.mxu0 0.0
        %3540 = vmatpush1.msra.mxu0 0.0
        %3541 = vmatprep.subr.mxu0 0.0
        %3542 = vmatpush1.msra.mxu0 0.0
        %3543 = vmatprep.subr.mxu0 0.0
        %3544 = vmatpush1.msra.mxu0 0.0
        %3545 = vmatprep.subr.mxu0 0.0
        %3546 = vmatpush1.msra.mxu0 0.0
        %3547 = vmatprep.subr.mxu0 0.0
        %3548 = vmatpush1.msra.mxu0 0.0
        %3549 = vmatprep.subr.mxu0 0.0
        %3550 = vmatpush1.msra.mxu0 0.0
        %3551 = vmatprep.subr.mxu0 0.0
        %3552 = vmatpush1.msra.mxu0 0.0
        %3553 = vmatprep.subr.mxu0 %v3393
        %3554 = vmatpush1.msra.mxu0 %v3392
        %3555 = vmatprep.subr.mxu0 %v3387
        %3556 = vmatpush1.msra.mxu0 %v3386
        %3557 = vmatprep.subr.mxu0 %v3381
        %3558 = vmatpush1.msra.mxu0 %v3380
        %3559 = vmatprep.subr.mxu0 %v3375
        %3560 = vmatpush1.msra.mxu0 %v3374
        %3561 = vmatprep.subr.mxu0 0.0
        %3562 = vmatpush2.msra.mxu0 0.0
        %3563 = vmatprep.subr.mxu0 0.0
        %3564 = vmatpush2.msra.mxu0 0.0
        %3565 = vmatprep.subr.mxu0 0.0
        %3566 = vmatpush2.msra.mxu0 0.0
        %3567 = vmatprep.subr.mxu0 0.0
        %3568 = vmatpush2.msra.mxu0 0.0
        %3569 = vmatprep.subr.mxu0 0.0
        %3570 = vmatpush2.msra.mxu0 0.0
        %3571 = vmatprep.subr.mxu0 0.0
        %3572 = vmatpush2.msra.mxu0 0.0
        %3573 = vmatprep.subr.mxu0 0.0
        %3574 = vmatpush2.msra.mxu0 0.0
        %3575 = vmatprep.subr.mxu0 0.0
        %3576 = vmatpush2.msra.mxu0 0.0
        %3577 = vmatprep.subr.mxu0 0.0
        %3578 = vmatpush2.msra.mxu0 0.0
        %3579 = vmatprep.subr.mxu0 0.0
        %3580 = vmatpush2.msra.mxu0 0.0
        %3581 = vmatprep.subr.mxu0 0.0
        %3582 = vmatpush2.msra.mxu0 0.0
        %3583 = vmatprep.subr.mxu0 0.0
        %3584 = vmatpush2.msra.mxu0 0.0
        %3585 = vmatprep.subr.mxu0 0.0
        %3586 = vmatpush2.msra.mxu0 0.0
        %3587 = vmatprep.subr.mxu0 0.0
        %3588 = vmatpush2.msra.mxu0 0.0
        %3589 = vmatprep.subr.mxu0 0.0
        %3590 = vmatpush2.msra.mxu0 0.0
        %3591 = vmatprep.subr.mxu0 0.0
        %3592 = vmatpush2.msra.mxu0 0.0
        %3593 = vmatprep.mubr.f32.mxu0 0.0
        %3594 = vmatmul.mubr.f32.gmra.mxu0 %v3518
        %v3595 = vpop.f32.mrf.mxu0
        %v3596 = vadd.f32 0.0, %v3595
        %v3597 = vpop.f32.mrf.mxu0
        %v3598 = vadd.f32 0.0, %v3597
        %3599 = vmatprep.mubr.f32.mxu0 0.0
        %3600 = vmatmul.mubr.f32.gmra.mxu0 %v3521
        %v3601 = vpop.f32.mrf.mxu0
        %v3602 = vadd.f32 0.0, %v3601
        %v3603 = vpop.f32.mrf.mxu0
        %v3604 = vadd.f32 0.0, %v3603
        %3605 = vmatprep.mubr.f32.mxu0 0.0
        %3606 = vmatmul.mubr.f32.gmra.mxu0 %v3524
        %v3607 = vpop.f32.mrf.mxu0
        %v3608 = vadd.f32 0.0, %v3607
        %v3609 = vpop.f32.mrf.mxu0
        %v3610 = vadd.f32 0.0, %v3609
        %3611 = vmatprep.mubr.f32.mxu0 0.0
        %3612 = vmatmul.mubr.f32.gmra.mxu0 %v3527
        %v3613 = vpop.f32.mrf.mxu0
        %v3614 = vadd.f32 0.0, %v3613
        %v3615 = vpop.f32.mrf.mxu0
        %v3616 = vadd.f32 0.0, %v3615
        %3617 = vdwg.mxu0
        %3618 = vmatprep.subr.mxu0 0.0
        %3619 = vmatpush1.msra.mxu0 0.0
        %3620 = vmatprep.subr.mxu0 0.0
        %3621 = vmatpush1.msra.mxu0 0.0
        %3622 = vmatprep.subr.mxu0 0.0
        %3623 = vmatpush1.msra.mxu0 0.0
        %3624 = vmatprep.subr.mxu0 0.0
        %3625 = vmatpush1.msra.mxu0 0.0
        %3626 = vmatprep.subr.mxu0 0.0
        %3627 = vmatpush1.msra.mxu0 0.0
        %3628 = vmatprep.subr.mxu0 0.0
        %3629 = vmatpush1.msra.mxu0 0.0
        %3630 = vmatprep.subr.mxu0 0.0
        %3631 = vmatpush1.msra.mxu0 0.0
        %3632 = vmatprep.subr.mxu0 0.0
        %3633 = vmatpush1.msra.mxu0 0.0
        %3634 = vmatprep.subr.mxu0 0.0
        %3635 = vmatpush1.msra.mxu0 0.0
        %3636 = vmatprep.subr.mxu0 0.0
        %3637 = vmatpush1.msra.mxu0 0.0
        %3638 = vmatprep.subr.mxu0 0.0
        %3639 = vmatpush1.msra.mxu0 0.0
        %3640 = vmatprep.subr.mxu0 0.0
        %3641 = vmatpush1.msra.mxu0 0.0
        %3642 = vmatprep.subr.mxu0 %v3395
        %3643 = vmatpush1.msra.mxu0 %v3394
        %3644 = vmatprep.subr.mxu0 %v3389
        %3645 = vmatpush1.msra.mxu0 %v3388
        %3646 = vmatprep.subr.mxu0 %v3383
        %3647 = vmatpush1.msra.mxu0 %v3382
        %3648 = vmatprep.subr.mxu0 %v3377
        %3649 = vmatpush1.msra.mxu0 %v3376
        %3650 = vmatprep.subr.mxu0 0.0
        %3651 = vmatpush2.msra.mxu0 0.0
        %3652 = vmatprep.subr.mxu0 0.0
        %3653 = vmatpush2.msra.mxu0 0.0
        %3654 = vmatprep.subr.mxu0 0.0
        %3655 = vmatpush2.msra.mxu0 0.0
        %3656 = vmatprep.subr.mxu0 0.0
        %3657 = vmatpush2.msra.mxu0 0.0
        %3658 = vmatprep.subr.mxu0 0.0
        %3659 = vmatpush2.msra.mxu0 0.0
        %3660 = vmatprep.subr.mxu0 0.0
        %3661 = vmatpush2.msra.mxu0 0.0
        %3662 = vmatprep.subr.mxu0 0.0
        %3663 = vmatpush2.msra.mxu0 0.0
        %3664 = vmatprep.subr.mxu0 0.0
        %3665 = vmatpush2.msra.mxu0 0.0
        %3666 = vmatprep.subr.mxu0 0.0
        %3667 = vmatpush2.msra.mxu0 0.0
        %3668 = vmatprep.subr.mxu0 0.0
        %3669 = vmatpush2.msra.mxu0 0.0
        %3670 = vmatprep.subr.mxu0 0.0
        %3671 = vmatpush2.msra.mxu0 0.0
        %3672 = vmatprep.subr.mxu0 0.0
        %3673 = vmatpush2.msra.mxu0 0.0
        %3674 = vmatprep.subr.mxu0 0.0
        %3675 = vmatpush2.msra.mxu0 0.0
        %3676 = vmatprep.subr.mxu0 0.0
        %3677 = vmatpush2.msra.mxu0 0.0
        %3678 = vmatprep.subr.mxu0 0.0
        %3679 = vmatpush2.msra.mxu0 0.0
        %3680 = vmatprep.subr.mxu0 0.0
        %3681 = vmatpush2.msra.mxu0 0.0
        %3682 = vmatprep.mubr.f32.mxu0 0.0
        %3683 = vmatmul.mubr.f32.gmra.mxu0 %v3518
        %v3684 = vpop.f32.mrf.mxu0
        %v3685 = vadd.f32 0.0, %v3684
        %v3686 = vpop.f32.mrf.mxu0
        %v3687 = vadd.f32 0.0, %v3686
        %3688 = vmatprep.mubr.f32.mxu0 0.0
        %3689 = vmatmul.mubr.f32.gmra.mxu0 %v3521
        %v3690 = vpop.f32.mrf.mxu0
        %v3691 = vadd.f32 0.0, %v3690
        %v3692 = vpop.f32.mrf.mxu0
        %v3693 = vadd.f32 0.0, %v3692
        %3694 = vmatprep.mubr.f32.mxu0 0.0
        %3695 = vmatmul.mubr.f32.gmra.mxu0 %v3524
        %v3696 = vpop.f32.mrf.mxu0
        %v3697 = vadd.f32 0.0, %v3696
        %v3698 = vpop.f32.mrf.mxu0
        %v3699 = vadd.f32 0.0, %v3698
        %3700 = vmatprep.mubr.f32.mxu0 0.0
        %3701 = vmatmul.mubr.f32.gmra.mxu0 %v3527
        %v3702 = vpop.f32.mrf.mxu0
        %v3703 = vadd.f32 0.0, %v3702
        %v3704 = vpop.f32.mrf.mxu0
        %v3705 = vadd.f32 0.0, %v3704
        %3706 = vdwg.mxu0
        %3707 = vmatprep.subr.mxu0 0.0
        %3708 = vmatpush1.msra.mxu0 0.0
        %3709 = vmatprep.subr.mxu0 0.0
        %3710 = vmatpush1.msra.mxu0 0.0
        %3711 = vmatprep.subr.mxu0 0.0
        %3712 = vmatpush1.msra.mxu0 0.0
        %3713 = vmatprep.subr.mxu0 0.0
        %3714 = vmatpush1.msra.mxu0 0.0
        %3715 = vmatprep.subr.mxu0 0.0
        %3716 = vmatpush1.msra.mxu0 0.0
        %3717 = vmatprep.subr.mxu0 0.0
        %3718 = vmatpush1.msra.mxu0 0.0
        %3719 = vmatprep.subr.mxu0 0.0
        %3720 = vmatpush1.msra.mxu0 0.0
        %3721 = vmatprep.subr.mxu0 0.0
        %3722 = vmatpush1.msra.mxu0 0.0
        %3723 = vmatprep.subr.mxu0 0.0
        %3724 = vmatpush1.msra.mxu0 0.0
        %3725 = vmatprep.subr.mxu0 0.0
        %3726 = vmatpush1.msra.mxu0 0.0
        %3727 = vmatprep.subr.mxu0 0.0
        %3728 = vmatpush1.msra.mxu0 0.0
        %3729 = vmatprep.subr.mxu0 0.0
        %3730 = vmatpush1.msra.mxu0 0.0
        %3731 = vmatprep.subr.mxu0 %v3397
        %3732 = vmatpush1.msra.mxu0 %v3396
        %3733 = vmatprep.subr.mxu0 %v3391
        %3734 = vmatpush1.msra.mxu0 %v3390
        %3735 = vmatprep.subr.mxu0 %v3385
        %3736 = vmatpush1.msra.mxu0 %v3384
        %3737 = vmatprep.subr.mxu0 %v3379
        %3738 = vmatpush1.msra.mxu0 %v3378
        %3739 = vmatprep.subr.mxu0 0.0
        %3740 = vmatpush2.msra.mxu0 0.0
        %3741 = vmatprep.subr.mxu0 0.0
        %3742 = vmatpush2.msra.mxu0 0.0
        %3743 = vmatprep.subr.mxu0 0.0
        %3744 = vmatpush2.msra.mxu0 0.0
        %3745 = vmatprep.subr.mxu0 0.0
        %3746 = vmatpush2.msra.mxu0 0.0
        %3747 = vmatprep.subr.mxu0 0.0
        %3748 = vmatpush2.msra.mxu0 0.0
        %3749 = vmatprep.subr.mxu0 0.0
        %3750 = vmatpush2.msra.mxu0 0.0
        %3751 = vmatprep.subr.mxu0 0.0
        %3752 = vmatpush2.msra.mxu0 0.0
        %3753 = vmatprep.subr.mxu0 0.0
        %3754 = vmatpush2.msra.mxu0 0.0
        %3755 = vmatprep.subr.mxu0 0.0
        %3756 = vmatpush2.msra.mxu0 0.0
        %3757 = vmatprep.subr.mxu0 0.0
        %3758 = vmatpush2.msra.mxu0 0.0
        %3759 = vmatprep.subr.mxu0 0.0
        %3760 = vmatpush2.msra.mxu0 0.0
        %3761 = vmatprep.subr.mxu0 0.0
        %3762 = vmatpush2.msra.mxu0 0.0
        %3763 = vmatprep.subr.mxu0 0.0
        %3764 = vmatpush2.msra.mxu0 0.0
        %3765 = vmatprep.subr.mxu0 0.0
        %3766 = vmatpush2.msra.mxu0 0.0
        %3767 = vmatprep.subr.mxu0 0.0
        %3768 = vmatpush2.msra.mxu0 0.0
        %3769 = vmatprep.subr.mxu0 0.0
        %3770 = vmatpush2.msra.mxu0 0.0
        %3771 = vmatprep.mubr.f32.mxu0 0.0
        %3772 = vmatmul.mubr.f32.gmra.mxu0 %v3518
        %v3773 = vpop.f32.mrf.mxu0
        %v3774 = vadd.f32 0.0, %v3773
        %v3775 = vpop.f32.mrf.mxu0
        %v3776 = vadd.f32 0.0, %v3775
        %3777 = vmatprep.mubr.f32.mxu0 0.0
        %3778 = vmatmul.mubr.f32.gmra.mxu0 %v3521
        %v3779 = vpop.f32.mrf.mxu0
        %v3780 = vadd.f32 0.0, %v3779
        %v3781 = vpop.f32.mrf.mxu0
        %v3782 = vadd.f32 0.0, %v3781
        %3783 = vmatprep.mubr.f32.mxu0 0.0
        %3784 = vmatmul.mubr.f32.gmra.mxu0 %v3524
        %v3785 = vpop.f32.mrf.mxu0
        %v3786 = vadd.f32 0.0, %v3785
        %v3787 = vpop.f32.mrf.mxu0
        %v3788 = vadd.f32 0.0, %v3787
        %3789 = vmatprep.mubr.f32.mxu0 0.0
        %3790 = vmatmul.mubr.f32.gmra.mxu0 %v3527
        %v3791 = vpop.f32.mrf.mxu0
        %v3792 = vadd.f32 0.0, %v3791
        %v3793 = vpop.f32.mrf.mxu0
        %v3794 = vadd.f32 0.0, %v3793
        %3795 = vdwg.mxu0
        %v3796 = vadd.f32 %v3213, %v3596
        %v3797 = vadd.f32 %v3214, %v3598
        %v3798 = vadd.f32 %v3215, %v3685
        %v3799 = vadd.f32 %v3216, %v3687
        %v3800 = vadd.f32 %v3217, %v3774
        %v3801 = vadd.f32 %v3218, %v3776
        %v3802 = vadd.f32 %v3219, %v3602
        %v3803 = vadd.f32 %v3220, %v3604
        %v3804 = vadd.f32 %v3221, %v3691
        %v3805 = vadd.f32 %v3222, %v3693
        %v3806 = vadd.f32 %v3223, %v3780
        %v3807 = vadd.f32 %v3224, %v3782
        %v3808 = vadd.f32 %v3225, %v3608
        %v3809 = vadd.f32 %v3226, %v3610
        %v3810 = vadd.f32 %v3227, %v3697
        %v3811 = vadd.f32 %v3228, %v3699
        %v3812 = vadd.f32 %v3229, %v3786
        %v3813 = vadd.f32 %v3230, %v3788
        %v3814 = vadd.f32 %v3231, %v3614
        %v3815 = vadd.f32 %v3232, %v3616
        %v3816 = vadd.f32 %v3233, %v3703
        %v3817 = vadd.f32 %v3234, %v3705
        %v3818 = vadd.f32 %v3235, %v3792
        %v3819 = vadd.f32 %v3236, %v3794
        %3820 = vrot.lane.b32.xlu0 %v422, 113
        %v3821 = vpop.permute.xlu0 %3820
        %3822 = vrot.lane.b32.xlu0 %v424, 113
        %v3823 = vpop.permute.xlu0 %3822
        %3824 = vrot.lane.b32.xlu0 %v426, 113
        %v3825 = vpop.permute.xlu0 %3824
        %3826 = vrot.lane.b32.xlu0 %v428, 113
        %v3827 = vpop.permute.xlu0 %3826
        %3828 = vrot.lane.b32.xlu0 %v423, 113
        %v3829 = vpop.permute.xlu0 %3828
        %3830 = vrot.lane.b32.xlu0 %v425, 113
        %v3831 = vpop.permute.xlu0 %3830
        %3832 = vrot.lane.b32.xlu0 %v427, 113
        %v3833 = vpop.permute.xlu0 %3832
        %3834 = vrot.lane.b32.xlu0 %v429, 113
        %v3835 = vpop.permute.xlu0 %3834
        %vm3836 = vcmp.lt.s32.totalorder %v667, 113
        %v3837 = vsel %vm3836, %v3821, %v3829
        %v3838 = vsel %vm3836, %v3823, %v3831
        %v3839 = vsel %vm3836, %v3825, %v3833
        %v3840 = vsel %vm3836, %v3827, %v3835
        %v3841 = vsel %vm3836, %v3829, %v3821
        %v3842 = vsel %vm3836, %v3831, %v3823
        %v3843 = vsel %vm3836, %v3833, %v3825
        %v3844 = vsel %vm3836, %v3835, %v3827
        %v3845 = vlaneseq
        %v3846 = vshrl.u32 %v3845, 7
        %v3847 = vsub.s32 5, %v3846
        %v3848 = vrot.slane %v504, %v3847
        %v3849 = vlaneseq
        %v3850 = vshrl.u32 %v3849, 7
        %v3851 = vsub.s32 5, %v3850
        %v3852 = vrot.slane %v505, %v3851
        %v3853 = vmul.f32 %v3837, %v3848
        %v3854 = vmul.f32 %v3841, %v3852
        %v3855 = vmul.f32 %v3838, %v3848
        %v3856 = vmul.f32 %v3842, %v3852
        %v3857 = vmul.f32 %v3839, %v3848
        %v3858 = vmul.f32 %v3843, %v3852
        %v3859 = vmul.f32 %v3840, %v3848
        %v3860 = vmul.f32 %v3844, %v3852
        %3861 = vrot.lane.b32.xlu0 %v474, 113
        %v3862 = vpop.permute.xlu0 %3861
        %3863 = vrot.lane.b32.xlu0 %v480, 113
        %v3864 = vpop.permute.xlu0 %3863
        %3865 = vrot.lane.b32.xlu0 %v486, 113
        %v3866 = vpop.permute.xlu0 %3865
        %3867 = vrot.lane.b32.xlu0 %v492, 113
        %v3868 = vpop.permute.xlu0 %3867
        %3869 = vrot.lane.b32.xlu0 %v475, 113
        %v3870 = vpop.permute.xlu0 %3869
        %3871 = vrot.lane.b32.xlu0 %v481, 113
        %v3872 = vpop.permute.xlu0 %3871
        %3873 = vrot.lane.b32.xlu0 %v487, 113
        %v3874 = vpop.permute.xlu0 %3873
        %3875 = vrot.lane.b32.xlu0 %v493, 113
        %v3876 = vpop.permute.xlu0 %3875
        %3877 = vrot.lane.b32.xlu0 %v476, 113
        %v3878 = vpop.permute.xlu0 %3877
        %3879 = vrot.lane.b32.xlu0 %v482, 113
        %v3880 = vpop.permute.xlu0 %3879
        %3881 = vrot.lane.b32.xlu0 %v488, 113
        %v3882 = vpop.permute.xlu0 %3881
        %3883 = vrot.lane.b32.xlu0 %v494, 113
        %v3884 = vpop.permute.xlu0 %3883
        %3885 = vrot.lane.b32.xlu0 %v477, 113
        %v3886 = vpop.permute.xlu0 %3885
        %3887 = vrot.lane.b32.xlu0 %v483, 113
        %v3888 = vpop.permute.xlu0 %3887
        %3889 = vrot.lane.b32.xlu0 %v489, 113
        %v3890 = vpop.permute.xlu0 %3889
        %3891 = vrot.lane.b32.xlu0 %v495, 113
        %v3892 = vpop.permute.xlu0 %3891
        %3893 = vrot.lane.b32.xlu0 %v478, 113
        %v3894 = vpop.permute.xlu0 %3893
        %3895 = vrot.lane.b32.xlu0 %v484, 113
        %v3896 = vpop.permute.xlu0 %3895
        %3897 = vrot.lane.b32.xlu0 %v490, 113
        %v3898 = vpop.permute.xlu0 %3897
        %3899 = vrot.lane.b32.xlu0 %v496, 113
        %v3900 = vpop.permute.xlu0 %3899
        %3901 = vrot.lane.b32.xlu0 %v479, 113
        %v3902 = vpop.permute.xlu0 %3901
        %3903 = vrot.lane.b32.xlu0 %v485, 113
        %v3904 = vpop.permute.xlu0 %3903
        %3905 = vrot.lane.b32.xlu0 %v491, 113
        %v3906 = vpop.permute.xlu0 %3905
        %3907 = vrot.lane.b32.xlu0 %v497, 113
        %v3908 = vpop.permute.xlu0 %3907
        %v3909 = vsel %vm3836, %v3894, %v3902
        %v3910 = vsel %vm3836, %v3896, %v3904
        %v3911 = vsel %vm3836, %v3898, %v3906
        %v3912 = vsel %vm3836, %v3900, %v3908
        %v3913 = vsel %vm3836, %v3886, %v3894
        %v3914 = vsel %vm3836, %v3888, %v3896
        %v3915 = vsel %vm3836, %v3890, %v3898
        %v3916 = vsel %vm3836, %v3892, %v3900
        %v3917 = vsel %vm3836, %v3878, %v3886
        %v3918 = vsel %vm3836, %v3880, %v3888
        %v3919 = vsel %vm3836, %v3882, %v3890
        %v3920 = vsel %vm3836, %v3884, %v3892
        %v3921 = vsel %vm3836, %v3870, %v3878
        %v3922 = vsel %vm3836, %v3872, %v3880
        %v3923 = vsel %vm3836, %v3874, %v3882
        %v3924 = vsel %vm3836, %v3876, %v3884
        %v3925 = vsel %vm3836, %v3862, %v3870
        %v3926 = vsel %vm3836, %v3864, %v3872
        %v3927 = vsel %vm3836, %v3866, %v3874
        %v3928 = vsel %vm3836, %v3868, %v3876
        %v3929 = vsel %vm3836, %v3902, %v3862
        %v3930 = vsel %vm3836, %v3904, %v3864
        %v3931 = vsel %vm3836, %v3906, %v3866
        %v3932 = vsel %vm3836, %v3908, %v3868
        %v3933 = vlaneseq
        %v3934 = vshrl.u32 %v3933, 7
        %v3935 = vsub.s32 5, %v3934
        %v3936 = vrot.slane %v498, %v3935
        %v3937 = vlaneseq
        %v3938 = vshrl.u32 %v3937, 7
        %v3939 = vsub.s32 5, %v3938
        %v3940 = vrot.slane %v499, %v3939
        %v3941 = vlaneseq
        %v3942 = vshrl.u32 %v3941, 7
        %v3943 = vsub.s32 5, %v3942
        %v3944 = vrot.slane %v500, %v3943
        %v3945 = vlaneseq
        %v3946 = vshrl.u32 %v3945, 7
        %v3947 = vsub.s32 5, %v3946
        %v3948 = vrot.slane %v501, %v3947
        %v3949 = vlaneseq
        %v3950 = vshrl.u32 %v3949, 7
        %v3951 = vsub.s32 5, %v3950
        %v3952 = vrot.slane %v502, %v3951
        %v3953 = vlaneseq
        %v3954 = vshrl.u32 %v3953, 7
        %v3955 = vsub.s32 5, %v3954
        %v3956 = vrot.slane %v503, %v3955
        %v3957 = vmul.f32 %v3925, %v3936
        %v3958 = vmul.f32 %v3921, %v3940
        %v3959 = vmul.f32 %v3917, %v3944
        %v3960 = vmul.f32 %v3913, %v3948
        %v3961 = vmul.f32 %v3909, %v3952
        %v3962 = vmul.f32 %v3929, %v3956
        %v3963 = vmul.f32 %v3926, %v3936
        %v3964 = vmul.f32 %v3922, %v3940
        %v3965 = vmul.f32 %v3918, %v3944
        %v3966 = vmul.f32 %v3914, %v3948
        %v3967 = vmul.f32 %v3910, %v3952
        %v3968 = vmul.f32 %v3930, %v3956
        %v3969 = vmul.f32 %v3927, %v3936
        %v3970 = vmul.f32 %v3923, %v3940
        %v3971 = vmul.f32 %v3919, %v3944
        %v3972 = vmul.f32 %v3915, %v3948
        %v3973 = vmul.f32 %v3911, %v3952
        %v3974 = vmul.f32 %v3931, %v3956
        %v3975 = vmul.f32 %v3928, %v3936
        %v3976 = vmul.f32 %v3924, %v3940
        %v3977 = vmul.f32 %v3920, %v3944
        %v3978 = vmul.f32 %v3916, %v3948
        %v3979 = vmul.f32 %v3912, %v3952
        %v3980 = vmul.f32 %v3932, %v3956
        %s3981 = scalar_lea.vmem [#allocation8], 192
        %v3982 = vld [vmem:[%s3981] sm:$0xff]
        %v3983 = vld [vmem:[%s3981 + $0x8] sm:$0xff]
        %v3984 = vld [vmem:[%s3981 + $0x10] sm:$0xff]
        %v3985 = vld [vmem:[%s3981 + $0x18] sm:$0xff]
        %v3987 = vsel %vm515, %v3982, 0
        %v3990 = vsel %vm515, %v3983, 0
        %v3993 = vsel %vm515, %v3984, 0
        %v3996 = vsel %vm515, %v3985, 0
        %3998 = vmatprep.subr.mxu0 0.0
        %3999 = vmatpush1.msra.mxu0 0.0
        %4000 = vmatprep.subr.mxu0 0.0
        %4001 = vmatpush1.msra.mxu0 0.0
        %4002 = vmatprep.subr.mxu0 0.0
        %4003 = vmatpush1.msra.mxu0 0.0
        %4004 = vmatprep.subr.mxu0 0.0
        %4005 = vmatpush1.msra.mxu0 0.0
        %4006 = vmatprep.subr.mxu0 0.0
        %4007 = vmatpush1.msra.mxu0 0.0
        %4008 = vmatprep.subr.mxu0 0.0
        %4009 = vmatpush1.msra.mxu0 0.0
        %4010 = vmatprep.subr.mxu0 0.0
        %4011 = vmatpush1.msra.mxu0 0.0
        %4012 = vmatprep.subr.mxu0 0.0
        %4013 = vmatpush1.msra.mxu0 0.0
        %4014 = vmatprep.subr.mxu0 0.0
        %4015 = vmatpush1.msra.mxu0 0.0
        %4016 = vmatprep.subr.mxu0 0.0
        %4017 = vmatpush1.msra.mxu0 0.0
        %4018 = vmatprep.subr.mxu0 0.0
        %4019 = vmatpush1.msra.mxu0 0.0
        %4020 = vmatprep.subr.mxu0 0.0
        %4021 = vmatpush1.msra.mxu0 0.0
        %4022 = vmatprep.subr.mxu0 %v3860
        %4023 = vmatpush1.msra.mxu0 %v3859
        %4024 = vmatprep.subr.mxu0 %v3858
        %4025 = vmatpush1.msra.mxu0 %v3857
        %4026 = vmatprep.subr.mxu0 %v3856
        %4027 = vmatpush1.msra.mxu0 %v3855
        %4028 = vmatprep.subr.mxu0 %v3854
        %4029 = vmatpush1.msra.mxu0 %v3853
        %4030 = vmatprep.subr.mxu0 0.0
        %4031 = vmatpush2.msra.mxu0 0.0
        %4032 = vmatprep.subr.mxu0 0.0
        %4033 = vmatpush2.msra.mxu0 0.0
        %4034 = vmatprep.subr.mxu0 0.0
        %4035 = vmatpush2.msra.mxu0 0.0
        %4036 = vmatprep.subr.mxu0 0.0
        %4037 = vmatpush2.msra.mxu0 0.0
        %4038 = vmatprep.subr.mxu0 0.0
        %4039 = vmatpush2.msra.mxu0 0.0
        %4040 = vmatprep.subr.mxu0 0.0
        %4041 = vmatpush2.msra.mxu0 0.0
        %4042 = vmatprep.subr.mxu0 0.0
        %4043 = vmatpush2.msra.mxu0 0.0
        %4044 = vmatprep.subr.mxu0 0.0
        %4045 = vmatpush2.msra.mxu0 0.0
        %4046 = vmatprep.subr.mxu0 0.0
        %4047 = vmatpush2.msra.mxu0 0.0
        %4048 = vmatprep.subr.mxu0 0.0
        %4049 = vmatpush2.msra.mxu0 0.0
        %4050 = vmatprep.subr.mxu0 0.0
        %4051 = vmatpush2.msra.mxu0 0.0
        %4052 = vmatprep.subr.mxu0 0.0
        %4053 = vmatpush2.msra.mxu0 0.0
        %4054 = vmatprep.subr.mxu0 0.0
        %4055 = vmatpush2.msra.mxu0 0.0
        %4056 = vmatprep.subr.mxu0 0.0
        %4057 = vmatpush2.msra.mxu0 0.0
        %4058 = vmatprep.subr.mxu0 0.0
        %4059 = vmatpush2.msra.mxu0 0.0
        %4060 = vmatprep.subr.mxu0 0.0
        %4061 = vmatpush2.msra.mxu0 0.0
        %4062 = vmatprep.mubr.f32.mxu0 0.0
        %4063 = vmatmul.mubr.f32.gmra.mxu0 %v3987
        %v4064 = vpop.f32.mrf.mxu0
        %v4065 = vadd.f32 0.0, %v4064
        %v4066 = vpop.f32.mrf.mxu0
        %v4067 = vadd.f32 0.0, %v4066
        %4068 = vmatprep.mubr.f32.mxu0 0.0
        %4069 = vmatmul.mubr.f32.gmra.mxu0 %v3990
        %v4070 = vpop.f32.mrf.mxu0
        %v4071 = vadd.f32 0.0, %v4070
        %v4072 = vpop.f32.mrf.mxu0
        %v4073 = vadd.f32 0.0, %v4072
        %4074 = vmatprep.mubr.f32.mxu0 0.0
        %4075 = vmatmul.mubr.f32.gmra.mxu0 %v3993
        %v4076 = vpop.f32.mrf.mxu0
        %v4077 = vadd.f32 0.0, %v4076
        %v4078 = vpop.f32.mrf.mxu0
        %v4079 = vadd.f32 0.0, %v4078
        %4080 = vmatprep.mubr.f32.mxu0 0.0
        %4081 = vmatmul.mubr.f32.gmra.mxu0 %v3996
        %v4082 = vpop.f32.mrf.mxu0
        %v4083 = vadd.f32 0.0, %v4082
        %v4084 = vpop.f32.mrf.mxu0
        %v4085 = vadd.f32 0.0, %v4084
        %4086 = vdwg.mxu0
        %v4087 = vadd.f32 %v3504, %v4065
        %v4088 = vadd.f32 %v3505, %v4067
        %v4089 = vadd.f32 %v3506, %v4071
        %v4090 = vadd.f32 %v3507, %v4073
        %v4091 = vadd.f32 %v3508, %v4077
        %v4092 = vadd.f32 %v3509, %v4079
        %v4093 = vadd.f32 %v3510, %v4083
        %v4094 = vadd.f32 %v3511, %v4085
        %s4095 = scalar_lea.vmem [#allocation10], 192
        %v4096 = vld [vmem:[%s4095] sm:$0xff]
        %v4097 = vld [vmem:[%s4095 + $0x8] sm:$0xff]
        %v4098 = vld [vmem:[%s4095 + $0x10] sm:$0xff]
        %v4099 = vld [vmem:[%s4095 + $0x18] sm:$0xff]
        %v4101 = vsel %vm515, %v4096, 0
        %v4104 = vsel %vm515, %v4097, 0
        %v4107 = vsel %vm515, %v4098, 0
        %v4110 = vsel %vm515, %v4099, 0
        %4112 = vmatprep.subr.mxu0 0.0
        %4113 = vmatpush1.msra.mxu0 0.0
        %4114 = vmatprep.subr.mxu0 0.0
        %4115 = vmatpush1.msra.mxu0 0.0
        %4116 = vmatprep.subr.mxu0 0.0
        %4117 = vmatpush1.msra.mxu0 0.0
        %4118 = vmatprep.subr.mxu0 0.0
        %4119 = vmatpush1.msra.mxu0 0.0
        %4120 = vmatprep.subr.mxu0 0.0
        %4121 = vmatpush1.msra.mxu0 0.0
        %4122 = vmatprep.subr.mxu0 0.0
        %4123 = vmatpush1.msra.mxu0 0.0
        %4124 = vmatprep.subr.mxu0 0.0
        %4125 = vmatpush1.msra.mxu0 0.0
        %4126 = vmatprep.subr.mxu0 0.0
        %4127 = vmatpush1.msra.mxu0 0.0
        %4128 = vmatprep.subr.mxu0 0.0
        %4129 = vmatpush1.msra.mxu0 0.0
        %4130 = vmatprep.subr.mxu0 0.0
        %4131 = vmatpush1.msra.mxu0 0.0
        %4132 = vmatprep.subr.mxu0 0.0
        %4133 = vmatpush1.msra.mxu0 0.0
        %4134 = vmatprep.subr.mxu0 0.0
        %4135 = vmatpush1.msra.mxu0 0.0
        %4136 = vmatprep.subr.mxu0 %v3976
        %4137 = vmatpush1.msra.mxu0 %v3975
        %4138 = vmatprep.subr.mxu0 %v3970
        %4139 = vmatpush1.msra.mxu0 %v3969
        %4140 = vmatprep.subr.mxu0 %v3964
        %4141 = vmatpush1.msra.mxu0 %v3963
        %4142 = vmatprep.subr.mxu0 %v3958
        %4143 = vmatpush1.msra.mxu0 %v3957
        %4144 = vmatprep.subr.mxu0 0.0
        %4145 = vmatpush2.msra.mxu0 0.0
        %4146 = vmatprep.subr.mxu0 0.0
        %4147 = vmatpush2.msra.mxu0 0.0
        %4148 = vmatprep.subr.mxu0 0.0
        %4149 = vmatpush2.msra.mxu0 0.0
        %4150 = vmatprep.subr.mxu0 0.0
        %4151 = vmatpush2.msra.mxu0 0.0
        %4152 = vmatprep.subr.mxu0 0.0
        %4153 = vmatpush2.msra.mxu0 0.0
        %4154 = vmatprep.subr.mxu0 0.0
        %4155 = vmatpush2.msra.mxu0 0.0
        %4156 = vmatprep.subr.mxu0 0.0
        %4157 = vmatpush2.msra.mxu0 0.0
        %4158 = vmatprep.subr.mxu0 0.0
        %4159 = vmatpush2.msra.mxu0 0.0
        %4160 = vmatprep.subr.mxu0 0.0
        %4161 = vmatpush2.msra.mxu0 0.0
        %4162 = vmatprep.subr.mxu0 0.0
        %4163 = vmatpush2.msra.mxu0 0.0
        %4164 = vmatprep.subr.mxu0 0.0
        %4165 = vmatpush2.msra.mxu0 0.0
        %4166 = vmatprep.subr.mxu0 0.0
        %4167 = vmatpush2.msra.mxu0 0.0
        %4168 = vmatprep.subr.mxu0 0.0
        %4169 = vmatpush2.msra.mxu0 0.0
        %4170 = vmatprep.subr.mxu0 0.0
        %4171 = vmatpush2.msra.mxu0 0.0
        %4172 = vmatprep.subr.mxu0 0.0
        %4173 = vmatpush2.msra.mxu0 0.0
        %4174 = vmatprep.subr.mxu0 0.0
        %4175 = vmatpush2.msra.mxu0 0.0
        %4176 = vmatprep.mubr.f32.mxu0 0.0
        %4177 = vmatmul.mubr.f32.gmra.mxu0 %v4101
        %v4178 = vpop.f32.mrf.mxu0
        %v4179 = vadd.f32 0.0, %v4178
        %v4180 = vpop.f32.mrf.mxu0
        %v4181 = vadd.f32 0.0, %v4180
        %4182 = vmatprep.mubr.f32.mxu0 0.0
        %4183 = vmatmul.mubr.f32.gmra.mxu0 %v4104
        %v4184 = vpop.f32.mrf.mxu0
        %v4185 = vadd.f32 0.0, %v4184
        %v4186 = vpop.f32.mrf.mxu0
        %v4187 = vadd.f32 0.0, %v4186
        %4188 = vmatprep.mubr.f32.mxu0 0.0
        %4189 = vmatmul.mubr.f32.gmra.mxu0 %v4107
        %v4190 = vpop.f32.mrf.mxu0
        %v4191 = vadd.f32 0.0, %v4190
        %v4192 = vpop.f32.mrf.mxu0
        %v4193 = vadd.f32 0.0, %v4192
        %4194 = vmatprep.mubr.f32.mxu0 0.0
        %4195 = vmatmul.mubr.f32.gmra.mxu0 %v4110
        %v4196 = vpop.f32.mrf.mxu0
        %v4197 = vadd.f32 0.0, %v4196
        %v4198 = vpop.f32.mrf.mxu0
        %v4199 = vadd.f32 0.0, %v4198
        %4200 = vdwg.mxu0
        %4201 = vmatprep.subr.mxu0 0.0
        %4202 = vmatpush1.msra.mxu0 0.0
        %4203 = vmatprep.subr.mxu0 0.0
        %4204 = vmatpush1.msra.mxu0 0.0
        %4205 = vmatprep.subr.mxu0 0.0
        %4206 = vmatpush1.msra.mxu0 0.0
        %4207 = vmatprep.subr.mxu0 0.0
        %4208 = vmatpush1.msra.mxu0 0.0
        %4209 = vmatprep.subr.mxu0 0.0
        %4210 = vmatpush1.msra.mxu0 0.0
        %4211 = vmatprep.subr.mxu0 0.0
        %4212 = vmatpush1.msra.mxu0 0.0
        %4213 = vmatprep.subr.mxu0 0.0
        %4214 = vmatpush1.msra.mxu0 0.0
        %4215 = vmatprep.subr.mxu0 0.0
        %4216 = vmatpush1.msra.mxu0 0.0
        %4217 = vmatprep.subr.mxu0 0.0
        %4218 = vmatpush1.msra.mxu0 0.0
        %4219 = vmatprep.subr.mxu0 0.0
        %4220 = vmatpush1.msra.mxu0 0.0
        %4221 = vmatprep.subr.mxu0 0.0
        %4222 = vmatpush1.msra.mxu0 0.0
        %4223 = vmatprep.subr.mxu0 0.0
        %4224 = vmatpush1.msra.mxu0 0.0
        %4225 = vmatprep.subr.mxu0 %v3978
        %4226 = vmatpush1.msra.mxu0 %v3977
        %4227 = vmatprep.subr.mxu0 %v3972
        %4228 = vmatpush1.msra.mxu0 %v3971
        %4229 = vmatprep.subr.mxu0 %v3966
        %4230 = vmatpush1.msra.mxu0 %v3965
        %4231 = vmatprep.subr.mxu0 %v3960
        %4232 = vmatpush1.msra.mxu0 %v3959
        %4233 = vmatprep.subr.mxu0 0.0
        %4234 = vmatpush2.msra.mxu0 0.0
        %4235 = vmatprep.subr.mxu0 0.0
        %4236 = vmatpush2.msra.mxu0 0.0
        %4237 = vmatprep.subr.mxu0 0.0
        %4238 = vmatpush2.msra.mxu0 0.0
        %4239 = vmatprep.subr.mxu0 0.0
        %4240 = vmatpush2.msra.mxu0 0.0
        %4241 = vmatprep.subr.mxu0 0.0
        %4242 = vmatpush2.msra.mxu0 0.0
        %4243 = vmatprep.subr.mxu0 0.0
        %4244 = vmatpush2.msra.mxu0 0.0
        %4245 = vmatprep.subr.mxu0 0.0
        %4246 = vmatpush2.msra.mxu0 0.0
        %4247 = vmatprep.subr.mxu0 0.0
        %4248 = vmatpush2.msra.mxu0 0.0
        %4249 = vmatprep.subr.mxu0 0.0
        %4250 = vmatpush2.msra.mxu0 0.0
        %4251 = vmatprep.subr.mxu0 0.0
        %4252 = vmatpush2.msra.mxu0 0.0
        %4253 = vmatprep.subr.mxu0 0.0
        %4254 = vmatpush2.msra.mxu0 0.0
        %4255 = vmatprep.subr.mxu0 0.0
        %4256 = vmatpush2.msra.mxu0 0.0
        %4257 = vmatprep.subr.mxu0 0.0
        %4258 = vmatpush2.msra.mxu0 0.0
        %4259 = vmatprep.subr.mxu0 0.0
        %4260 = vmatpush2.msra.mxu0 0.0
        %4261 = vmatprep.subr.mxu0 0.0
        %4262 = vmatpush2.msra.mxu0 0.0
        %4263 = vmatprep.subr.mxu0 0.0
        %4264 = vmatpush2.msra.mxu0 0.0
        %4265 = vmatprep.mubr.f32.mxu0 0.0
        %4266 = vmatmul.mubr.f32.gmra.mxu0 %v4101
        %v4267 = vpop.f32.mrf.mxu0
        %v4268 = vadd.f32 0.0, %v4267
        %v4269 = vpop.f32.mrf.mxu0
        %v4270 = vadd.f32 0.0, %v4269
        %4271 = vmatprep.mubr.f32.mxu0 0.0
        %4272 = vmatmul.mubr.f32.gmra.mxu0 %v4104
        %v4273 = vpop.f32.mrf.mxu0
        %v4274 = vadd.f32 0.0, %v4273
        %v4275 = vpop.f32.mrf.mxu0
        %v4276 = vadd.f32 0.0, %v4275
        %4277 = vmatprep.mubr.f32.mxu0 0.0
        %4278 = vmatmul.mubr.f32.gmra.mxu0 %v4107
        %v4279 = vpop.f32.mrf.mxu0
        %v4280 = vadd.f32 0.0, %v4279
        %v4281 = vpop.f32.mrf.mxu0
        %v4282 = vadd.f32 0.0, %v4281
        %4283 = vmatprep.mubr.f32.mxu0 0.0
        %4284 = vmatmul.mubr.f32.gmra.mxu0 %v4110
        %v4285 = vpop.f32.mrf.mxu0
        %v4286 = vadd.f32 0.0, %v4285
        %v4287 = vpop.f32.mrf.mxu0
        %v4288 = vadd.f32 0.0, %v4287
        %4289 = vdwg.mxu0
        %4290 = vmatprep.subr.mxu0 0.0
        %4291 = vmatpush1.msra.mxu0 0.0
        %4292 = vmatprep.subr.mxu0 0.0
        %4293 = vmatpush1.msra.mxu0 0.0
        %4294 = vmatprep.subr.mxu0 0.0
        %4295 = vmatpush1.msra.mxu0 0.0
        %4296 = vmatprep.subr.mxu0 0.0
        %4297 = vmatpush1.msra.mxu0 0.0
        %4298 = vmatprep.subr.mxu0 0.0
        %4299 = vmatpush1.msra.mxu0 0.0
        %4300 = vmatprep.subr.mxu0 0.0
        %4301 = vmatpush1.msra.mxu0 0.0
        %4302 = vmatprep.subr.mxu0 0.0
        %4303 = vmatpush1.msra.mxu0 0.0
        %4304 = vmatprep.subr.mxu0 0.0
        %4305 = vmatpush1.msra.mxu0 0.0
        %4306 = vmatprep.subr.mxu0 0.0
        %4307 = vmatpush1.msra.mxu0 0.0
        %4308 = vmatprep.subr.mxu0 0.0
        %4309 = vmatpush1.msra.mxu0 0.0
        %4310 = vmatprep.subr.mxu0 0.0
        %4311 = vmatpush1.msra.mxu0 0.0
        %4312 = vmatprep.subr.mxu0 0.0
        %4313 = vmatpush1.msra.mxu0 0.0
        %4314 = vmatprep.subr.mxu0 %v3980
        %4315 = vmatpush1.msra.mxu0 %v3979
        %4316 = vmatprep.subr.mxu0 %v3974
        %4317 = vmatpush1.msra.mxu0 %v3973
        %4318 = vmatprep.subr.mxu0 %v3968
        %4319 = vmatpush1.msra.mxu0 %v3967
        %4320 = vmatprep.subr.mxu0 %v3962
        %4321 = vmatpush1.msra.mxu0 %v3961
        %4322 = vmatprep.subr.mxu0 0.0
        %4323 = vmatpush2.msra.mxu0 0.0
        %4324 = vmatprep.subr.mxu0 0.0
        %4325 = vmatpush2.msra.mxu0 0.0
        %4326 = vmatprep.subr.mxu0 0.0
        %4327 = vmatpush2.msra.mxu0 0.0
        %4328 = vmatprep.subr.mxu0 0.0
        %4329 = vmatpush2.msra.mxu0 0.0
        %4330 = vmatprep.subr.mxu0 0.0
        %4331 = vmatpush2.msra.mxu0 0.0
        %4332 = vmatprep.subr.mxu0 0.0
        %4333 = vmatpush2.msra.mxu0 0.0
        %4334 = vmatprep.subr.mxu0 0.0
        %4335 = vmatpush2.msra.mxu0 0.0
        %4336 = vmatprep.subr.mxu0 0.0
        %4337 = vmatpush2.msra.mxu0 0.0
        %4338 = vmatprep.subr.mxu0 0.0
        %4339 = vmatpush2.msra.mxu0 0.0
        %4340 = vmatprep.subr.mxu0 0.0
        %4341 = vmatpush2.msra.mxu0 0.0
        %4342 = vmatprep.subr.mxu0 0.0
        %4343 = vmatpush2.msra.mxu0 0.0
        %4344 = vmatprep.subr.mxu0 0.0
        %4345 = vmatpush2.msra.mxu0 0.0
        %4346 = vmatprep.subr.mxu0 0.0
        %4347 = vmatpush2.msra.mxu0 0.0
        %4348 = vmatprep.subr.mxu0 0.0
        %4349 = vmatpush2.msra.mxu0 0.0
        %4350 = vmatprep.subr.mxu0 0.0
        %4351 = vmatpush2.msra.mxu0 0.0
        %4352 = vmatprep.subr.mxu0 0.0
        %4353 = vmatpush2.msra.mxu0 0.0
        %4354 = vmatprep.mubr.f32.mxu0 0.0
        %4355 = vmatmul.mubr.f32.gmra.mxu0 %v4101
        %v4356 = vpop.f32.mrf.mxu0
        %v4357 = vadd.f32 0.0, %v4356
        %v4358 = vpop.f32.mrf.mxu0
        %v4359 = vadd.f32 0.0, %v4358
        %4360 = vmatprep.mubr.f32.mxu0 0.0
        %4361 = vmatmul.mubr.f32.gmra.mxu0 %v4104
        %v4362 = vpop.f32.mrf.mxu0
        %v4363 = vadd.f32 0.0, %v4362
        %v4364 = vpop.f32.mrf.mxu0
        %v4365 = vadd.f32 0.0, %v4364
        %4366 = vmatprep.mubr.f32.mxu0 0.0
        %4367 = vmatmul.mubr.f32.gmra.mxu0 %v4107
        %v4368 = vpop.f32.mrf.mxu0
        %v4369 = vadd.f32 0.0, %v4368
        %v4370 = vpop.f32.mrf.mxu0
        %v4371 = vadd.f32 0.0, %v4370
        %4372 = vmatprep.mubr.f32.mxu0 0.0
        %4373 = vmatmul.mubr.f32.gmra.mxu0 %v4110
        %v4374 = vpop.f32.mrf.mxu0
        %v4375 = vadd.f32 0.0, %v4374
        %v4376 = vpop.f32.mrf.mxu0
        %v4377 = vadd.f32 0.0, %v4376
        %4378 = vdwg.mxu0
        %v4379 = vadd.f32 %v3796, %v4179
        %v4380 = vadd.f32 %v3797, %v4181
        %v4381 = vadd.f32 %v3798, %v4268
        %v4382 = vadd.f32 %v3799, %v4270
        %v4383 = vadd.f32 %v3800, %v4357
        %v4384 = vadd.f32 %v3801, %v4359
        %v4385 = vadd.f32 %v3802, %v4185
        %v4386 = vadd.f32 %v3803, %v4187
        %v4387 = vadd.f32 %v3804, %v4274
        %v4388 = vadd.f32 %v3805, %v4276
        %v4389 = vadd.f32 %v3806, %v4363
        %v4390 = vadd.f32 %v3807, %v4365
        %v4391 = vadd.f32 %v3808, %v4191
        %v4392 = vadd.f32 %v3809, %v4193
        %v4393 = vadd.f32 %v3810, %v4280
        %v4394 = vadd.f32 %v3811, %v4282
        %v4395 = vadd.f32 %v3812, %v4369
        %v4396 = vadd.f32 %v3813, %v4371
        %v4397 = vadd.f32 %v3814, %v4197
        %v4398 = vadd.f32 %v3815, %v4199
        %v4399 = vadd.f32 %v3816, %v4286
        %v4400 = vadd.f32 %v3817, %v4288
        %v4401 = vadd.f32 %v3818, %v4375
        %v4402 = vadd.f32 %v3819, %v4377
        %4403 = vrot.lane.b32.xlu0 %v422, 112
        %v4404 = vpop.permute.xlu0 %4403
        %4405 = vrot.lane.b32.xlu0 %v424, 112
        %v4406 = vpop.permute.xlu0 %4405
        %4407 = vrot.lane.b32.xlu0 %v426, 112
        %v4408 = vpop.permute.xlu0 %4407
        %4409 = vrot.lane.b32.xlu0 %v428, 112
        %v4410 = vpop.permute.xlu0 %4409
        %4411 = vrot.lane.b32.xlu0 %v423, 112
        %v4412 = vpop.permute.xlu0 %4411
        %4413 = vrot.lane.b32.xlu0 %v425, 112
        %v4414 = vpop.permute.xlu0 %4413
        %4415 = vrot.lane.b32.xlu0 %v427, 112
        %v4416 = vpop.permute.xlu0 %4415
        %4417 = vrot.lane.b32.xlu0 %v429, 112
        %v4418 = vpop.permute.xlu0 %4417
        %vm4419 = vcmp.lt.s32.totalorder %v667, 112
        %v4420 = vsel %vm4419, %v4404, %v4412
        %v4421 = vsel %vm4419, %v4406, %v4414
        %v4422 = vsel %vm4419, %v4408, %v4416
        %v4423 = vsel %vm4419, %v4410, %v4418
        %v4424 = vsel %vm4419, %v4412, %v4404
        %v4425 = vsel %vm4419, %v4414, %v4406
        %v4426 = vsel %vm4419, %v4416, %v4408
        %v4427 = vsel %vm4419, %v4418, %v4410
        %v4428 = vlaneseq
        %v4429 = vshrl.u32 %v4428, 7
        %v4430 = vsub.s32 6, %v4429
        %v4431 = vrot.slane %v504, %v4430
        %v4432 = vlaneseq
        %v4433 = vshrl.u32 %v4432, 7
        %v4434 = vsub.s32 6, %v4433
        %v4435 = vrot.slane %v505, %v4434
        %v4436 = vmul.f32 %v4420, %v4431
        %v4437 = vmul.f32 %v4424, %v4435
        %v4438 = vmul.f32 %v4421, %v4431
        %v4439 = vmul.f32 %v4425, %v4435
        %v4440 = vmul.f32 %v4422, %v4431
        %v4441 = vmul.f32 %v4426, %v4435
        %v4442 = vmul.f32 %v4423, %v4431
        %v4443 = vmul.f32 %v4427, %v4435
        %4444 = vrot.lane.b32.xlu0 %v474, 112
        %v4445 = vpop.permute.xlu0 %4444
        %4446 = vrot.lane.b32.xlu0 %v480, 112
        %v4447 = vpop.permute.xlu0 %4446
        %4448 = vrot.lane.b32.xlu0 %v486, 112
        %v4449 = vpop.permute.xlu0 %4448
        %4450 = vrot.lane.b32.xlu0 %v492, 112
        %v4451 = vpop.permute.xlu0 %4450
        %4452 = vrot.lane.b32.xlu0 %v475, 112
        %v4453 = vpop.permute.xlu0 %4452
        %4454 = vrot.lane.b32.xlu0 %v481, 112
        %v4455 = vpop.permute.xlu0 %4454
        %4456 = vrot.lane.b32.xlu0 %v487, 112
        %v4457 = vpop.permute.xlu0 %4456
        %4458 = vrot.lane.b32.xlu0 %v493, 112
        %v4459 = vpop.permute.xlu0 %4458
        %4460 = vrot.lane.b32.xlu0 %v476, 112
        %v4461 = vpop.permute.xlu0 %4460
        %4462 = vrot.lane.b32.xlu0 %v482, 112
        %v4463 = vpop.permute.xlu0 %4462
        %4464 = vrot.lane.b32.xlu0 %v488, 112
        %v4465 = vpop.permute.xlu0 %4464
        %4466 = vrot.lane.b32.xlu0 %v494, 112
        %v4467 = vpop.permute.xlu0 %4466
        %4468 = vrot.lane.b32.xlu0 %v477, 112
        %v4469 = vpop.permute.xlu0 %4468
        %4470 = vrot.lane.b32.xlu0 %v483, 112
        %v4471 = vpop.permute.xlu0 %4470
        %4472 = vrot.lane.b32.xlu0 %v489, 112
        %v4473 = vpop.permute.xlu0 %4472
        %4474 = vrot.lane.b32.xlu0 %v495, 112
        %v4475 = vpop.permute.xlu0 %4474
        %4476 = vrot.lane.b32.xlu0 %v478, 112
        %v4477 = vpop.permute.xlu0 %4476
        %4478 = vrot.lane.b32.xlu0 %v484, 112
        %v4479 = vpop.permute.xlu0 %4478
        %4480 = vrot.lane.b32.xlu0 %v490, 112
        %v4481 = vpop.permute.xlu0 %4480
        %4482 = vrot.lane.b32.xlu0 %v496, 112
        %v4483 = vpop.permute.xlu0 %4482
        %4484 = vrot.lane.b32.xlu0 %v479, 112
        %v4485 = vpop.permute.xlu0 %4484
        %4486 = vrot.lane.b32.xlu0 %v485, 112
        %v4487 = vpop.permute.xlu0 %4486
        %4488 = vrot.lane.b32.xlu0 %v491, 112
        %v4489 = vpop.permute.xlu0 %4488
        %4490 = vrot.lane.b32.xlu0 %v497, 112
        %v4491 = vpop.permute.xlu0 %4490
        %v4492 = vsel %vm4419, %v4477, %v4485
        %v4493 = vsel %vm4419, %v4479, %v4487
        %v4494 = vsel %vm4419, %v4481, %v4489
        %v4495 = vsel %vm4419, %v4483, %v4491
        %v4496 = vsel %vm4419, %v4469, %v4477
        %v4497 = vsel %vm4419, %v4471, %v4479
        %v4498 = vsel %vm4419, %v4473, %v4481
        %v4499 = vsel %vm4419, %v4475, %v4483
        %v4500 = vsel %vm4419, %v4461, %v4469
        %v4501 = vsel %vm4419, %v4463, %v4471
        %v4502 = vsel %vm4419, %v4465, %v4473
        %v4503 = vsel %vm4419, %v4467, %v4475
        %v4504 = vsel %vm4419, %v4453, %v4461
        %v4505 = vsel %vm4419, %v4455, %v4463
        %v4506 = vsel %vm4419, %v4457, %v4465
        %v4507 = vsel %vm4419, %v4459, %v4467
        %v4508 = vsel %vm4419, %v4445, %v4453
        %v4509 = vsel %vm4419, %v4447, %v4455
        %v4510 = vsel %vm4419, %v4449, %v4457
        %v4511 = vsel %vm4419, %v4451, %v4459
        %v4512 = vsel %vm4419, %v4485, %v4445
        %v4513 = vsel %vm4419, %v4487, %v4447
        %v4514 = vsel %vm4419, %v4489, %v4449
        %v4515 = vsel %vm4419, %v4491, %v4451
        %v4516 = vlaneseq
        %v4517 = vshrl.u32 %v4516, 7
        %v4518 = vsub.s32 6, %v4517
        %v4519 = vrot.slane %v498, %v4518
        %v4520 = vlaneseq
        %v4521 = vshrl.u32 %v4520, 7
        %v4522 = vsub.s32 6, %v4521
        %v4523 = vrot.slane %v499, %v4522
        %v4524 = vlaneseq
        %v4525 = vshrl.u32 %v4524, 7
        %v4526 = vsub.s32 6, %v4525
        %v4527 = vrot.slane %v500, %v4526
        %v4528 = vlaneseq
        %v4529 = vshrl.u32 %v4528, 7
        %v4530 = vsub.s32 6, %v4529
        %v4531 = vrot.slane %v501, %v4530
        %v4532 = vlaneseq
        %v4533 = vshrl.u32 %v4532, 7
        %v4534 = vsub.s32 6, %v4533
        %v4535 = vrot.slane %v502, %v4534
        %v4536 = vlaneseq
        %v4537 = vshrl.u32 %v4536, 7
        %v4538 = vsub.s32 6, %v4537
        %v4539 = vrot.slane %v503, %v4538
        %v4540 = vmul.f32 %v4508, %v4519
        %v4541 = vmul.f32 %v4504, %v4523
        %v4542 = vmul.f32 %v4500, %v4527
        %v4543 = vmul.f32 %v4496, %v4531
        %v4544 = vmul.f32 %v4492, %v4535
        %v4545 = vmul.f32 %v4512, %v4539
        %v4546 = vmul.f32 %v4509, %v4519
        %v4547 = vmul.f32 %v4505, %v4523
        %v4548 = vmul.f32 %v4501, %v4527
        %v4549 = vmul.f32 %v4497, %v4531
        %v4550 = vmul.f32 %v4493, %v4535
        %v4551 = vmul.f32 %v4513, %v4539
        %v4552 = vmul.f32 %v4510, %v4519
        %v4553 = vmul.f32 %v4506, %v4523
        %v4554 = vmul.f32 %v4502, %v4527
        %v4555 = vmul.f32 %v4498, %v4531
        %v4556 = vmul.f32 %v4494, %v4535
        %v4557 = vmul.f32 %v4514, %v4539
        %v4558 = vmul.f32 %v4511, %v4519
        %v4559 = vmul.f32 %v4507, %v4523
        %v4560 = vmul.f32 %v4503, %v4527
        %v4561 = vmul.f32 %v4499, %v4531
        %v4562 = vmul.f32 %v4495, %v4535
        %v4563 = vmul.f32 %v4515, %v4539
        %s4564 = scalar_lea.vmem [#allocation8], 224
        %v4565 = vld [vmem:[%s4564] sm:$0xff]
        %v4566 = vld [vmem:[%s4564 + $0x8] sm:$0xff]
        %v4567 = vld [vmem:[%s4564 + $0x10] sm:$0xff]
        %v4568 = vld [vmem:[%s4564 + $0x18] sm:$0xff]
        %v4570 = vsel %vm515, %v4565, 0
        %v4573 = vsel %vm515, %v4566, 0
        %v4576 = vsel %vm515, %v4567, 0
        %v4579 = vsel %vm515, %v4568, 0
        %4581 = vmatprep.subr.mxu0 0.0
        %4582 = vmatpush1.msra.mxu0 0.0
        %4583 = vmatprep.subr.mxu0 0.0
        %4584 = vmatpush1.msra.mxu0 0.0
        %4585 = vmatprep.subr.mxu0 0.0
        %4586 = vmatpush1.msra.mxu0 0.0
        %4587 = vmatprep.subr.mxu0 0.0
        %4588 = vmatpush1.msra.mxu0 0.0
        %4589 = vmatprep.subr.mxu0 0.0
        %4590 = vmatpush1.msra.mxu0 0.0
        %4591 = vmatprep.subr.mxu0 0.0
        %4592 = vmatpush1.msra.mxu0 0.0
        %4593 = vmatprep.subr.mxu0 0.0
        %4594 = vmatpush1.msra.mxu0 0.0
        %4595 = vmatprep.subr.mxu0 0.0
        %4596 = vmatpush1.msra.mxu0 0.0
        %4597 = vmatprep.subr.mxu0 0.0
        %4598 = vmatpush1.msra.mxu0 0.0
        %4599 = vmatprep.subr.mxu0 0.0
        %4600 = vmatpush1.msra.mxu0 0.0
        %4601 = vmatprep.subr.mxu0 0.0
        %4602 = vmatpush1.msra.mxu0 0.0
        %4603 = vmatprep.subr.mxu0 0.0
        %4604 = vmatpush1.msra.mxu0 0.0
        %4605 = vmatprep.subr.mxu0 %v4443
        %4606 = vmatpush1.msra.mxu0 %v4442
        %4607 = vmatprep.subr.mxu0 %v4441
        %4608 = vmatpush1.msra.mxu0 %v4440
        %4609 = vmatprep.subr.mxu0 %v4439
        %4610 = vmatpush1.msra.mxu0 %v4438
        %4611 = vmatprep.subr.mxu0 %v4437
        %4612 = vmatpush1.msra.mxu0 %v4436
        %4613 = vmatprep.subr.mxu0 0.0
        %4614 = vmatpush2.msra.mxu0 0.0
        %4615 = vmatprep.subr.mxu0 0.0
        %4616 = vmatpush2.msra.mxu0 0.0
        %4617 = vmatprep.subr.mxu0 0.0
        %4618 = vmatpush2.msra.mxu0 0.0
        %4619 = vmatprep.subr.mxu0 0.0
        %4620 = vmatpush2.msra.mxu0 0.0
        %4621 = vmatprep.subr.mxu0 0.0
        %4622 = vmatpush2.msra.mxu0 0.0
        %4623 = vmatprep.subr.mxu0 0.0
        %4624 = vmatpush2.msra.mxu0 0.0
        %4625 = vmatprep.subr.mxu0 0.0
        %4626 = vmatpush2.msra.mxu0 0.0
        %4627 = vmatprep.subr.mxu0 0.0
        %4628 = vmatpush2.msra.mxu0 0.0
        %4629 = vmatprep.subr.mxu0 0.0
        %4630 = vmatpush2.msra.mxu0 0.0
        %4631 = vmatprep.subr.mxu0 0.0
        %4632 = vmatpush2.msra.mxu0 0.0
        %4633 = vmatprep.subr.mxu0 0.0
        %4634 = vmatpush2.msra.mxu0 0.0
        %4635 = vmatprep.subr.mxu0 0.0
        %4636 = vmatpush2.msra.mxu0 0.0
        %4637 = vmatprep.subr.mxu0 0.0
        %4638 = vmatpush2.msra.mxu0 0.0
        %4639 = vmatprep.subr.mxu0 0.0
        %4640 = vmatpush2.msra.mxu0 0.0
        %4641 = vmatprep.subr.mxu0 0.0
        %4642 = vmatpush2.msra.mxu0 0.0
        %4643 = vmatprep.subr.mxu0 0.0
        %4644 = vmatpush2.msra.mxu0 0.0
        %4645 = vmatprep.mubr.f32.mxu0 0.0
        %4646 = vmatmul.mubr.f32.gmra.mxu0 %v4570
        %v4647 = vpop.f32.mrf.mxu0
        %v4648 = vadd.f32 0.0, %v4647
        %v4649 = vpop.f32.mrf.mxu0
        %v4650 = vadd.f32 0.0, %v4649
        %4651 = vmatprep.mubr.f32.mxu0 0.0
        %4652 = vmatmul.mubr.f32.gmra.mxu0 %v4573
        %v4653 = vpop.f32.mrf.mxu0
        %v4654 = vadd.f32 0.0, %v4653
        %v4655 = vpop.f32.mrf.mxu0
        %v4656 = vadd.f32 0.0, %v4655
        %4657 = vmatprep.mubr.f32.mxu0 0.0
        %4658 = vmatmul.mubr.f32.gmra.mxu0 %v4576
        %v4659 = vpop.f32.mrf.mxu0
        %v4660 = vadd.f32 0.0, %v4659
        %v4661 = vpop.f32.mrf.mxu0
        %v4662 = vadd.f32 0.0, %v4661
        %4663 = vmatprep.mubr.f32.mxu0 0.0
        %4664 = vmatmul.mubr.f32.gmra.mxu0 %v4579
        %v4665 = vpop.f32.mrf.mxu0
        %v4666 = vadd.f32 0.0, %v4665
        %v4667 = vpop.f32.mrf.mxu0
        %v4668 = vadd.f32 0.0, %v4667
        %4669 = vdwg.mxu0
        %v4670 = vadd.f32 %v4087, %v4648
        %v4671 = vadd.f32 %v4088, %v4650
        %v4672 = vadd.f32 %v4089, %v4654
        %v4673 = vadd.f32 %v4090, %v4656
        %v4674 = vadd.f32 %v4091, %v4660
        %v4675 = vadd.f32 %v4092, %v4662
        %v4676 = vadd.f32 %v4093, %v4666
        %v4677 = vadd.f32 %v4094, %v4668
        %s4678 = scalar_lea.vmem [#allocation10], 224
        %v4679 = vld [vmem:[%s4678] sm:$0xff]
        %v4680 = vld [vmem:[%s4678 + $0x8] sm:$0xff]
        %v4681 = vld [vmem:[%s4678 + $0x10] sm:$0xff]
        %v4682 = vld [vmem:[%s4678 + $0x18] sm:$0xff]
        %v4684 = vsel %vm515, %v4679, 0
        %v4687 = vsel %vm515, %v4680, 0
        %v4690 = vsel %vm515, %v4681, 0
        %v4693 = vsel %vm515, %v4682, 0
        %4695 = vmatprep.subr.mxu0 0.0
        %4696 = vmatpush1.msra.mxu0 0.0
        %4697 = vmatprep.subr.mxu0 0.0
        %4698 = vmatpush1.msra.mxu0 0.0
        %4699 = vmatprep.subr.mxu0 0.0
        %4700 = vmatpush1.msra.mxu0 0.0
        %4701 = vmatprep.subr.mxu0 0.0
        %4702 = vmatpush1.msra.mxu0 0.0
        %4703 = vmatprep.subr.mxu0 0.0
        %4704 = vmatpush1.msra.mxu0 0.0
        %4705 = vmatprep.subr.mxu0 0.0
        %4706 = vmatpush1.msra.mxu0 0.0
        %4707 = vmatprep.subr.mxu0 0.0
        %4708 = vmatpush1.msra.mxu0 0.0
        %4709 = vmatprep.subr.mxu0 0.0
        %4710 = vmatpush1.msra.mxu0 0.0
        %4711 = vmatprep.subr.mxu0 0.0
        %4712 = vmatpush1.msra.mxu0 0.0
        %4713 = vmatprep.subr.mxu0 0.0
        %4714 = vmatpush1.msra.mxu0 0.0
        %4715 = vmatprep.subr.mxu0 0.0
        %4716 = vmatpush1.msra.mxu0 0.0
        %4717 = vmatprep.subr.mxu0 0.0
        %4718 = vmatpush1.msra.mxu0 0.0
        %4719 = vmatprep.subr.mxu0 %v4559
        %4720 = vmatpush1.msra.mxu0 %v4558
        %4721 = vmatprep.subr.mxu0 %v4553
        %4722 = vmatpush1.msra.mxu0 %v4552
        %4723 = vmatprep.subr.mxu0 %v4547
        %4724 = vmatpush1.msra.mxu0 %v4546
        %4725 = vmatprep.subr.mxu0 %v4541
        %4726 = vmatpush1.msra.mxu0 %v4540
        %4727 = vmatprep.subr.mxu0 0.0
        %4728 = vmatpush2.msra.mxu0 0.0
        %4729 = vmatprep.subr.mxu0 0.0
        %4730 = vmatpush2.msra.mxu0 0.0
        %4731 = vmatprep.subr.mxu0 0.0
        %4732 = vmatpush2.msra.mxu0 0.0
        %4733 = vmatprep.subr.mxu0 0.0
        %4734 = vmatpush2.msra.mxu0 0.0
        %4735 = vmatprep.subr.mxu0 0.0
        %4736 = vmatpush2.msra.mxu0 0.0
        %4737 = vmatprep.subr.mxu0 0.0
        %4738 = vmatpush2.msra.mxu0 0.0
        %4739 = vmatprep.subr.mxu0 0.0
        %4740 = vmatpush2.msra.mxu0 0.0
        %4741 = vmatprep.subr.mxu0 0.0
        %4742 = vmatpush2.msra.mxu0 0.0
        %4743 = vmatprep.subr.mxu0 0.0
        %4744 = vmatpush2.msra.mxu0 0.0
        %4745 = vmatprep.subr.mxu0 0.0
        %4746 = vmatpush2.msra.mxu0 0.0
        %4747 = vmatprep.subr.mxu0 0.0
        %4748 = vmatpush2.msra.mxu0 0.0
        %4749 = vmatprep.subr.mxu0 0.0
        %4750 = vmatpush2.msra.mxu0 0.0
        %4751 = vmatprep.subr.mxu0 0.0
        %4752 = vmatpush2.msra.mxu0 0.0
        %4753 = vmatprep.subr.mxu0 0.0
        %4754 = vmatpush2.msra.mxu0 0.0
        %4755 = vmatprep.subr.mxu0 0.0
        %4756 = vmatpush2.msra.mxu0 0.0
        %4757 = vmatprep.subr.mxu0 0.0
        %4758 = vmatpush2.msra.mxu0 0.0
        %4759 = vmatprep.mubr.f32.mxu0 0.0
        %4760 = vmatmul.mubr.f32.gmra.mxu0 %v4684
        %v4761 = vpop.f32.mrf.mxu0
        %v4762 = vadd.f32 0.0, %v4761
        %v4763 = vpop.f32.mrf.mxu0
        %v4764 = vadd.f32 0.0, %v4763
        %4765 = vmatprep.mubr.f32.mxu0 0.0
        %4766 = vmatmul.mubr.f32.gmra.mxu0 %v4687
        %v4767 = vpop.f32.mrf.mxu0
        %v4768 = vadd.f32 0.0, %v4767
        %v4769 = vpop.f32.mrf.mxu0
        %v4770 = vadd.f32 0.0, %v4769
        %4771 = vmatprep.mubr.f32.mxu0 0.0
        %4772 = vmatmul.mubr.f32.gmra.mxu0 %v4690
        %v4773 = vpop.f32.mrf.mxu0
        %v4774 = vadd.f32 0.0, %v4773
        %v4775 = vpop.f32.mrf.mxu0
        %v4776 = vadd.f32 0.0, %v4775
        %4777 = vmatprep.mubr.f32.mxu0 0.0
        %4778 = vmatmul.mubr.f32.gmra.mxu0 %v4693
        %v4779 = vpop.f32.mrf.mxu0
        %v4780 = vadd.f32 0.0, %v4779
        %v4781 = vpop.f32.mrf.mxu0
        %v4782 = vadd.f32 0.0, %v4781
        %4783 = vdwg.mxu0
        %4784 = vmatprep.subr.mxu0 0.0
        %4785 = vmatpush1.msra.mxu0 0.0
        %4786 = vmatprep.subr.mxu0 0.0
        %4787 = vmatpush1.msra.mxu0 0.0
        %4788 = vmatprep.subr.mxu0 0.0
        %4789 = vmatpush1.msra.mxu0 0.0
        %4790 = vmatprep.subr.mxu0 0.0
        %4791 = vmatpush1.msra.mxu0 0.0
        %4792 = vmatprep.subr.mxu0 0.0
        %4793 = vmatpush1.msra.mxu0 0.0
        %4794 = vmatprep.subr.mxu0 0.0
        %4795 = vmatpush1.msra.mxu0 0.0
        %4796 = vmatprep.subr.mxu0 0.0
        %4797 = vmatpush1.msra.mxu0 0.0
        %4798 = vmatprep.subr.mxu0 0.0
        %4799 = vmatpush1.msra.mxu0 0.0
        %4800 = vmatprep.subr.mxu0 0.0
        %4801 = vmatpush1.msra.mxu0 0.0
        %4802 = vmatprep.subr.mxu0 0.0
        %4803 = vmatpush1.msra.mxu0 0.0
        %4804 = vmatprep.subr.mxu0 0.0
        %4805 = vmatpush1.msra.mxu0 0.0
        %4806 = vmatprep.subr.mxu0 0.0
        %4807 = vmatpush1.msra.mxu0 0.0
        %4808 = vmatprep.subr.mxu0 %v4561
        %4809 = vmatpush1.msra.mxu0 %v4560
        %4810 = vmatprep.subr.mxu0 %v4555
        %4811 = vmatpush1.msra.mxu0 %v4554
        %4812 = vmatprep.subr.mxu0 %v4549
        %4813 = vmatpush1.msra.mxu0 %v4548
        %4814 = vmatprep.subr.mxu0 %v4543
        %4815 = vmatpush1.msra.mxu0 %v4542
        %4816 = vmatprep.subr.mxu0 0.0
        %4817 = vmatpush2.msra.mxu0 0.0
        %4818 = vmatprep.subr.mxu0 0.0
        %4819 = vmatpush2.msra.mxu0 0.0
        %4820 = vmatprep.subr.mxu0 0.0
        %4821 = vmatpush2.msra.mxu0 0.0
        %4822 = vmatprep.subr.mxu0 0.0
        %4823 = vmatpush2.msra.mxu0 0.0
        %4824 = vmatprep.subr.mxu0 0.0
        %4825 = vmatpush2.msra.mxu0 0.0
        %4826 = vmatprep.subr.mxu0 0.0
        %4827 = vmatpush2.msra.mxu0 0.0
        %4828 = vmatprep.subr.mxu0 0.0
        %4829 = vmatpush2.msra.mxu0 0.0
        %4830 = vmatprep.subr.mxu0 0.0
        %4831 = vmatpush2.msra.mxu0 0.0
        %4832 = vmatprep.subr.mxu0 0.0
        %4833 = vmatpush2.msra.mxu0 0.0
        %4834 = vmatprep.subr.mxu0 0.0
        %4835 = vmatpush2.msra.mxu0 0.0
        %4836 = vmatprep.subr.mxu0 0.0
        %4837 = vmatpush2.msra.mxu0 0.0
        %4838 = vmatprep.subr.mxu0 0.0
        %4839 = vmatpush2.msra.mxu0 0.0
        %4840 = vmatprep.subr.mxu0 0.0
        %4841 = vmatpush2.msra.mxu0 0.0
        %4842 = vmatprep.subr.mxu0 0.0
        %4843 = vmatpush2.msra.mxu0 0.0
        %4844 = vmatprep.subr.mxu0 0.0
        %4845 = vmatpush2.msra.mxu0 0.0
        %4846 = vmatprep.subr.mxu0 0.0
        %4847 = vmatpush2.msra.mxu0 0.0
        %4848 = vmatprep.mubr.f32.mxu0 0.0
        %4849 = vmatmul.mubr.f32.gmra.mxu0 %v4684
        %v4850 = vpop.f32.mrf.mxu0
        %v4851 = vadd.f32 0.0, %v4850
        %v4852 = vpop.f32.mrf.mxu0
        %v4853 = vadd.f32 0.0, %v4852
        %4854 = vmatprep.mubr.f32.mxu0 0.0
        %4855 = vmatmul.mubr.f32.gmra.mxu0 %v4687
        %v4856 = vpop.f32.mrf.mxu0
        %v4857 = vadd.f32 0.0, %v4856
        %v4858 = vpop.f32.mrf.mxu0
        %v4859 = vadd.f32 0.0, %v4858
        %4860 = vmatprep.mubr.f32.mxu0 0.0
        %4861 = vmatmul.mubr.f32.gmra.mxu0 %v4690
        %v4862 = vpop.f32.mrf.mxu0
        %v4863 = vadd.f32 0.0, %v4862
        %v4864 = vpop.f32.mrf.mxu0
        %v4865 = vadd.f32 0.0, %v4864
        %4866 = vmatprep.mubr.f32.mxu0 0.0
        %4867 = vmatmul.mubr.f32.gmra.mxu0 %v4693
        %v4868 = vpop.f32.mrf.mxu0
        %v4869 = vadd.f32 0.0, %v4868
        %v4870 = vpop.f32.mrf.mxu0
        %v4871 = vadd.f32 0.0, %v4870
        %4872 = vdwg.mxu0
        %4873 = vmatprep.subr.mxu0 0.0
        %4874 = vmatpush1.msra.mxu0 0.0
        %4875 = vmatprep.subr.mxu0 0.0
        %4876 = vmatpush1.msra.mxu0 0.0
        %4877 = vmatprep.subr.mxu0 0.0
        %4878 = vmatpush1.msra.mxu0 0.0
        %4879 = vmatprep.subr.mxu0 0.0
        %4880 = vmatpush1.msra.mxu0 0.0
        %4881 = vmatprep.subr.mxu0 0.0
        %4882 = vmatpush1.msra.mxu0 0.0
        %4883 = vmatprep.subr.mxu0 0.0
        %4884 = vmatpush1.msra.mxu0 0.0
        %4885 = vmatprep.subr.mxu0 0.0
        %4886 = vmatpush1.msra.mxu0 0.0
        %4887 = vmatprep.subr.mxu0 0.0
        %4888 = vmatpush1.msra.mxu0 0.0
        %4889 = vmatprep.subr.mxu0 0.0
        %4890 = vmatpush1.msra.mxu0 0.0
        %4891 = vmatprep.subr.mxu0 0.0
        %4892 = vmatpush1.msra.mxu0 0.0
        %4893 = vmatprep.subr.mxu0 0.0
        %4894 = vmatpush1.msra.mxu0 0.0
        %4895 = vmatprep.subr.mxu0 0.0
        %4896 = vmatpush1.msra.mxu0 0.0
        %4897 = vmatprep.subr.mxu0 %v4563
        %4898 = vmatpush1.msra.mxu0 %v4562
        %4899 = vmatprep.subr.mxu0 %v4557
        %4900 = vmatpush1.msra.mxu0 %v4556
        %4901 = vmatprep.subr.mxu0 %v4551
        %4902 = vmatpush1.msra.mxu0 %v4550
        %4903 = vmatprep.subr.mxu0 %v4545
        %4904 = vmatpush1.msra.mxu0 %v4544
        %4905 = vmatprep.subr.mxu0 0.0
        %4906 = vmatpush2.msra.mxu0 0.0
        %4907 = vmatprep.subr.mxu0 0.0
        %4908 = vmatpush2.msra.mxu0 0.0
        %4909 = vmatprep.subr.mxu0 0.0
        %4910 = vmatpush2.msra.mxu0 0.0
        %4911 = vmatprep.subr.mxu0 0.0
        %4912 = vmatpush2.msra.mxu0 0.0
        %4913 = vmatprep.subr.mxu0 0.0
        %4914 = vmatpush2.msra.mxu0 0.0
        %4915 = vmatprep.subr.mxu0 0.0
        %4916 = vmatpush2.msra.mxu0 0.0
        %4917 = vmatprep.subr.mxu0 0.0
        %4918 = vmatpush2.msra.mxu0 0.0
        %4919 = vmatprep.subr.mxu0 0.0
        %4920 = vmatpush2.msra.mxu0 0.0
        %4921 = vmatprep.subr.mxu0 0.0
        %4922 = vmatpush2.msra.mxu0 0.0
        %4923 = vmatprep.subr.mxu0 0.0
        %4924 = vmatpush2.msra.mxu0 0.0
        %4925 = vmatprep.subr.mxu0 0.0
        %4926 = vmatpush2.msra.mxu0 0.0
        %4927 = vmatprep.subr.mxu0 0.0
        %4928 = vmatpush2.msra.mxu0 0.0
        %4929 = vmatprep.subr.mxu0 0.0
        %4930 = vmatpush2.msra.mxu0 0.0
        %4931 = vmatprep.subr.mxu0 0.0
        %4932 = vmatpush2.msra.mxu0 0.0
        %4933 = vmatprep.subr.mxu0 0.0
        %4934 = vmatpush2.msra.mxu0 0.0
        %4935 = vmatprep.subr.mxu0 0.0
        %4936 = vmatpush2.msra.mxu0 0.0
        %4937 = vmatprep.mubr.f32.mxu0 0.0
        %4938 = vmatmul.mubr.f32.gmra.mxu0 %v4684
        %v4939 = vpop.f32.mrf.mxu0
        %v4940 = vadd.f32 0.0, %v4939
        %v4941 = vpop.f32.mrf.mxu0
        %v4942 = vadd.f32 0.0, %v4941
        %4943 = vmatprep.mubr.f32.mxu0 0.0
        %4944 = vmatmul.mubr.f32.gmra.mxu0 %v4687
        %v4945 = vpop.f32.mrf.mxu0
        %v4946 = vadd.f32 0.0, %v4945
        %v4947 = vpop.f32.mrf.mxu0
        %v4948 = vadd.f32 0.0, %v4947
        %4949 = vmatprep.mubr.f32.mxu0 0.0
        %4950 = vmatmul.mubr.f32.gmra.mxu0 %v4690
        %v4951 = vpop.f32.mrf.mxu0
        %v4952 = vadd.f32 0.0, %v4951
        %v4953 = vpop.f32.mrf.mxu0
        %v4954 = vadd.f32 0.0, %v4953
        %4955 = vmatprep.mubr.f32.mxu0 0.0
        %4956 = vmatmul.mubr.f32.gmra.mxu0 %v4693
        %v4957 = vpop.f32.mrf.mxu0
        %v4958 = vadd.f32 0.0, %v4957
        %v4959 = vpop.f32.mrf.mxu0
        %v4960 = vadd.f32 0.0, %v4959
        %4961 = vdwg.mxu0
        %v4962 = vadd.f32 %v4379, %v4762
        %v4963 = vadd.f32 %v4380, %v4764
        %v4964 = vadd.f32 %v4381, %v4851
        %v4965 = vadd.f32 %v4382, %v4853
        %v4966 = vadd.f32 %v4383, %v4940
        %v4967 = vadd.f32 %v4384, %v4942
        %v4968 = vadd.f32 %v4385, %v4768
        %v4969 = vadd.f32 %v4386, %v4770
        %v4970 = vadd.f32 %v4387, %v4857
        %v4971 = vadd.f32 %v4388, %v4859
        %v4972 = vadd.f32 %v4389, %v4946
        %v4973 = vadd.f32 %v4390, %v4948
        %v4974 = vadd.f32 %v4391, %v4774
        %v4975 = vadd.f32 %v4392, %v4776
        %v4976 = vadd.f32 %v4393, %v4863
        %v4977 = vadd.f32 %v4394, %v4865
        %v4978 = vadd.f32 %v4395, %v4952
        %v4979 = vadd.f32 %v4396, %v4954
        %v4980 = vadd.f32 %v4397, %v4780
        %v4981 = vadd.f32 %v4398, %v4782
        %v4982 = vadd.f32 %v4399, %v4869
        %v4983 = vadd.f32 %v4400, %v4871
        %v4984 = vadd.f32 %v4401, %v4958
        %v4985 = vadd.f32 %v4402, %v4960
        %4986 = vrot.lane.b32.xlu0 %v422, 111
        %v4987 = vpop.permute.xlu0 %4986
        %4988 = vrot.lane.b32.xlu0 %v424, 111
        %v4989 = vpop.permute.xlu0 %4988
        %4990 = vrot.lane.b32.xlu0 %v426, 111
        %v4991 = vpop.permute.xlu0 %4990
        %4992 = vrot.lane.b32.xlu0 %v428, 111
        %v4993 = vpop.permute.xlu0 %4992
        %4994 = vrot.lane.b32.xlu0 %v423, 111
        %v4995 = vpop.permute.xlu0 %4994
        %4996 = vrot.lane.b32.xlu0 %v425, 111
        %v4997 = vpop.permute.xlu0 %4996
        %4998 = vrot.lane.b32.xlu0 %v427, 111
        %v4999 = vpop.permute.xlu0 %4998
        %5000 = vrot.lane.b32.xlu0 %v429, 111
        %v5001 = vpop.permute.xlu0 %5000
        %vm5002 = vcmp.lt.s32.totalorder %v667, 111
        %v5003 = vsel %vm5002, %v4987, %v4995
        %v5004 = vsel %vm5002, %v4989, %v4997
        %v5005 = vsel %vm5002, %v4991, %v4999
        %v5006 = vsel %vm5002, %v4993, %v5001
        %v5007 = vsel %vm5002, %v4995, %v4987
        %v5008 = vsel %vm5002, %v4997, %v4989
        %v5009 = vsel %vm5002, %v4999, %v4991
        %v5010 = vsel %vm5002, %v5001, %v4993
        %v5011 = vlaneseq
        %v5012 = vshrl.u32 %v5011, 7
        %v5013 = vsub.s32 7, %v5012
        %v5014 = vrot.slane %v504, %v5013
        %v5015 = vlaneseq
        %v5016 = vshrl.u32 %v5015, 7
        %v5017 = vsub.s32 7, %v5016
        %v5018 = vrot.slane %v505, %v5017
        %v5019 = vmul.f32 %v5003, %v5014
        %v5020 = vmul.f32 %v5007, %v5018
        %v5021 = vmul.f32 %v5004, %v5014
        %v5022 = vmul.f32 %v5008, %v5018
        %v5023 = vmul.f32 %v5005, %v5014
        %v5024 = vmul.f32 %v5009, %v5018
        %v5025 = vmul.f32 %v5006, %v5014
        %v5026 = vmul.f32 %v5010, %v5018
        %5027 = vrot.lane.b32.xlu0 %v474, 111
        %v5028 = vpop.permute.xlu0 %5027
        %5029 = vrot.lane.b32.xlu0 %v480, 111
        %v5030 = vpop.permute.xlu0 %5029
        %5031 = vrot.lane.b32.xlu0 %v486, 111
        %v5032 = vpop.permute.xlu0 %5031
        %5033 = vrot.lane.b32.xlu0 %v492, 111
        %v5034 = vpop.permute.xlu0 %5033
        %5035 = vrot.lane.b32.xlu0 %v475, 111
        %v5036 = vpop.permute.xlu0 %5035
        %5037 = vrot.lane.b32.xlu0 %v481, 111
        %v5038 = vpop.permute.xlu0 %5037
        %5039 = vrot.lane.b32.xlu0 %v487, 111
        %v5040 = vpop.permute.xlu0 %5039
        %5041 = vrot.lane.b32.xlu0 %v493, 111
        %v5042 = vpop.permute.xlu0 %5041
        %5043 = vrot.lane.b32.xlu0 %v476, 111
        %v5044 = vpop.permute.xlu0 %5043
        %5045 = vrot.lane.b32.xlu0 %v482, 111
        %v5046 = vpop.permute.xlu0 %5045
        %5047 = vrot.lane.b32.xlu0 %v488, 111
        %v5048 = vpop.permute.xlu0 %5047
        %5049 = vrot.lane.b32.xlu0 %v494, 111
        %v5050 = vpop.permute.xlu0 %5049
        %5051 = vrot.lane.b32.xlu0 %v477, 111
        %v5052 = vpop.permute.xlu0 %5051
        %5053 = vrot.lane.b32.xlu0 %v483, 111
        %v5054 = vpop.permute.xlu0 %5053
        %5055 = vrot.lane.b32.xlu0 %v489, 111
        %v5056 = vpop.permute.xlu0 %5055
        %5057 = vrot.lane.b32.xlu0 %v495, 111
        %v5058 = vpop.permute.xlu0 %5057
        %5059 = vrot.lane.b32.xlu0 %v478, 111
        %v5060 = vpop.permute.xlu0 %5059
        %5061 = vrot.lane.b32.xlu0 %v484, 111
        %v5062 = vpop.permute.xlu0 %5061
        %5063 = vrot.lane.b32.xlu0 %v490, 111
        %v5064 = vpop.permute.xlu0 %5063
        %5065 = vrot.lane.b32.xlu0 %v496, 111
        %v5066 = vpop.permute.xlu0 %5065
        %5067 = vrot.lane.b32.xlu0 %v479, 111
        %v5068 = vpop.permute.xlu0 %5067
        %5069 = vrot.lane.b32.xlu0 %v485, 111
        %v5070 = vpop.permute.xlu0 %5069
        %5071 = vrot.lane.b32.xlu0 %v491, 111
        %v5072 = vpop.permute.xlu0 %5071
        %5073 = vrot.lane.b32.xlu0 %v497, 111
        %v5074 = vpop.permute.xlu0 %5073
        %v5075 = vsel %vm5002, %v5060, %v5068
        %v5076 = vsel %vm5002, %v5062, %v5070
        %v5077 = vsel %vm5002, %v5064, %v5072
        %v5078 = vsel %vm5002, %v5066, %v5074
        %v5079 = vsel %vm5002, %v5052, %v5060
        %v5080 = vsel %vm5002, %v5054, %v5062
        %v5081 = vsel %vm5002, %v5056, %v5064
        %v5082 = vsel %vm5002, %v5058, %v5066
        %v5083 = vsel %vm5002, %v5044, %v5052
        %v5084 = vsel %vm5002, %v5046, %v5054
        %v5085 = vsel %vm5002, %v5048, %v5056
        %v5086 = vsel %vm5002, %v5050, %v5058
        %v5087 = vsel %vm5002, %v5036, %v5044
        %v5088 = vsel %vm5002, %v5038, %v5046
        %v5089 = vsel %vm5002, %v5040, %v5048
        %v5090 = vsel %vm5002, %v5042, %v5050
        %v5091 = vsel %vm5002, %v5028, %v5036
        %v5092 = vsel %vm5002, %v5030, %v5038
        %v5093 = vsel %vm5002, %v5032, %v5040
        %v5094 = vsel %vm5002, %v5034, %v5042
        %v5095 = vsel %vm5002, %v5068, %v5028
        %v5096 = vsel %vm5002, %v5070, %v5030
        %v5097 = vsel %vm5002, %v5072, %v5032
        %v5098 = vsel %vm5002, %v5074, %v5034
        %v5099 = vlaneseq
        %v5100 = vshrl.u32 %v5099, 7
        %v5101 = vsub.s32 7, %v5100
        %v5102 = vrot.slane %v498, %v5101
        %v5103 = vlaneseq
        %v5104 = vshrl.u32 %v5103, 7
        %v5105 = vsub.s32 7, %v5104
        %v5106 = vrot.slane %v499, %v5105
        %v5107 = vlaneseq
        %v5108 = vshrl.u32 %v5107, 7
        %v5109 = vsub.s32 7, %v5108
        %v5110 = vrot.slane %v500, %v5109
        %v5111 = vlaneseq
        %v5112 = vshrl.u32 %v5111, 7
        %v5113 = vsub.s32 7, %v5112
        %v5114 = vrot.slane %v501, %v5113
        %v5115 = vlaneseq
        %v5116 = vshrl.u32 %v5115, 7
        %v5117 = vsub.s32 7, %v5116
        %v5118 = vrot.slane %v502, %v5117
        %v5119 = vlaneseq
        %v5120 = vshrl.u32 %v5119, 7
        %v5121 = vsub.s32 7, %v5120
        %v5122 = vrot.slane %v503, %v5121
        %v5123 = vmul.f32 %v5091, %v5102
        %v5124 = vmul.f32 %v5087, %v5106
        %v5125 = vmul.f32 %v5083, %v5110
        %v5126 = vmul.f32 %v5079, %v5114
        %v5127 = vmul.f32 %v5075, %v5118
        %v5128 = vmul.f32 %v5095, %v5122
        %v5129 = vmul.f32 %v5092, %v5102
        %v5130 = vmul.f32 %v5088, %v5106
        %v5131 = vmul.f32 %v5084, %v5110
        %v5132 = vmul.f32 %v5080, %v5114
        %v5133 = vmul.f32 %v5076, %v5118
        %v5134 = vmul.f32 %v5096, %v5122
        %v5135 = vmul.f32 %v5093, %v5102
        %v5136 = vmul.f32 %v5089, %v5106
        %v5137 = vmul.f32 %v5085, %v5110
        %v5138 = vmul.f32 %v5081, %v5114
        %v5139 = vmul.f32 %v5077, %v5118
        %v5140 = vmul.f32 %v5097, %v5122
        %v5141 = vmul.f32 %v5094, %v5102
        %v5142 = vmul.f32 %v5090, %v5106
        %v5143 = vmul.f32 %v5086, %v5110
        %v5144 = vmul.f32 %v5082, %v5114
        %v5145 = vmul.f32 %v5078, %v5118
        %v5146 = vmul.f32 %v5098, %v5122
        %s5147 = scalar_lea.vmem [#allocation8], 256
        %v5148 = vld [vmem:[%s5147] sm:$0xff]
        %v5149 = vld [vmem:[%s5147 + $0x8] sm:$0xff]
        %v5150 = vld [vmem:[%s5147 + $0x10] sm:$0xff]
        %v5151 = vld [vmem:[%s5147 + $0x18] sm:$0xff]
        %v5153 = vsel %vm515, %v5148, 0
        %v5156 = vsel %vm515, %v5149, 0
        %v5159 = vsel %vm515, %v5150, 0
        %v5162 = vsel %vm515, %v5151, 0
        %5164 = vmatprep.subr.mxu0 0.0
        %5165 = vmatpush1.msra.mxu0 0.0
        %5166 = vmatprep.subr.mxu0 0.0
        %5167 = vmatpush1.msra.mxu0 0.0
        %5168 = vmatprep.subr.mxu0 0.0
        %5169 = vmatpush1.msra.mxu0 0.0
        %5170 = vmatprep.subr.mxu0 0.0
        %5171 = vmatpush1.msra.mxu0 0.0
        %5172 = vmatprep.subr.mxu0 0.0
        %5173 = vmatpush1.msra.mxu0 0.0
        %5174 = vmatprep.subr.mxu0 0.0
        %5175 = vmatpush1.msra.mxu0 0.0
        %5176 = vmatprep.subr.mxu0 0.0
        %5177 = vmatpush1.msra.mxu0 0.0
        %5178 = vmatprep.subr.mxu0 0.0
        %5179 = vmatpush1.msra.mxu0 0.0
        %5180 = vmatprep.subr.mxu0 0.0
        %5181 = vmatpush1.msra.mxu0 0.0
        %5182 = vmatprep.subr.mxu0 0.0
        %5183 = vmatpush1.msra.mxu0 0.0
        %5184 = vmatprep.subr.mxu0 0.0
        %5185 = vmatpush1.msra.mxu0 0.0
        %5186 = vmatprep.subr.mxu0 0.0
        %5187 = vmatpush1.msra.mxu0 0.0
        %5188 = vmatprep.subr.mxu0 %v5026
        %5189 = vmatpush1.msra.mxu0 %v5025
        %5190 = vmatprep.subr.mxu0 %v5024
        %5191 = vmatpush1.msra.mxu0 %v5023
        %5192 = vmatprep.subr.mxu0 %v5022
        %5193 = vmatpush1.msra.mxu0 %v5021
        %5194 = vmatprep.subr.mxu0 %v5020
        %5195 = vmatpush1.msra.mxu0 %v5019
        %5196 = vmatprep.subr.mxu0 0.0
        %5197 = vmatpush2.msra.mxu0 0.0
        %5198 = vmatprep.subr.mxu0 0.0
        %5199 = vmatpush2.msra.mxu0 0.0
        %5200 = vmatprep.subr.mxu0 0.0
        %5201 = vmatpush2.msra.mxu0 0.0
        %5202 = vmatprep.subr.mxu0 0.0
        %5203 = vmatpush2.msra.mxu0 0.0
        %5204 = vmatprep.subr.mxu0 0.0
        %5205 = vmatpush2.msra.mxu0 0.0
        %5206 = vmatprep.subr.mxu0 0.0
        %5207 = vmatpush2.msra.mxu0 0.0
        %5208 = vmatprep.subr.mxu0 0.0
        %5209 = vmatpush2.msra.mxu0 0.0
        %5210 = vmatprep.subr.mxu0 0.0
        %5211 = vmatpush2.msra.mxu0 0.0
        %5212 = vmatprep.subr.mxu0 0.0
        %5213 = vmatpush2.msra.mxu0 0.0
        %5214 = vmatprep.subr.mxu0 0.0
        %5215 = vmatpush2.msra.mxu0 0.0
        %5216 = vmatprep.subr.mxu0 0.0
        %5217 = vmatpush2.msra.mxu0 0.0
        %5218 = vmatprep.subr.mxu0 0.0
        %5219 = vmatpush2.msra.mxu0 0.0
        %5220 = vmatprep.subr.mxu0 0.0
        %5221 = vmatpush2.msra.mxu0 0.0
        %5222 = vmatprep.subr.mxu0 0.0
        %5223 = vmatpush2.msra.mxu0 0.0
        %5224 = vmatprep.subr.mxu0 0.0
        %5225 = vmatpush2.msra.mxu0 0.0
        %5226 = vmatprep.subr.mxu0 0.0
        %5227 = vmatpush2.msra.mxu0 0.0
        %5228 = vmatprep.mubr.f32.mxu0 0.0
        %5229 = vmatmul.mubr.f32.gmra.mxu0 %v5153
        %v5230 = vpop.f32.mrf.mxu0
        %v5231 = vadd.f32 0.0, %v5230
        %v5232 = vpop.f32.mrf.mxu0
        %v5233 = vadd.f32 0.0, %v5232
        %5234 = vmatprep.mubr.f32.mxu0 0.0
        %5235 = vmatmul.mubr.f32.gmra.mxu0 %v5156
        %v5236 = vpop.f32.mrf.mxu0
        %v5237 = vadd.f32 0.0, %v5236
        %v5238 = vpop.f32.mrf.mxu0
        %v5239 = vadd.f32 0.0, %v5238
        %5240 = vmatprep.mubr.f32.mxu0 0.0
        %5241 = vmatmul.mubr.f32.gmra.mxu0 %v5159
        %v5242 = vpop.f32.mrf.mxu0
        %v5243 = vadd.f32 0.0, %v5242
        %v5244 = vpop.f32.mrf.mxu0
        %v5245 = vadd.f32 0.0, %v5244
        %5246 = vmatprep.mubr.f32.mxu0 0.0
        %5247 = vmatmul.mubr.f32.gmra.mxu0 %v5162
        %v5248 = vpop.f32.mrf.mxu0
        %v5249 = vadd.f32 0.0, %v5248
        %v5250 = vpop.f32.mrf.mxu0
        %v5251 = vadd.f32 0.0, %v5250
        %5252 = vdwg.mxu0
        %v5253 = vadd.f32 %v4670, %v5231
        %v5254 = vadd.f32 %v4671, %v5233
        %v5255 = vadd.f32 %v4672, %v5237
        %v5256 = vadd.f32 %v4673, %v5239
        %v5257 = vadd.f32 %v4674, %v5243
        %v5258 = vadd.f32 %v4675, %v5245
        %v5259 = vadd.f32 %v4676, %v5249
        %v5260 = vadd.f32 %v4677, %v5251
        %s5261 = scalar_lea.vmem [#allocation10], 256
        %v5262 = vld [vmem:[%s5261] sm:$0xff]
        %v5263 = vld [vmem:[%s5261 + $0x8] sm:$0xff]
        %v5264 = vld [vmem:[%s5261 + $0x10] sm:$0xff]
        %v5265 = vld [vmem:[%s5261 + $0x18] sm:$0xff]
        %v5267 = vsel %vm515, %v5262, 0
        %v5270 = vsel %vm515, %v5263, 0
        %v5273 = vsel %vm515, %v5264, 0
        %v5276 = vsel %vm515, %v5265, 0
        %5278 = vmatprep.subr.mxu0 0.0
        %5279 = vmatpush1.msra.mxu0 0.0
        %5280 = vmatprep.subr.mxu0 0.0
        %5281 = vmatpush1.msra.mxu0 0.0
        %5282 = vmatprep.subr.mxu0 0.0
        %5283 = vmatpush1.msra.mxu0 0.0
        %5284 = vmatprep.subr.mxu0 0.0
        %5285 = vmatpush1.msra.mxu0 0.0
        %5286 = vmatprep.subr.mxu0 0.0
        %5287 = vmatpush1.msra.mxu0 0.0
        %5288 = vmatprep.subr.mxu0 0.0
        %5289 = vmatpush1.msra.mxu0 0.0
        %5290 = vmatprep.subr.mxu0 0.0
        %5291 = vmatpush1.msra.mxu0 0.0
        %5292 = vmatprep.subr.mxu0 0.0
        %5293 = vmatpush1.msra.mxu0 0.0
        %5294 = vmatprep.subr.mxu0 0.0
        %5295 = vmatpush1.msra.mxu0 0.0
        %5296 = vmatprep.subr.mxu0 0.0
        %5297 = vmatpush1.msra.mxu0 0.0
        %5298 = vmatprep.subr.mxu0 0.0
        %5299 = vmatpush1.msra.mxu0 0.0
        %5300 = vmatprep.subr.mxu0 0.0
        %5301 = vmatpush1.msra.mxu0 0.0
        %5302 = vmatprep.subr.mxu0 %v5142
        %5303 = vmatpush1.msra.mxu0 %v5141
        %5304 = vmatprep.subr.mxu0 %v5136
        %5305 = vmatpush1.msra.mxu0 %v5135
        %5306 = vmatprep.subr.mxu0 %v5130
        %5307 = vmatpush1.msra.mxu0 %v5129
        %5308 = vmatprep.subr.mxu0 %v5124
        %5309 = vmatpush1.msra.mxu0 %v5123
        %5310 = vmatprep.subr.mxu0 0.0
        %5311 = vmatpush2.msra.mxu0 0.0
        %5312 = vmatprep.subr.mxu0 0.0
        %5313 = vmatpush2.msra.mxu0 0.0
        %5314 = vmatprep.subr.mxu0 0.0
        %5315 = vmatpush2.msra.mxu0 0.0
        %5316 = vmatprep.subr.mxu0 0.0
        %5317 = vmatpush2.msra.mxu0 0.0
        %5318 = vmatprep.subr.mxu0 0.0
        %5319 = vmatpush2.msra.mxu0 0.0
        %5320 = vmatprep.subr.mxu0 0.0
        %5321 = vmatpush2.msra.mxu0 0.0
        %5322 = vmatprep.subr.mxu0 0.0
        %5323 = vmatpush2.msra.mxu0 0.0
        %5324 = vmatprep.subr.mxu0 0.0
        %5325 = vmatpush2.msra.mxu0 0.0
        %5326 = vmatprep.subr.mxu0 0.0
        %5327 = vmatpush2.msra.mxu0 0.0
        %5328 = vmatprep.subr.mxu0 0.0
        %5329 = vmatpush2.msra.mxu0 0.0
        %5330 = vmatprep.subr.mxu0 0.0
        %5331 = vmatpush2.msra.mxu0 0.0
        %5332 = vmatprep.subr.mxu0 0.0
        %5333 = vmatpush2.msra.mxu0 0.0
        %5334 = vmatprep.subr.mxu0 0.0
        %5335 = vmatpush2.msra.mxu0 0.0
        %5336 = vmatprep.subr.mxu0 0.0
        %5337 = vmatpush2.msra.mxu0 0.0
        %5338 = vmatprep.subr.mxu0 0.0
        %5339 = vmatpush2.msra.mxu0 0.0
        %5340 = vmatprep.subr.mxu0 0.0
        %5341 = vmatpush2.msra.mxu0 0.0
        %5342 = vmatprep.mubr.f32.mxu0 0.0
        %5343 = vmatmul.mubr.f32.gmra.mxu0 %v5267
        %v5344 = vpop.f32.mrf.mxu0
        %v5345 = vadd.f32 0.0, %v5344
        %v5346 = vpop.f32.mrf.mxu0
        %v5347 = vadd.f32 0.0, %v5346
        %5348 = vmatprep.mubr.f32.mxu0 0.0
        %5349 = vmatmul.mubr.f32.gmra.mxu0 %v5270
        %v5350 = vpop.f32.mrf.mxu0
        %v5351 = vadd.f32 0.0, %v5350
        %v5352 = vpop.f32.mrf.mxu0
        %v5353 = vadd.f32 0.0, %v5352
        %5354 = vmatprep.mubr.f32.mxu0 0.0
        %5355 = vmatmul.mubr.f32.gmra.mxu0 %v5273
        %v5356 = vpop.f32.mrf.mxu0
        %v5357 = vadd.f32 0.0, %v5356
        %v5358 = vpop.f32.mrf.mxu0
        %v5359 = vadd.f32 0.0, %v5358
        %5360 = vmatprep.mubr.f32.mxu0 0.0
        %5361 = vmatmul.mubr.f32.gmra.mxu0 %v5276
        %v5362 = vpop.f32.mrf.mxu0
        %v5363 = vadd.f32 0.0, %v5362
        %v5364 = vpop.f32.mrf.mxu0
        %v5365 = vadd.f32 0.0, %v5364
        %5366 = vdwg.mxu0
        %5367 = vmatprep.subr.mxu0 0.0
        %5368 = vmatpush1.msra.mxu0 0.0
        %5369 = vmatprep.subr.mxu0 0.0
        %5370 = vmatpush1.msra.mxu0 0.0
        %5371 = vmatprep.subr.mxu0 0.0
        %5372 = vmatpush1.msra.mxu0 0.0
        %5373 = vmatprep.subr.mxu0 0.0
        %5374 = vmatpush1.msra.mxu0 0.0
        %5375 = vmatprep.subr.mxu0 0.0
        %5376 = vmatpush1.msra.mxu0 0.0
        %5377 = vmatprep.subr.mxu0 0.0
        %5378 = vmatpush1.msra.mxu0 0.0
        %5379 = vmatprep.subr.mxu0 0.0
        %5380 = vmatpush1.msra.mxu0 0.0
        %5381 = vmatprep.subr.mxu0 0.0
        %5382 = vmatpush1.msra.mxu0 0.0
        %5383 = vmatprep.subr.mxu0 0.0
        %5384 = vmatpush1.msra.mxu0 0.0
        %5385 = vmatprep.subr.mxu0 0.0
        %5386 = vmatpush1.msra.mxu0 0.0
        %5387 = vmatprep.subr.mxu0 0.0
        %5388 = vmatpush1.msra.mxu0 0.0
        %5389 = vmatprep.subr.mxu0 0.0
        %5390 = vmatpush1.msra.mxu0 0.0
        %5391 = vmatprep.subr.mxu0 %v5144
        %5392 = vmatpush1.msra.mxu0 %v5143
        %5393 = vmatprep.subr.mxu0 %v5138
        %5394 = vmatpush1.msra.mxu0 %v5137
        %5395 = vmatprep.subr.mxu0 %v5132
        %5396 = vmatpush1.msra.mxu0 %v5131
        %5397 = vmatprep.subr.mxu0 %v5126
        %5398 = vmatpush1.msra.mxu0 %v5125
        %5399 = vmatprep.subr.mxu0 0.0
        %5400 = vmatpush2.msra.mxu0 0.0
        %5401 = vmatprep.subr.mxu0 0.0
        %5402 = vmatpush2.msra.mxu0 0.0
        %5403 = vmatprep.subr.mxu0 0.0
        %5404 = vmatpush2.msra.mxu0 0.0
        %5405 = vmatprep.subr.mxu0 0.0
        %5406 = vmatpush2.msra.mxu0 0.0
        %5407 = vmatprep.subr.mxu0 0.0
        %5408 = vmatpush2.msra.mxu0 0.0
        %5409 = vmatprep.subr.mxu0 0.0
        %5410 = vmatpush2.msra.mxu0 0.0
        %5411 = vmatprep.subr.mxu0 0.0
        %5412 = vmatpush2.msra.mxu0 0.0
        %5413 = vmatprep.subr.mxu0 0.0
        %5414 = vmatpush2.msra.mxu0 0.0
        %5415 = vmatprep.subr.mxu0 0.0
        %5416 = vmatpush2.msra.mxu0 0.0
        %5417 = vmatprep.subr.mxu0 0.0
        %5418 = vmatpush2.msra.mxu0 0.0
        %5419 = vmatprep.subr.mxu0 0.0
        %5420 = vmatpush2.msra.mxu0 0.0
        %5421 = vmatprep.subr.mxu0 0.0
        %5422 = vmatpush2.msra.mxu0 0.0
        %5423 = vmatprep.subr.mxu0 0.0
        %5424 = vmatpush2.msra.mxu0 0.0
        %5425 = vmatprep.subr.mxu0 0.0
        %5426 = vmatpush2.msra.mxu0 0.0
        %5427 = vmatprep.subr.mxu0 0.0
        %5428 = vmatpush2.msra.mxu0 0.0
        %5429 = vmatprep.subr.mxu0 0.0
        %5430 = vmatpush2.msra.mxu0 0.0
        %5431 = vmatprep.mubr.f32.mxu0 0.0
        %5432 = vmatmul.mubr.f32.gmra.mxu0 %v5267
        %v5433 = vpop.f32.mrf.mxu0
        %v5434 = vadd.f32 0.0, %v5433
        %v5435 = vpop.f32.mrf.mxu0
        %v5436 = vadd.f32 0.0, %v5435
        %5437 = vmatprep.mubr.f32.mxu0 0.0
        %5438 = vmatmul.mubr.f32.gmra.mxu0 %v5270
        %v5439 = vpop.f32.mrf.mxu0
        %v5440 = vadd.f32 0.0, %v5439
        %v5441 = vpop.f32.mrf.mxu0
        %v5442 = vadd.f32 0.0, %v5441
        %5443 = vmatprep.mubr.f32.mxu0 0.0
        %5444 = vmatmul.mubr.f32.gmra.mxu0 %v5273
        %v5445 = vpop.f32.mrf.mxu0
        %v5446 = vadd.f32 0.0, %v5445
        %v5447 = vpop.f32.mrf.mxu0
        %v5448 = vadd.f32 0.0, %v5447
        %5449 = vmatprep.mubr.f32.mxu0 0.0
        %5450 = vmatmul.mubr.f32.gmra.mxu0 %v5276
        %v5451 = vpop.f32.mrf.mxu0
        %v5452 = vadd.f32 0.0, %v5451
        %v5453 = vpop.f32.mrf.mxu0
        %v5454 = vadd.f32 0.0, %v5453
        %5455 = vdwg.mxu0
        %5456 = vmatprep.subr.mxu0 0.0
        %5457 = vmatpush1.msra.mxu0 0.0
        %5458 = vmatprep.subr.mxu0 0.0
        %5459 = vmatpush1.msra.mxu0 0.0
        %5460 = vmatprep.subr.mxu0 0.0
        %5461 = vmatpush1.msra.mxu0 0.0
        %5462 = vmatprep.subr.mxu0 0.0
        %5463 = vmatpush1.msra.mxu0 0.0
        %5464 = vmatprep.subr.mxu0 0.0
        %5465 = vmatpush1.msra.mxu0 0.0
        %5466 = vmatprep.subr.mxu0 0.0
        %5467 = vmatpush1.msra.mxu0 0.0
        %5468 = vmatprep.subr.mxu0 0.0
        %5469 = vmatpush1.msra.mxu0 0.0
        %5470 = vmatprep.subr.mxu0 0.0
        %5471 = vmatpush1.msra.mxu0 0.0
        %5472 = vmatprep.subr.mxu0 0.0
        %5473 = vmatpush1.msra.mxu0 0.0
        %5474 = vmatprep.subr.mxu0 0.0
        %5475 = vmatpush1.msra.mxu0 0.0
        %5476 = vmatprep.subr.mxu0 0.0
        %5477 = vmatpush1.msra.mxu0 0.0
        %5478 = vmatprep.subr.mxu0 0.0
        %5479 = vmatpush1.msra.mxu0 0.0
        %5480 = vmatprep.subr.mxu0 %v5146
        %5481 = vmatpush1.msra.mxu0 %v5145
        %5482 = vmatprep.subr.mxu0 %v5140
        %5483 = vmatpush1.msra.mxu0 %v5139
        %5484 = vmatprep.subr.mxu0 %v5134
        %5485 = vmatpush1.msra.mxu0 %v5133
        %5486 = vmatprep.subr.mxu0 %v5128
        %5487 = vmatpush1.msra.mxu0 %v5127
        %5488 = vmatprep.subr.mxu0 0.0
        %5489 = vmatpush2.msra.mxu0 0.0
        %5490 = vmatprep.subr.mxu0 0.0
        %5491 = vmatpush2.msra.mxu0 0.0
        %5492 = vmatprep.subr.mxu0 0.0
        %5493 = vmatpush2.msra.mxu0 0.0
        %5494 = vmatprep.subr.mxu0 0.0
        %5495 = vmatpush2.msra.mxu0 0.0
        %5496 = vmatprep.subr.mxu0 0.0
        %5497 = vmatpush2.msra.mxu0 0.0
        %5498 = vmatprep.subr.mxu0 0.0
        %5499 = vmatpush2.msra.mxu0 0.0
        %5500 = vmatprep.subr.mxu0 0.0
        %5501 = vmatpush2.msra.mxu0 0.0
        %5502 = vmatprep.subr.mxu0 0.0
        %5503 = vmatpush2.msra.mxu0 0.0
        %5504 = vmatprep.subr.mxu0 0.0
        %5505 = vmatpush2.msra.mxu0 0.0
        %5506 = vmatprep.subr.mxu0 0.0
        %5507 = vmatpush2.msra.mxu0 0.0
        %5508 = vmatprep.subr.mxu0 0.0
        %5509 = vmatpush2.msra.mxu0 0.0
        %5510 = vmatprep.subr.mxu0 0.0
        %5511 = vmatpush2.msra.mxu0 0.0
        %5512 = vmatprep.subr.mxu0 0.0
        %5513 = vmatpush2.msra.mxu0 0.0
        %5514 = vmatprep.subr.mxu0 0.0
        %5515 = vmatpush2.msra.mxu0 0.0
        %5516 = vmatprep.subr.mxu0 0.0
        %5517 = vmatpush2.msra.mxu0 0.0
        %5518 = vmatprep.subr.mxu0 0.0
        %5519 = vmatpush2.msra.mxu0 0.0
        %5520 = vmatprep.mubr.f32.mxu0 0.0
        %5521 = vmatmul.mubr.f32.gmra.mxu0 %v5267
        %v5522 = vpop.f32.mrf.mxu0
        %v5523 = vadd.f32 0.0, %v5522
        %v5524 = vpop.f32.mrf.mxu0
        %v5525 = vadd.f32 0.0, %v5524
        %5526 = vmatprep.mubr.f32.mxu0 0.0
        %5527 = vmatmul.mubr.f32.gmra.mxu0 %v5270
        %v5528 = vpop.f32.mrf.mxu0
        %v5529 = vadd.f32 0.0, %v5528
        %v5530 = vpop.f32.mrf.mxu0
        %v5531 = vadd.f32 0.0, %v5530
        %5532 = vmatprep.mubr.f32.mxu0 0.0
        %5533 = vmatmul.mubr.f32.gmra.mxu0 %v5273
        %v5534 = vpop.f32.mrf.mxu0
        %v5535 = vadd.f32 0.0, %v5534
        %v5536 = vpop.f32.mrf.mxu0
        %v5537 = vadd.f32 0.0, %v5536
        %5538 = vmatprep.mubr.f32.mxu0 0.0
        %5539 = vmatmul.mubr.f32.gmra.mxu0 %v5276
        %v5540 = vpop.f32.mrf.mxu0
        %v5541 = vadd.f32 0.0, %v5540
        %v5542 = vpop.f32.mrf.mxu0
        %v5543 = vadd.f32 0.0, %v5542
        %5544 = vdwg.mxu0
        %v5545 = vadd.f32 %v4962, %v5345
        %v5546 = vadd.f32 %v4963, %v5347
        %v5547 = vadd.f32 %v4964, %v5434
        %v5548 = vadd.f32 %v4965, %v5436
        %v5549 = vadd.f32 %v4966, %v5523
        %v5550 = vadd.f32 %v4967, %v5525
        %v5551 = vadd.f32 %v4968, %v5351
        %v5552 = vadd.f32 %v4969, %v5353
        %v5553 = vadd.f32 %v4970, %v5440
        %v5554 = vadd.f32 %v4971, %v5442
        %v5555 = vadd.f32 %v4972, %v5529
        %v5556 = vadd.f32 %v4973, %v5531
        %v5557 = vadd.f32 %v4974, %v5357
        %v5558 = vadd.f32 %v4975, %v5359
        %v5559 = vadd.f32 %v4976, %v5446
        %v5560 = vadd.f32 %v4977, %v5448
        %v5561 = vadd.f32 %v4978, %v5535
        %v5562 = vadd.f32 %v4979, %v5537
        %v5563 = vadd.f32 %v4980, %v5363
        %v5564 = vadd.f32 %v4981, %v5365
        %v5565 = vadd.f32 %v4982, %v5452
        %v5566 = vadd.f32 %v4983, %v5454
        %v5567 = vadd.f32 %v4984, %v5541
        %v5568 = vadd.f32 %v4985, %v5543
        %v5569 = vadd.f32 %v5253, %v5545
        %v5570 = vadd.f32 %v5254, %v5546
        %v5571 = vadd.f32 %v5255, %v5551
        %v5572 = vadd.f32 %v5256, %v5552
        %v5573 = vadd.f32 %v5257, %v5557
        %v5574 = vadd.f32 %v5258, %v5558
        %v5575 = vadd.f32 %v5259, %v5563
        %v5576 = vadd.f32 %v5260, %v5564
        %v5577 = vmax.f32 %v5569, 0.0
        %v5578 = vmax.f32 %v5570, 0.0
        %v5579 = vmax.f32 %v5571, 0.0
        %v5580 = vmax.f32 %v5572, 0.0
        %v5581 = vmax.f32 %v5573, 0.0
        %v5582 = vmax.f32 %v5574, 0.0
        %v5583 = vmax.f32 %v5575, 0.0
        %v5584 = vmax.f32 %v5576, 0.0
        %v5585 = vadd.f32 %v5577, 0.0
        %v5586 = vadd.f32 %v5578, 0.0
        %v5587 = vadd.f32 %v5579, 0.0
        %v5588 = vadd.f32 %v5580, 0.0
        %v5589 = vadd.f32 %v5581, 0.0
        %v5590 = vadd.f32 %v5582, 0.0
        %v5591 = vadd.f32 %v5583, 0.0
        %v5592 = vadd.f32 %v5584, 0.0
        %v5593 = vadd.f32 %v5253, %v5547
        %v5594 = vadd.f32 %v5254, %v5548
        %v5595 = vadd.f32 %v5255, %v5553
        %v5596 = vadd.f32 %v5256, %v5554
        %v5597 = vadd.f32 %v5257, %v5559
        %v5598 = vadd.f32 %v5258, %v5560
        %v5599 = vadd.f32 %v5259, %v5565
        %v5600 = vadd.f32 %v5260, %v5566
        %v5601 = vmax.f32 %v5593, 0.0
        %v5602 = vmax.f32 %v5594, 0.0
        %v5603 = vmax.f32 %v5595, 0.0
        %v5604 = vmax.f32 %v5596, 0.0
        %v5605 = vmax.f32 %v5597, 0.0
        %v5606 = vmax.f32 %v5598, 0.0
        %v5607 = vmax.f32 %v5599, 0.0
        %v5608 = vmax.f32 %v5600, 0.0
        %v5609 = vadd.f32 %v5585, %v5601
        %v5610 = vadd.f32 %v5586, %v5602
        %v5611 = vadd.f32 %v5587, %v5603
        %v5612 = vadd.f32 %v5588, %v5604
        %v5613 = vadd.f32 %v5589, %v5605
        %v5614 = vadd.f32 %v5590, %v5606
        %v5615 = vadd.f32 %v5591, %v5607
        %v5616 = vadd.f32 %v5592, %v5608
        %v5617 = vadd.f32 %v5253, %v5549
        %v5618 = vadd.f32 %v5254, %v5550
        %v5619 = vadd.f32 %v5255, %v5555
        %v5620 = vadd.f32 %v5256, %v5556
        %v5621 = vadd.f32 %v5257, %v5561
        %v5622 = vadd.f32 %v5258, %v5562
        %v5623 = vadd.f32 %v5259, %v5567
        %v5624 = vadd.f32 %v5260, %v5568
        %v5625 = vmax.f32 %v5617, 0.0
        %v5626 = vmax.f32 %v5618, 0.0
        %v5627 = vmax.f32 %v5619, 0.0
        %v5628 = vmax.f32 %v5620, 0.0
        %v5629 = vmax.f32 %v5621, 0.0
        %v5630 = vmax.f32 %v5622, 0.0
        %v5631 = vmax.f32 %v5623, 0.0
        %v5632 = vmax.f32 %v5624, 0.0
        %v5633 = vadd.f32 %v5609, %v5625
        %v5634 = vadd.f32 %v5610, %v5626
        %v5635 = vadd.f32 %v5611, %v5627
        %v5636 = vadd.f32 %v5612, %v5628
        %v5637 = vadd.f32 %v5613, %v5629
        %v5638 = vadd.f32 %v5614, %v5630
        %v5639 = vadd.f32 %v5615, %v5631
        %v5640 = vadd.f32 %v5616, %v5632
        %5641 = vst [vmem:[%s417] sm:$0xff] %v5633
        %5642 = vst [vmem:[%s417 + $0x8] sm:$0xff] %v5634
        %5643 = vst [vmem:[%s417 + $0x10] sm:$0xff] %v5635
        %5644 = vst [vmem:[%s417 + $0x18] sm:$0xff] %v5636
        %5645 = vst [vmem:[%s417 + $0x20] sm:$0xff] %v5637
        %5646 = vst [vmem:[%s417 + $0x28] sm:$0xff] %v5638
        %5647 = vst [vmem:[%s417 + $0x30] sm:$0xff] %v5639
        %5648 = vst [vmem:[%s417 + $0x38] sm:$0xff] %v5640
        %s5649 = sand.u32 %s220, 1
        %s5650 = scalar_lea.sflag [#allocation4], %s5649
        %s5651 = sand.u32 %s220, 1
        %s5652 = smul.addr %s5651, 64
        %s5653 = scalar_lea.vmem [#allocation11], %s5652
        // Predicated region
        $region73: #{tpu_custom_call.1} parent=51 // pred_check
          %p5654 = pneg %p230
        $region74: #{tpu_custom_call.1} parent=51 // pred_check_branch
          %5656 = sbr.rel (%p5654) target = $region76
        $region75: #{tpu_custom_call.1} parent=51 // pred_region
          %s5658 = ssub.s32 1024, 1024
          %5659 = vsyncadd %s5650, %s5658
          %s5660 = smul.addr %s29, 8
          %s5661 = smul.addr %s5660, 128
          %s5662 = scalar_lea.hbm %s8, %s5661
          %s5663 = sshll.u32 %s5653, 4
          %s5664 = int_to_ptr.vmem [resolvable:$true] %s5663
          %5669 = dma.vmem_to_hbm [thread:$0]  %s5664, 1024, %s5662, %s5650, 256, 256, 16
        $region76: #{tpu_custom_call.1} parent=51 // pred_fallthru
          _
      $region52: #{tpu_custom_call.1} parent=5 // pred_fallthru
        _
      %p5670 = scmp.le.s32.totalorder 2, %s24
      // Predicated region
      $region77: #{tpu_custom_call.1} parent=5 // pred_check
        %p5671 = pneg %p5670
      $region78: #{tpu_custom_call.1} parent=5 // pred_check_branch
        %5673 = sbr.rel (%p5671) target = $region80
      $region79: #{tpu_custom_call.1} parent=5 // pred_region
        %s5674 = ssub.s32 %s24, 2
        // Predicated region
        $region81: #{tpu_custom_call.1} parent=79 // pred_check
          %p5675 = pneg %p236
        $region82: #{tpu_custom_call.1} parent=79 // pred_check_branch
          %5677 = sbr.rel (%p5675) target = $region84
        $region83: #{tpu_custom_call.1} parent=79 // pred_region
          %s5678 = sand.u32 %s221, 1
          %s5679 = scalar_lea.sflag [#allocation4], %s5678
          %s5680 = sand.u32 %s221, 1
          %s5681 = smul.addr %s5680, 64
          %s5682 = scalar_lea.vmem [#allocation11], %s5681
          %5683 = dma.done %s5679, 1024
        $region84: #{tpu_custom_call.1} parent=79 // pred_fallthru
          _
      $region80: #{tpu_custom_call.1} parent=5 // pred_fallthru
        _
    $region6: #{tpu_custom_call.1} parent=1 // loop_footer
      %s28 = sadd.s32 1, %s24
    $region7: #{tpu_custom_call.1} parent=1 // loop_footer_branch
      %23 = sbr.rel target = $region3
    $region8: #{tpu_custom_call.1} parent=1 // loop_exit
      _
    %5684 = vsyncpa [#allocation3], 1
    %s5685 = scalar_lea.sflag [#allocation3], 1
    %5686 = vsyncpa %s5685, 1
    %5687 = vsyncpa [#allocation6], 1
    %s5688 = scalar_lea.sflag [#allocation6], 1
    %5689 = vsyncpa %s5688, 1
    %5690 = vsyncpa [#allocation9], 1
    %5691 = vsyncpa [#allocation4], 1
    %s5692 = scalar_lea.sflag [#allocation4], 1
    %5693 = vsyncpa %s5692, 1

</llo_original>
